<compile_context>
chip_gen: v7x
topology: tpu7x:2x2x1
jax: 0.10.0
libtpu: 0.0.40
codegen_flags: <defaults>
</compile_context>

<pallas_src>
import functools

import jax
import jax.numpy as jnp
from jax import lax
from jax.experimental import pallas as pl
from jax.experimental.pallas import tpu as pltpu


def _round_up(v, m):
    return ((v + m - 1) // m) * m


# ----------------------------------------------------------------------------
# Fused kernel.  All refs are 2-D with channels on the last (lane) axis
# (leading batch dim squeezed away via `None` in the BlockSpecs).
#   xt_ref: (W, Cin)              halo row above the tile (clamped at top edge)
#   xm_ref: (TH*W, Cin)           the TH interior rows of this tile (flattened)
#   xb_ref: (W, Cin)              halo row below the tile (clamped at bottom)
#   s1,b1:  (1, Cin)              folded BN1 scale/bias
#   w1:     (Cin, Cpad)           1x1 conv weight (bf16, lane-padded)
#   s2,b2:  (1, Cpad)             folded BN2 scale/bias (zero-padded)
#   w2p:    (Cpad, 9*Opad)        packed 3x3 conv weight (bf16), tap k = dy*3+dx
#   o_ref:  (TH*W, Cin+O)         concat([x, conv_out]) for this tile
#   yext:   ((TH+2)*W, Cpad) f32  VMEM scratch: [top halo | mid | bottom halo]
# ----------------------------------------------------------------------------
def _fused_bottleneck_kernel(xt_ref, xm_ref, xb_ref, s1_ref, b1_ref, w1_ref,
                             s2_ref, b2_ref, w2p_ref, o_ref, yext_ref,
                             *, W, TH, out_ch):
    cin = xm_ref.shape[-1]
    cpad = w1_ref.shape[-1]               # padded inter channels (mult of 128)
    opad = w2p_ref.shape[-1] // 9         # padded per-tap out channels (mult of 128)
    rows = TH * W                         # multiple of 8 (W % 8 == 0)

    r = pl.program_id(1)
    is_top = r == 0
    is_bot = r == pl.num_programs(1) - 1

    s1 = s1_ref[...]
    b1 = b1_ref[...]
    s2 = s2_ref[...]
    b2 = b2_ref[...]
    w1 = w1_ref[...]

    def conv1_path(x):
        # BN1 -> ReLU -> 1x1 conv -> BN2 -> ReLU (f32 elementwise, bf16 MXU).
        h = jnp.maximum(x * s1 + b1, 0.0)
        y = jnp.dot(h.astype(jnp.bfloat16), w1, preferred_element_type=jnp.float32)
        return jnp.maximum(y * s2 + b2, 0.0)

    # ---- stage 1: write y for [top halo | mid | bottom halo] into the aligned
    #      VMEM scratch with direct sub-stores (no in-kernel concatenates). ----
    yext_ref[W:(TH + 1) * W] = conv1_path(xm_ref[...])

    zero_row = jnp.zeros((W, cpad), jnp.float32)

    @pl.when(is_top)
    def _():
        yext_ref[:W] = zero_row                        # conv's top zero padding

    @pl.when(jnp.logical_not(is_top))
    def _():
        yext_ref[:W] = conv1_path(xt_ref[...])

    @pl.when(is_bot)
    def _():
        yext_ref[(TH + 1) * W:] = zero_row             # conv's bottom zero padding

    @pl.when(jnp.logical_not(is_bot))
    def _():
        yext_ref[(TH + 1) * W:] = conv1_path(xb_ref[...])

    # ---- stage 2: 3x3 conv as ONE matmul against the packed padded weight ----
    z = jnp.dot(yext_ref[...].astype(jnp.bfloat16), w2p_ref[...],
                preferred_element_type=jnp.float32)    # ((TH+2)*W, 9*Opad)

    # Group taps by dy: slab starts dy*W are sublane-aligned; the +/-1 column
    # (flattened row) shift for dx=0 / dx=2 is realized with one XLU roll each
    # on the dy-summed slabs, with wrap/padding rows masked by column position.
    sum_l = jnp.zeros((rows, opad), jnp.float32)
    sum_c = jnp.zeros((rows, opad), jnp.float32)
    sum_r = jnp.zeros((rows, opad), jnp.float32)
    for dy in range(3):
        slab = z[dy * W:dy * W + rows]                 # aligned sublane slice
        sum_l = sum_l + slab[:, (dy * 3 + 0) * opad:(dy * 3 + 1) * opad]
        sum_c = sum_c + slab[:, (dy * 3 + 1) * opad:(dy * 3 + 2) * opad]
        sum_r = sum_r + slab[:, (dy * 3 + 2) * opad:(dy * 3 + 3) * opad]

    w_idx = lax.broadcasted_iota(jnp.int32, (rows, 1), 0) % W
    not_left = w_idx > 0          # dx=0 tap reads column w-1 (zero pad at w==0)
    not_right = w_idx < W - 1     # dx=2 tap reads column w+1 (zero pad at w==W-1)

    acc = (sum_c
           + jnp.where(not_left, pltpu.roll(sum_l, shift=1, axis=0), 0.0)
           + jnp.where(not_right, pltpu.roll(sum_r, shift=rows - 1, axis=0), 0.0))

    # ---- concat([x, conv_out]) via two direct sub-stores (no lane concat) ----
    o_ref[:, :cin] = xm_ref[...].astype(o_ref.dtype)
    o_ref[:, cin:] = acc[:, :out_ch].astype(o_ref.dtype)


# ----------------------------------------------------------------------------
# Generation-aware VMEM budget and row-tile selection.
# ----------------------------------------------------------------------------
def _vmem_limit_bytes():
    cap = 64 * 1024 * 1024                   # conservative fallback (v7x-sized)
    try:
        cap = int(pltpu.get_tpu_info().vmem_capacity_bytes)
    except Exception:
        pass
    return (3 * cap) // 4                    # 96 MiB on v5e/v6e, 48 MiB on v7x


def _pick_row_tile(N, H, W, cin, cout_total, cinter_pad, out_pad, vmem_limit):
    # Double-buffered, grid-invariant bf16 weight copies.
    weight_bytes = 2 * 2 * (cin * cinter_pad + cinter_pad * 9 * out_pad)
    budget = max(vmem_limit // 2 - weight_bytes, 1 << 20)

    def step_bytes(th):
        rows, rows_ext = th * W, (th + 2) * W
        x_io = 2 * (rows + 2 * W) * cin * 4          # x tile + halo rows (dbl-buffered)
        o_io = 2 * rows * cout_total * 4             # concat output tile (dbl-buffered)
        yext = rows_ext * cinter_pad * 4             # f32 VMEM scratch
        z = rows_ext * 9 * out_pad * 4               # packed 3x3 matmul result
        tmp = 4 * rows * out_pad * 4                 # tap sums / accumulator temps
        return x_io + o_io + yext + z + tmp

    th = 1
    for d in range(1, H + 1):
        if H % d == 0 and step_bytes(d) <= budget:
            th = d
    # Only force extra row tiles when there would otherwise be a single grid
    # point (so both TensorCores get work on v7x); otherwise keep tiles big.
    if N * (H // th) < 2 and th % 2 == 0:
        th //= 2
    return th


# ----------------------------------------------------------------------------
# Forward wrappers.  Primary interface is channels-last (NHWC): no transposes,
# only a free (N,H,W,C)->(N,H*W,C) collapse.  An NCHW adapter is provided for
# drop-in parity with the PyTorch module interface.
# ----------------------------------------------------------------------------
def bottleneck_block_forward(x_nhwc, params):
    N, H, W, cin = x_nhwc.shape
    out_ch = params["out_ch"]
    cpad = params["w1"].shape[1]
    opad = params["w2p"].shape[1] // 9
    assert W % 8 == 0, "kernel assumes W is a multiple of 8 (sublane alignment)"

    x_flat = x_nhwc.reshape(N, H * W, cin)           # free reshape, no transpose

    vmem_limit = _vmem_limit_bytes()
    TH = _pick_row_tile(N, H, W, cin, cin + out_ch, cpad, opad, vmem_limit)
    RT = H // TH
    rows = TH * W

    kernel = functools.partial(_fused_bottleneck_kernel, W=W, TH=TH, out_ch=out_ch)
    out_flat = pl.pallas_call(
        kernel,
        out_shape=jax.ShapeDtypeStruct((N, H * W, cin + out_ch), x_nhwc.dtype),
        grid_spec=pltpu.PrefetchScalarGridSpec(
            num_scalar_prefetch=0,
            grid=(N, RT),
            in_specs=[
                # 1-row halo above the tile (block size W along H*W => block
                # index == image row index); clamped at the top edge.
                pl.BlockSpec((None, W, cin),
                             lambda n, r: (n, jnp.maximum(r * TH - 1, 0), 0)),
                # the TH interior rows of this tile
                pl.BlockSpec((None, rows, cin), lambda n, r: (n, r, 0)),
                # 1-row halo below the tile; clamped at the bottom edge.
                pl.BlockSpec((None, W, cin),
                             lambda n, r: (n, jnp.minimum((r + 1) * TH, H - 1), 0)),
                pl.BlockSpec((1, cin), lambda n, r: (0, 0)),          # s1
                pl.BlockSpec((1, cin), lambda n, r: (0, 0)),          # b1
                pl.BlockSpec((cin, cpad), lambda n, r: (0, 0)),       # w1 (bf16, padded)
                pl.BlockSpec((1, cpad), lambda n, r: (0, 0)),         # s2
                pl.BlockSpec((1, cpad), lambda n, r: (0, 0)),         # b2
                pl.BlockSpec((cpad, 9 * opad), lambda n, r: (0, 0)),  # w2 packed (bf16)
            ],
            out_specs=pl.BlockSpec((None, rows, cin + out_ch),
                                   lambda n, r: (n, r, 0)),
            scratch_shapes=[pltpu.VMEM(((TH + 2) * W, cpad), jnp.float32)],
        ),
        compiler_params=pltpu.CompilerParams(
            dimension_semantics=("parallel", "parallel"),
            vmem_limit_bytes=vmem_limit),
    )(x_flat, x_flat, x_flat,
      params["s1"], params["b1"], params["w1"],
      params["s2"], params["b2"], params["w2p"])

    return out_flat.reshape(N, H, W, cin + out_ch)


def bottleneck_block_forward_nchw(x_nchw, params):
    # Drop-in NCHW interface matching the PyTorch module; a full DenseNet should
    # stay channels-last end-to-end and call bottleneck_block_forward directly.
    x = jnp.transpose(x_nchw, (0, 2, 3, 1))
    out = bottleneck_block_forward(x, params)
    return jnp.transpose(out, (0, 3, 1, 2))


# ----------------------------------------------------------------------------
# Parameter construction (deterministic) and pure-JAX NHWC reference.
# ----------------------------------------------------------------------------
def make_params(key, in_planes, out_planes, eps=1e-5):
    inter = out_planes * 4
    cpad = _round_up(inter, 128)
    opad = _round_up(out_planes, 128)

    ks = jax.random.split(key, 10)
    g1 = 1.0 + 0.1 * jax.random.normal(ks[0], (in_planes,), jnp.float32)
    be1 = 0.1 * jax.random.normal(ks[1], (in_planes,), jnp.float32)
    rm1 = 0.1 * jax.random.normal(ks[2], (in_planes,), jnp.float32)
    rv1 = jnp.abs(1.0 + 0.1 * jax.random.normal(ks[3], (in_planes,), jnp.float32))
    w1_oihw = 0.1 * jax.random.normal(ks[4], (inter, in_planes, 1, 1), jnp.float32)
    g2 = 1.0 + 0.1 * jax.random.normal(ks[5], (inter,), jnp.float32)
    be2 = 0.1 * jax.random.normal(ks[6], (inter,), jnp.float32)
    rm2 = 0.1 * jax.random.normal(ks[7], (inter,), jnp.float32)
    rv2 = jnp.abs(1.0 + 0.1 * jax.random.normal(ks[8], (inter,), jnp.float32))
    w2_oihw = 0.1 * jax.random.normal(ks[9], (out_planes, inter, 3, 3), jnp.float32)

    # Fold eval-mode BN into per-channel scale/bias.
    s1 = g1 / jnp.sqrt(rv1 + eps)
    b1 = be1 - rm1 * s1
    s2 = g2 / jnp.sqrt(rv2 + eps)
    b2 = be2 - rm2 * s2

    # 1x1 weight, lane-padded to Cpad columns (bf16).
    w1 = jnp.transpose(w1_oihw[:, :, 0, 0], (1, 0))                   # (Cin, inter)
    w1p = jnp.pad(w1, ((0, 0), (0, cpad - inter))).astype(jnp.bfloat16)

    # Packed 3x3 weight with per-tap lane padding:
    #   w2p[c, (dy*3+dx)*Opad + o] = w2_oihw[o, c, dy, dx]  (zeros elsewhere)
    w2 = jnp.transpose(w2_oihw, (1, 2, 3, 0))                         # (inter,3,3,O)
    w2p = jnp.pad(w2, ((0, cpad - inter), (0, 0), (0, 0), (0, opad - out_planes)))
    w2p = w2p.reshape(cpad, 9 * opad).astype(jnp.bfloat16)

    s2p = jnp.pad(s2, (0, cpad - inter))     # padded channels stay exactly 0
    b2p = jnp.pad(b2, (0, cpad - inter))

    kernel_params = {
        "s1": s1.reshape(1, in_planes),
        "b1": b1.reshape(1, in_planes),
        "w1": w1p,
        "s2": s2p.reshape(1, cpad),
        "b2": b2p.reshape(1, cpad),
        "w2p": w2p,
        "out_ch": out_planes,
    }
    ref_params = {
        "s1": s1, "b1": b1, "s2": s2, "b2": b2,
        "w1_hwio": jnp.transpose(w1_oihw, (2, 3, 1, 0)),
        "w2_hwio": jnp.transpose(w2_oihw, (2, 3, 1, 0)),
    }
    return kernel_params, ref_params


def reference_forward(x_nhwc, rp):
    # Pure-JAX channels-last reference mirroring the PyTorch module (eval mode).
    h = jnp.maximum(x_nhwc * rp["s1"] + rp["b1"], 0.0)
    y = lax.conv_general_dilated(h, rp["w1_hwio"], (1, 1), "VALID",
                                 dimension_numbers=("NHWC", "HWIO", "NHWC"),
                                 precision=lax.Precision.HIGHEST)
    h2 = jnp.maximum(y * rp["s2"] + rp["b2"], 0.0)
    out = lax.conv_general_dilated(h2, rp["w2_hwio"], (1, 1), ((1, 1), (1, 1)),
                                   dimension_numbers=("NHWC", "HWIO", "NHWC"),
                                   precision=lax.Precision.HIGHEST)
    return jnp.concatenate([x_nhwc, out], axis=-1)


if __name__ == "__main__":
    N, in_planes, H, W = 2, 4, 16, 16
    out_planes = 8

    key = jax.random.PRNGKey(0)
    kx, kp = jax.random.split(key)
    x = jax.random.normal(kx, (N, H, W, in_planes), jnp.float32)   # channels-last
    kernel_params, ref_params = make_params(kp, in_planes, out_planes)

    fwd = jax.jit(functools.partial(bottleneck_block_forward, params=kernel_params))
    out = jax.block_until_ready(fwd(x))

    ref = reference_forward(x, ref_params)
    assert out.shape == (N, H, W, in_planes + out_planes), out.shape
    max_err = float(jnp.max(jnp.abs(out - ref)))
    # bf16 MXU operands (f32 accumulation) -> slightly looser tolerance.
    assert jnp.allclose(out, ref, atol=3e-2, rtol=3e-2), max_err

    print("KERNEL_OK")
</pallas_src>

<mosaic_0001>
module attributes {stable_mosaic.version = 11 : i64} {
  func.func @_fused_bottleneck_kernel(%arg0: i32, %arg1: i32, %arg2: memref<1x16x4xf32, #tpu.memory_space<vmem>>, %arg3: memref<1x256x4xf32, #tpu.memory_space<vmem>>, %arg4: memref<1x16x4xf32, #tpu.memory_space<vmem>>, %arg5: memref<1x4xf32, #tpu.memory_space<vmem>>, %arg6: memref<1x4xf32, #tpu.memory_space<vmem>>, %arg7: memref<4x128xbf16, #tpu.memory_space<vmem>>, %arg8: memref<1x128xf32, #tpu.memory_space<vmem>>, %arg9: memref<1x128xf32, #tpu.memory_space<vmem>>, %arg10: memref<128x1152xbf16, #tpu.memory_space<vmem>>, %arg11: memref<1x256x12xf32, #tpu.memory_space<vmem>>, %arg12: memref<288x128xf32, #tpu.memory_space<vmem>>) attributes {dimension_semantics = [#tpu.dimension_semantics<parallel>, #tpu.dimension_semantics<parallel>], iteration_bounds = array<i64: 2, 1>, scalar_prefetch = 0 : i64, scratch_operands = 1 : i64, tpu.core_type = #tpu.core_type<tc>, window_params = [{transform_indices = @transform_0, window_bounds = array<i64: 1, 16, 4>}, {transform_indices = @transform_1, window_bounds = array<i64: 1, 256, 4>}, {transform_indices = @transform_2, window_bounds = array<i64: 1, 16, 4>}, {pipeline_mode = #tpu.pipeline_mode<synchronous>, transform_indices = @transform_3, window_bounds = array<i64: 1, 4>}, {pipeline_mode = #tpu.pipeline_mode<synchronous>, transform_indices = @transform_4, window_bounds = array<i64: 1, 4>}, {pipeline_mode = #tpu.pipeline_mode<synchronous>, transform_indices = @transform_5, window_bounds = array<i64: 4, 128>}, {pipeline_mode = #tpu.pipeline_mode<synchronous>, transform_indices = @transform_6, window_bounds = array<i64: 1, 128>}, {pipeline_mode = #tpu.pipeline_mode<synchronous>, transform_indices = @transform_7, window_bounds = array<i64: 1, 128>}, {pipeline_mode = #tpu.pipeline_mode<synchronous>, transform_indices = @transform_8, window_bounds = array<i64: 128, 1152>}, {transform_indices = @transform_9, window_bounds = array<i64: 1, 256, 12>}]} {
    %c0_i32 = arith.constant 0 : i32
    %0 = arith.cmpi eq, %arg1, %c0_i32 : i32
    %c0_i32_0 = arith.constant 0 : i32
    %1 = arith.cmpi eq, %arg1, %c0_i32_0 : i32
    %c0 = arith.constant 0 : index
    %c0_1 = arith.constant 0 : index
    %2 = vector.load %arg5[%c0, %c0_1] : memref<1x4xf32, #tpu.memory_space<vmem>>, vector<1x4xf32>
    %c0_2 = arith.constant 0 : index
    %c0_3 = arith.constant 0 : index
    %3 = vector.load %arg6[%c0_2, %c0_3] : memref<1x4xf32, #tpu.memory_space<vmem>>, vector<1x4xf32>
    %c0_4 = arith.constant 0 : index
    %c0_5 = arith.constant 0 : index
    %4 = vector.load %arg8[%c0_4, %c0_5] : memref<1x128xf32, #tpu.memory_space<vmem>>, vector<1x128xf32>
    %c0_6 = arith.constant 0 : index
    %c0_7 = arith.constant 0 : index
    %5 = vector.load %arg9[%c0_6, %c0_7] : memref<1x128xf32, #tpu.memory_space<vmem>>, vector<1x128xf32>
    %c0_8 = arith.constant 0 : index
    %c0_9 = arith.constant 0 : index
    %6 = vector.load %arg7[%c0_8, %c0_9] : memref<4x128xbf16, #tpu.memory_space<vmem>>, vector<4x128xbf16>
    %c0_10 = arith.constant 0 : index
    %c0_11 = arith.constant 0 : index
    %c0_12 = arith.constant 0 : index
    %7 = vector.load %arg3[%c0_10, %c0_11, %c0_12] : memref<1x256x4xf32, #tpu.memory_space<vmem>>, vector<1x256x4xf32>
    %8 = vector.shape_cast %7 : vector<1x256x4xf32> to vector<256x4xf32>
    %9 = vector.broadcast %2 : vector<1x4xf32> to vector<256x4xf32>
    %10 = arith.mulf %8, %9 : vector<256x4xf32>
    %11 = vector.broadcast %3 : vector<1x4xf32> to vector<256x4xf32>
    %12 = arith.addf %10, %11 : vector<256x4xf32>
    %cst = arith.constant 0.000000e+00 : f32
    %13 = vector.broadcast %cst : f32 to vector<256x4xf32>
    %14 = arith.maximumf %12, %13 : vector<256x4xf32>
    %15 = arith.truncf %14 : vector<256x4xf32> to vector<256x4xbf16>
    %cst_13 = arith.constant dense<0.000000e+00> : vector<256x128xf32>
    %16 = tpu.matmul %15, %6, %cst_13 {dimension_numbers = #tpu.dot_dimension_numbers<[1], [0], [0], [1], [0, 0, 1, 1], [], []>} : vector<256x4xbf16>, vector<4x128xbf16>, vector<256x128xf32> -> vector<256x128xf32>
    %17 = vector.broadcast %4 : vector<1x128xf32> to vector<256x128xf32>
    %18 = arith.mulf %16, %17 : vector<256x128xf32>
    %19 = vector.broadcast %5 : vector<1x128xf32> to vector<256x128xf32>
    %20 = arith.addf %18, %19 : vector<256x128xf32>
    %cst_14 = arith.constant 0.000000e+00 : f32
    %21 = vector.broadcast %cst_14 : f32 to vector<256x128xf32>
    %22 = arith.maximumf %20, %21 : vector<256x128xf32>
    %c16 = arith.constant 16 : index
    %c0_15 = arith.constant 0 : index
    %23 = vector.load %arg12[%c16, %c0_15] : memref<288x128xf32, #tpu.memory_space<vmem>>, vector<256x128xf32>
    tpu.vector_store %arg12[%c16, %c0_15], %22 {strides = array<i32>} : memref<288x128xf32, #tpu.memory_space<vmem>>, vector<256x128xf32>,
    %cst_16 = arith.constant 0.000000e+00 : f32
    %24 = vector.broadcast %cst_16 : f32 to vector<16x128xf32>
    %25 = arith.extui %0 : i1 to i32
    %c0_i32_17 = arith.constant 0 : i32
    %26 = arith.cmpi ne, %25, %c0_i32_17 : i32
    scf.if %26 {
      %c0_46 = arith.constant 0 : index
      %c0_47 = arith.constant 0 : index
      %105 = vector.load %arg12[%c0_46, %c0_47] : memref<288x128xf32, #tpu.memory_space<vmem>>, vector<16x128xf32>
      tpu.vector_store %arg12[%c0_46, %c0_47], %24 {strides = array<i32>} : memref<288x128xf32, #tpu.memory_space<vmem>>, vector<16x128xf32>,
    } else {
    }
    %true = arith.constant true
    %27 = arith.xori %0, %true : i1
    %28 = arith.extui %27 : i1 to i32
    %c0_i32_18 = arith.constant 0 : i32
    %29 = arith.cmpi ne, %28, %c0_i32_18 : i32
    scf.if %29 {
      %c0_46 = arith.constant 0 : index
      %c0_47 = arith.constant 0 : index
      %c0_48 = arith.constant 0 : index
      %105 = vector.load %arg2[%c0_46, %c0_47, %c0_48] : memref<1x16x4xf32, #tpu.memory_space<vmem>>, vector<1x16x4xf32>
      %106 = vector.shape_cast %105 : vector<1x16x4xf32> to vector<16x4xf32>
      %107 = vector.broadcast %2 : vector<1x4xf32> to vector<16x4xf32>
      %108 = arith.mulf %106, %107 : vector<16x4xf32>
      %109 = vector.broadcast %3 : vector<1x4xf32> to vector<16x4xf32>
      %110 = arith.addf %108, %109 : vector<16x4xf32>
      %cst_49 = arith.constant 0.000000e+00 : f32
      %111 = vector.broadcast %cst_49 : f32 to vector<16x4xf32>
      %112 = arith.maximumf %110, %111 : vector<16x4xf32>
      %113 = arith.truncf %112 : vector<16x4xf32> to vector<16x4xbf16>
      %cst_50 = arith.constant dense<0.000000e+00> : vector<16x128xf32>
      %114 = tpu.matmul %113, %6, %cst_50 {dimension_numbers = #tpu.dot_dimension_numbers<[1], [0], [0], [1], [0, 0, 1, 1], [], []>} : vector<16x4xbf16>, vector<4x128xbf16>, vector<16x128xf32> -> vector<16x128xf32>
      %115 = vector.broadcast %4 : vector<1x128xf32> to vector<16x128xf32>
      %116 = arith.mulf %114, %115 : vector<16x128xf32>
      %117 = vector.broadcast %5 : vector<1x128xf32> to vector<16x128xf32>
      %118 = arith.addf %116, %117 : vector<16x128xf32>
      %cst_51 = arith.constant 0.000000e+00 : f32
      %119 = vector.broadcast %cst_51 : f32 to vector<16x128xf32>
      %120 = arith.maximumf %118, %119 : vector<16x128xf32>
      %c0_52 = arith.constant 0 : index
      %c0_53 = arith.constant 0 : index
      %121 = vector.load %arg12[%c0_52, %c0_53] : memref<288x128xf32, #tpu.memory_space<vmem>>, vector<16x128xf32>
      tpu.vector_store %arg12[%c0_52, %c0_53], %120 {strides = array<i32>} : memref<288x128xf32, #tpu.memory_space<vmem>>, vector<16x128xf32>,
    } else {
    }
    %30 = arith.extui %1 : i1 to i32
    %c0_i32_19 = arith.constant 0 : i32
    %31 = arith.cmpi ne, %30, %c0_i32_19 : i32
    scf.if %31 {
      %c272 = arith.constant 272 : index
      %c0_46 = arith.constant 0 : index
      %105 = vector.load %arg12[%c272, %c0_46] : memref<288x128xf32, #tpu.memory_space<vmem>>, vector<16x128xf32>
      tpu.vector_store %arg12[%c272, %c0_46], %24 {strides = array<i32>} : memref<288x128xf32, #tpu.memory_space<vmem>>, vector<16x128xf32>,
    } else {
    }
    %true_20 = arith.constant true
    %32 = arith.xori %1, %true_20 : i1
    %33 = arith.extui %32 : i1 to i32
    %c0_i32_21 = arith.constant 0 : i32
    %34 = arith.cmpi ne, %33, %c0_i32_21 : i32
    scf.if %34 {
      %c0_46 = arith.constant 0 : index
      %c0_47 = arith.constant 0 : index
      %c0_48 = arith.constant 0 : index
      %105 = vector.load %arg4[%c0_46, %c0_47, %c0_48] : memref<1x16x4xf32, #tpu.memory_space<vmem>>, vector<1x16x4xf32>
      %106 = vector.shape_cast %105 : vector<1x16x4xf32> to vector<16x4xf32>
      %107 = vector.broadcast %2 : vector<1x4xf32> to vector<16x4xf32>
      %108 = arith.mulf %106, %107 : vector<16x4xf32>
      %109 = vector.broadcast %3 : vector<1x4xf32> to vector<16x4xf32>
      %110 = arith.addf %108, %109 : vector<16x4xf32>
      %cst_49 = arith.constant 0.000000e+00 : f32
      %111 = vector.broadcast %cst_49 : f32 to vector<16x4xf32>
      %112 = arith.maximumf %110, %111 : vector<16x4xf32>
      %113 = arith.truncf %112 : vector<16x4xf32> to vector<16x4xbf16>
      %cst_50 = arith.constant dense<0.000000e+00> : vector<16x128xf32>
      %114 = tpu.matmul %113, %6, %cst_50 {dimension_numbers = #tpu.dot_dimension_numbers<[1], [0], [0], [1], [0, 0, 1, 1], [], []>} : vector<16x4xbf16>, vector<4x128xbf16>, vector<16x128xf32> -> vector<16x128xf32>
      %115 = vector.broadcast %4 : vector<1x128xf32> to vector<16x128xf32>
      %116 = arith.mulf %114, %115 : vector<16x128xf32>
      %117 = vector.broadcast %5 : vector<1x128xf32> to vector<16x128xf32>
      %118 = arith.addf %116, %117 : vector<16x128xf32>
      %cst_51 = arith.constant 0.000000e+00 : f32
      %119 = vector.broadcast %cst_51 : f32 to vector<16x128xf32>
      %120 = arith.maximumf %118, %119 : vector<16x128xf32>
      %c272 = arith.constant 272 : index
      %c0_52 = arith.constant 0 : index
      %121 = vector.load %arg12[%c272, %c0_52] : memref<288x128xf32, #tpu.memory_space<vmem>>, vector<16x128xf32>
      tpu.vector_store %arg12[%c272, %c0_52], %120 {strides = array<i32>} : memref<288x128xf32, #tpu.memory_space<vmem>>, vector<16x128xf32>,
    } else {
    }
    %c0_22 = arith.constant 0 : index
    %c0_23 = arith.constant 0 : index
    %35 = vector.load %arg12[%c0_22, %c0_23] : memref<288x128xf32, #tpu.memory_space<vmem>>, vector<288x128xf32>
    %36 = arith.truncf %35 : vector<288x128xf32> to vector<288x128xbf16>
    %c0_24 = arith.constant 0 : index
    %c0_25 = arith.constant 0 : index
    %37 = vector.load %arg10[%c0_24, %c0_25] : memref<128x1152xbf16, #tpu.memory_space<vmem>>, vector<128x1152xbf16>
    %cst_26 = arith.constant dense<0.000000e+00> : vector<288x1152xf32>
    %38 = tpu.matmul %36, %37, %cst_26 {dimension_numbers = #tpu.dot_dimension_numbers<[1], [0], [0], [1], [0, 0, 1, 1], [], []>} : vector<288x128xbf16>, vector<128x1152xbf16>, vector<288x1152xf32> -> vector<288x1152xf32>
    %cst_27 = arith.constant 0.000000e+00 : f32
    %39 = vector.broadcast %cst_27 : f32 to vector<256x128xf32>
    %cst_28 = arith.constant 0.000000e+00 : f32
    %40 = vector.broadcast %cst_28 : f32 to vector<256x128xf32>
    %cst_29 = arith.constant 0.000000e+00 : f32
    %41 = vector.broadcast %cst_29 : f32 to vector<256x128xf32>
    %42 = vector.extract_strided_slice %38 {offsets = [0, 0], sizes = [256, 1152], strides = [1, 1]} : vector<288x1152xf32> to vector<256x1152xf32>
    %43 = vector.extract_strided_slice %42 {offsets = [0, 0], sizes = [256, 128], strides = [1, 1]} : vector<256x1152xf32> to vector<256x128xf32>
    %44 = arith.addf %39, %43 : vector<256x128xf32>
    %45 = vector.extract_strided_slice %42 {offsets = [0, 128], sizes = [256, 128], strides = [1, 1]} : vector<256x1152xf32> to vector<256x128xf32>
    %46 = arith.addf %40, %45 : vector<256x128xf32>
    %47 = vector.extract_strided_slice %42 {offsets = [0, 256], sizes = [256, 128], strides = [1, 1]} : vector<256x1152xf32> to vector<256x128xf32>
    %48 = arith.addf %41, %47 : vector<256x128xf32>
    %49 = vector.extract_strided_slice %38 {offsets = [16, 0], sizes = [256, 1152], strides = [1, 1]} : vector<288x1152xf32> to vector<256x1152xf32>
    %50 = vector.extract_strided_slice %49 {offsets = [0, 384], sizes = [256, 128], strides = [1, 1]} : vector<256x1152xf32> to vector<256x128xf32>
    %51 = arith.addf %44, %50 : vector<256x128xf32>
    %52 = vector.extract_strided_slice %49 {offsets = [0, 512], sizes = [256, 128], strides = [1, 1]} : vector<256x1152xf32> to vector<256x128xf32>
    %53 = arith.addf %46, %52 : vector<256x128xf32>
    %54 = vector.extract_strided_slice %49 {offsets = [0, 640], sizes = [256, 128], strides = [1, 1]} : vector<256x1152xf32> to vector<256x128xf32>
    %55 = arith.addf %48, %54 : vector<256x128xf32>
    %56 = vector.extract_strided_slice %38 {offsets = [32, 0], sizes = [256, 1152], strides = [1, 1]} : vector<288x1152xf32> to vector<256x1152xf32>
    %57 = vector.extract_strided_slice %56 {offsets = [0, 768], sizes = [256, 128], strides = [1, 1]} : vector<256x1152xf32> to vector<256x128xf32>
    %58 = arith.addf %51, %57 : vector<256x128xf32>
    %59 = vector.extract_strided_slice %56 {offsets = [0, 896], sizes = [256, 128], strides = [1, 1]} : vector<256x1152xf32> to vector<256x128xf32>
    %60 = arith.addf %53, %59 : vector<256x128xf32>
    %61 = vector.extract_strided_slice %56 {offsets = [0, 1024], sizes = [256, 128], strides = [1, 1]} : vector<256x1152xf32> to vector<256x128xf32>
    %62 = arith.addf %55, %61 : vector<256x128xf32>
    %63 = tpu.iota {dimensions = array<i32: 0>} : vector<256x1xi32>
    %c16_i32 = arith.constant 16 : i32
    %c0_i32_30 = arith.constant 0 : i32
    %64 = arith.cmpi eq, %c16_i32, %c0_i32_30 : i32
    %c1_i32 = arith.constant 1 : i32
    %65 = arith.select %64, %c1_i32, %c16_i32 : i32
    %66 = vector.broadcast %65 : i32 to vector<256x1xi32>
    %67 = arith.remsi %63, %66 : vector<256x1xi32>
    %c0_i32_31 = arith.constant 0 : i32
    %68 = vector.broadcast %c0_i32_31 : i32 to vector<256x1xi32>
    %69 = arith.cmpi ne, %67, %68 : vector<256x1xi32>
    %c0_i32_32 = arith.constant 0 : i32
    %70 = vector.broadcast %c0_i32_32 : i32 to vector<256x1xi32>
    %71 = arith.cmpi slt, %67, %70 : vector<256x1xi32>
    %c0_i32_33 = arith.constant 0 : i32
    %72 = arith.cmpi slt, %65, %c0_i32_33 : i32
    %73 = vector.broadcast %72 : i1 to vector<256x1xi1>
    %74 = vector.broadcast %73 : vector<256x1xi1> to vector<256x1xi1>
    %75 = arith.xori %71, %74 : vector<256x1xi1>
    %76 = arith.andi %75, %69 : vector<256x1xi1>
    %77 = vector.broadcast %65 : i32 to vector<256x1xi32>
    %78 = arith.addi %67, %77 : vector<256x1xi32>
    %79 = arith.select %76, %78, %67 : vector<256x1xi1>, vector<256x1xi32>
    %c0_i32_34 = arith.constant 0 : i32
    %80 = vector.broadcast %c0_i32_34 : i32 to vector<256x1xi32>
    %81 = arith.cmpi sgt, %79, %80 : vector<256x1xi32>
    %c15_i32 = arith.constant 15 : i32
    %82 = vector.broadcast %c15_i32 : i32 to vector<256x1xi32>
    %83 = arith.cmpi slt, %79, %82 : vector<256x1xi32>
    %c1_i32_35 = arith.constant 1 : i32
    %84 = tpu.dynamic_rotate %58 by %c1_i32_35 dim 0 : vector<256x128xf32>, i32 -> vector<256x128xf32>
    %cst_36 = arith.constant 0.000000e+00 : f32
    %85 = vector.shape_cast %81 : vector<256x1xi1> to vector<256x1xi1>
    %86 = vector.broadcast %85 : vector<256x1xi1> to vector<256x128xi1>
    %87 = vector.broadcast %cst_36 : f32 to vector<256x128xf32>
    %88 = arith.select %86, %84, %87 : vector<256x128xi1>, vector<256x128xf32>
    %89 = arith.addf %60, %88 : vector<256x128xf32>
    %c255_i32 = arith.constant 255 : i32
    %90 = tpu.dynamic_rotate %62 by %c255_i32 dim 0 : vector<256x128xf32>, i32 -> vector<256x128xf32>
    %cst_37 = arith.constant 0.000000e+00 : f32
    %91 = vector.shape_cast %83 : vector<256x1xi1> to vector<256x1xi1>
    %92 = vector.broadcast %91 : vector<256x1xi1> to vector<256x128xi1>
    %93 = vector.broadcast %cst_37 : f32 to vector<256x128xf32>
    %94 = arith.select %92, %90, %93 : vector<256x128xi1>, vector<256x128xf32>
    %95 = arith.addf %89, %94 : vector<256x128xf32>
    %c0_38 = arith.constant 0 : index
    %c0_39 = arith.constant 0 : index
    %c0_40 = arith.constant 0 : index
    %96 = vector.load %arg3[%c0_38, %c0_39, %c0_40] : memref<1x256x4xf32, #tpu.memory_space<vmem>>, vector<1x256x4xf32>
    %97 = vector.shape_cast %96 : vector<1x256x4xf32> to vector<256x4xf32>
    %c0_41 = arith.constant 0 : index
    %c0_42 = arith.constant 0 : index
    %c0_43 = arith.constant 0 : index
    %98 = vector.load %arg11[%c0_41, %c0_42, %c0_43] : memref<1x256x12xf32, #tpu.memory_space<vmem>>, vector<1x256x4xf32>
    %99 = vector.shape_cast %98 : vector<1x256x4xf32> to vector<256x4xf32>
    %100 = vector.shape_cast %97 : vector<256x4xf32> to vector<1x256x4xf32>
    tpu.vector_store %arg11[%c0_41, %c0_42, %c0_43], %100 {strides = array<i32>} : memref<1x256x12xf32, #tpu.memory_space<vmem>>, vector<1x256x4xf32>,
    %101 = vector.extract_strided_slice %95 {offsets = [0, 0], sizes = [256, 8], strides = [1, 1]} : vector<256x128xf32> to vector<256x8xf32>
    %c0_44 = arith.constant 0 : index
    %c0_45 = arith.constant 0 : index
    %c4 = arith.constant 4 : index
    %102 = vector.load %arg11[%c0_44, %c0_45, %c4] : memref<1x256x12xf32, #tpu.memory_space<vmem>>, vector<1x256x8xf32>
    %103 = vector.shape_cast %102 : vector<1x256x8xf32> to vector<256x8xf32>
    %104 = vector.shape_cast %101 : vector<256x8xf32> to vector<1x256x8xf32>
    tpu.vector_store %arg11[%c0_44, %c0_45, %c4], %104 {strides = array<i32>} : memref<1x256x12xf32, #tpu.memory_space<vmem>>, vector<1x256x8xf32>,
    return
  }
  func.func @transform_0(%arg0: i32, %arg1: i32) -> (i32, i32, i32) {
    %c16_i32 = arith.constant 16 : i32
    %0 = arith.muli %arg1, %c16_i32 : i32
    %c1_i32 = arith.constant 1 : i32
    %1 = arith.subi %0, %c1_i32 : i32
    %c0_i32 = arith.constant 0 : i32
    %2 = arith.maxsi %1, %c0_i32 : i32
    %c0_i32_0 = arith.constant 0 : i32
    %c0_i32_1 = arith.constant 0 : i32
    return %arg0, %2, %c0_i32_0 : i32, i32, i32
  }
  func.func @transform_1(%arg0: i32, %arg1: i32) -> (i32, i32, i32) {
    %c0_i32 = arith.constant 0 : i32
    %c0_i32_0 = arith.constant 0 : i32
    return %arg0, %arg1, %c0_i32 : i32, i32, i32
  }
  func.func @transform_2(%arg0: i32, %arg1: i32) -> (i32, i32, i32) {
    %c1_i32 = arith.constant 1 : i32
    %0 = arith.addi %arg1, %c1_i32 : i32
    %c16_i32 = arith.constant 16 : i32
    %1 = arith.muli %0, %c16_i32 : i32
    %c15_i32 = arith.constant 15 : i32
    %2 = arith.minsi %1, %c15_i32 : i32
    %c0_i32 = arith.constant 0 : i32
    %c0_i32_0 = arith.constant 0 : i32
    return %arg0, %2, %c0_i32 : i32, i32, i32
  }
  func.func @transform_3(%arg0: i32, %arg1: i32) -> (i32, i32) {
    %c0_i32 = arith.constant 0 : i32
    %c0_i32_0 = arith.constant 0 : i32
    %c0_i32_1 = arith.constant 0 : i32
    return %c0_i32, %c0_i32_0 : i32, i32
  }
  func.func @transform_4(%arg0: i32, %arg1: i32) -> (i32, i32) {
    %c0_i32 = arith.constant 0 : i32
    %c0_i32_0 = arith.constant 0 : i32
    %c0_i32_1 = arith.constant 0 : i32
    return %c0_i32, %c0_i32_0 : i32, i32
  }
  func.func @transform_5(%arg0: i32, %arg1: i32) -> (i32, i32) {
    %c0_i32 = arith.constant 0 : i32
    %c0_i32_0 = arith.constant 0 : i32
    %c0_i32_1 = arith.constant 0 : i32
    return %c0_i32, %c0_i32_0 : i32, i32
  }
  func.func @transform_6(%arg0: i32, %arg1: i32) -> (i32, i32) {
    %c0_i32 = arith.constant 0 : i32
    %c0_i32_0 = arith.constant 0 : i32
    %c0_i32_1 = arith.constant 0 : i32
    return %c0_i32, %c0_i32_0 : i32, i32
  }
  func.func @transform_7(%arg0: i32, %arg1: i32) -> (i32, i32) {
    %c0_i32 = arith.constant 0 : i32
    %c0_i32_0 = arith.constant 0 : i32
    %c0_i32_1 = arith.constant 0 : i32
    return %c0_i32, %c0_i32_0 : i32, i32
  }
  func.func @transform_8(%arg0: i32, %arg1: i32) -> (i32, i32) {
    %c0_i32 = arith.constant 0 : i32
    %c0_i32_0 = arith.constant 0 : i32
    %c0_i32_1 = arith.constant 0 : i32
    return %c0_i32, %c0_i32_0 : i32, i32
  }
  func.func @transform_9(%arg0: i32, %arg1: i32) -> (i32, i32, i32) {
    %c0_i32 = arith.constant 0 : i32
    %c0_i32_0 = arith.constant 0 : i32
    return %arg0, %arg1, %c0_i32 : i32, i32, i32
  }
}

</mosaic_0001>

<llo_original>
// kernel: bottleneck_block_forward.1
$region0: #{bottleneck_block_forward.1}
  #allocation0 [shape = 'u32[]', space=smem, size = 0x4, offset = 0x4, fixed_abs, tag = 'smem constant byte address 0x4 - core index']
  #allocation1 [shape = 'u32[144,128]{1,0:T(1,128)}', space=vmem, size = 0x12000, scoped, tag = 'internal scratch']
  #allocation2 [shape = 'f32[288,128]{1,0:T(8,128)}', space=vmem, size = 0x24000, scoped, tag = 'scratch operand']
  %s0 = inlined_call_operand.vmem [shape: f32[2,256,4], index: 0, kind: input, shape index: {}, may-alias: {0,1,2}]
  %s1 = inlined_call_operand.vmem [shape: f32[2,256,4], index: 1, kind: input, shape index: {}, may-alias: {0,1,2}]
  %s2 = inlined_call_operand.vmem [shape: f32[2,256,4], index: 2, kind: input, shape index: {}, may-alias: {0,1,2}]
  %s3 = inlined_call_operand.vmem [shape: f32[1,4], index: 3, kind: input, shape index: {}]
  %s4 = inlined_call_operand.vmem [shape: f32[1,4], index: 4, kind: input, shape index: {}]
  %s5 = inlined_call_operand.vmem [shape: bf16[4,128], index: 5, kind: input, shape index: {}]
  %s6 = inlined_call_operand.vmem [shape: f32[1,128], index: 6, kind: input, shape index: {}]
  %s7 = inlined_call_operand.vmem [shape: f32[1,128], index: 7, kind: input, shape index: {}]
  %s8 = inlined_call_operand.vmem [shape: bf16[128,1152], index: 8, kind: input, shape index: {}]
  %s9 = inlined_call_operand.vmem [shape: f32[2,256,12], index: 9, kind: output, shape index: {}]
  %s10 = sld [smem:[#allocation0]]
  $region85: #{bottleneck_block_forward.1} parent=0
    _
  %s12 = ssub.s32 1, %s10
  %s13 = scalar_select 0, %s12, %s10
  loop: start=0, step=1, limit=4
  $region2: #{bottleneck_block_forward.1} parent=0 // loop_pre_header
    _
  $region3: #{bottleneck_block_forward.1} parent=0 // loop_header
    %s15 = sphi 0, %s19
    %p16 = scmp.ge.s32.totalorder %s15, 4
    %s22 = sphi 0, %s34
    %s23 = sphi 0, %s30
    %s24 = sphi 0, %s22
    %s25 = sphi 0, %s23
    %s26 = sphi 0, %s24
    %s27 = sphi 0, %s25
    %s47 = sphi 0, %s49
    %s50 = sphi 0, %s47
    %s51 = sphi 0, %s50
    %s67 = sphi 0, %s51
    %s75 = sphi 0, %s77
    %s78 = sphi 0, %s75
    %s79 = sphi 0, %s78
    %s95 = sphi 0, %s79
    %s111 = sphi 0, %s113
    %s114 = sphi 0, %s111
    %s115 = sphi 0, %s114
    %s131 = sphi 0, %s115
    %s135 = sphi 0, %s135
    %s137 = sphi 0, %s135
    %s138 = sphi 0, %s137
    %s152 = sphi 0, %s138
    %s156 = sphi 0, %s156
    %s158 = sphi 0, %s156
    %s159 = sphi 0, %s158
    %s173 = sphi 0, %s159
    %s177 = sphi 0, %s177
    %s179 = sphi 0, %s177
    %s180 = sphi 0, %s179
    %s194 = sphi 0, %s180
    %s198 = sphi 0, %s198
    %s200 = sphi 0, %s198
    %s201 = sphi 0, %s200
    %s215 = sphi 0, %s201
    %s219 = sphi 0, %s219
    %s221 = sphi 0, %s219
    %s222 = sphi 0, %s221
    %s236 = sphi 0, %s222
    %s240 = sphi 0, %s240
    %s242 = sphi 0, %s240
    %s243 = sphi 0, %s242
    %s257 = sphi 0, %s243
    %s265 = sphi 0, %s267
    %s268 = sphi 0, %s265
    %s269 = sphi 0, %s268
    %s285 = sphi 0, %s269
  $region4: #{bottleneck_block_forward.1} parent=0 // loop_header_branch
    %18 = sbr.rel (%p16) target = $region8
  $region5: #{bottleneck_block_forward.1} parent=0 // loop_body
    %s20 = ssub.s32 %s15, 1
    %s21 = ssub.s32 %s15, 2
    %s28 = sadd.s32 1, %s23
    %p29 = scmp.ge.s32.totalorder %s28, 1
    %s30 = scalar_select %p29, 0, %s28
    %s31 = sadd.s32 1, %s22
    %s32 = scalar_select %p29, %s31, %s22
    %p33 = scmp.ge.s32.totalorder %s32, 2
    %s34 = scalar_select %p33, 0, %s32
    %s35 = smul.u32 %s23, 16
    %s36 = ssub.s32 %s35, 1
    %p37 = scmp.gt.s32.totalorder %s36, 0
    %s38 = scalar_select %p37, %s36, 0
    %s39 = smul.u32 %s30, 16
    %s40 = ssub.s32 %s39, 1
    %p41 = scmp.gt.s32.totalorder %s40, 0
    %s42 = scalar_select %p41, %s40, 0
    %s43 = ssub.s32 %s22, %s34
    %s44 = ssub.s32 %s38, %s42
    %s45 = sor.u32 %s43, %s44
    %p46 = scmp.eq.s32.totalorder %s45, 0
    %s48 = sadd.s32 %s47, 1
    %s49 = scalar_select %p46, %s47, %s48
    %p52 = pneg %p46
    %p53 = scmp.eq.s32.totalorder %s15, 1
    %p54 = por %p52, %p53
    %p55 = scmp.ne.s32.totalorder %s47, %s50
    %p56 = scmp.eq.s32.totalorder %s15, 0
    %p57 = por %p55, %p56
    %p58 = scmp.ne.s32.totalorder %s47, %s50
    %p59 = scmp.eq.s32.totalorder %s20, 1
    %p60 = por %p58, %p59
    %p61 = scmp.ne.s32.totalorder %s50, %s51
    %p62 = scmp.eq.s32.totalorder %s20, 0
    %p63 = por %p61, %p62
    %p64 = scmp.ne.s32.totalorder %s50, %s51
    %p65 = scmp.eq.s32.totalorder %s21, 1
    %p66 = por %p64, %p65
    %p68 = scmp.ne.s32.totalorder %s51, %s67
    %p69 = scmp.eq.s32.totalorder %s21, 0
    %p70 = por %p68, %p69
    %s71 = ssub.s32 %s22, %s34
    %s72 = ssub.s32 %s23, %s30
    %s73 = sor.u32 %s71, %s72
    %p74 = scmp.eq.s32.totalorder %s73, 0
    %s76 = sadd.s32 %s75, 1
    %s77 = scalar_select %p74, %s75, %s76
    %p80 = pneg %p74
    %p81 = scmp.eq.s32.totalorder %s15, 1
    %p82 = por %p80, %p81
    %p83 = scmp.ne.s32.totalorder %s75, %s78
    %p84 = scmp.eq.s32.totalorder %s15, 0
    %p85 = por %p83, %p84
    %p86 = scmp.ne.s32.totalorder %s75, %s78
    %p87 = scmp.eq.s32.totalorder %s20, 1
    %p88 = por %p86, %p87
    %p89 = scmp.ne.s32.totalorder %s78, %s79
    %p90 = scmp.eq.s32.totalorder %s20, 0
    %p91 = por %p89, %p90
    %p92 = scmp.ne.s32.totalorder %s78, %s79
    %p93 = scmp.eq.s32.totalorder %s21, 1
    %p94 = por %p92, %p93
    %p96 = scmp.ne.s32.totalorder %s79, %s95
    %p97 = scmp.eq.s32.totalorder %s21, 0
    %p98 = por %p96, %p97
    %s99 = sadd.s32 %s23, 1
    %s100 = smul.u32 %s99, 16
    %p101 = scmp.lt.s32.totalorder %s100, 15
    %s102 = scalar_select %p101, %s100, 15
    %s103 = sadd.s32 %s30, 1
    %s104 = smul.u32 %s103, 16
    %p105 = scmp.lt.s32.totalorder %s104, 15
    %s106 = scalar_select %p105, %s104, 15
    %s107 = ssub.s32 %s22, %s34
    %s108 = ssub.s32 %s102, %s106
    %s109 = sor.u32 %s107, %s108
    %p110 = scmp.eq.s32.totalorder %s109, 0
    %s112 = sadd.s32 %s111, 1
    %s113 = scalar_select %p110, %s111, %s112
    %p116 = pneg %p110
    %p117 = scmp.eq.s32.totalorder %s15, 1
    %p118 = por %p116, %p117
    %p119 = scmp.ne.s32.totalorder %s111, %s114
    %p120 = scmp.eq.s32.totalorder %s15, 0
    %p121 = por %p119, %p120
    %p122 = scmp.ne.s32.totalorder %s111, %s114
    %p123 = scmp.eq.s32.totalorder %s20, 1
    %p124 = por %p122, %p123
    %p125 = scmp.ne.s32.totalorder %s114, %s115
    %p126 = scmp.eq.s32.totalorder %s20, 0
    %p127 = por %p125, %p126
    %p128 = scmp.ne.s32.totalorder %s114, %s115
    %p129 = scmp.eq.s32.totalorder %s21, 1
    %p130 = por %p128, %p129
    %p132 = scmp.ne.s32.totalorder %s115, %s131
    %p133 = scmp.eq.s32.totalorder %s21, 0
    %p134 = por %p132, %p133
    %s136 = sadd.s32 %s135, 1
    %p139 = scmp.eq.s32.totalorder %s15, 1
    %p140 = scmp.ne.s32.totalorder %s135, %s137
    %p141 = scmp.eq.s32.totalorder %s15, 0
    %p142 = por %p140, %p141
    %p143 = scmp.ne.s32.totalorder %s135, %s137
    %p144 = scmp.eq.s32.totalorder %s20, 1
    %p145 = por %p143, %p144
    %p146 = scmp.ne.s32.totalorder %s137, %s138
    %p147 = scmp.eq.s32.totalorder %s20, 0
    %p148 = por %p146, %p147
    %p149 = scmp.ne.s32.totalorder %s137, %s138
    %p150 = scmp.eq.s32.totalorder %s21, 1
    %p151 = por %p149, %p150
    %p153 = scmp.ne.s32.totalorder %s138, %s152
    %p154 = scmp.eq.s32.totalorder %s21, 0
    %p155 = por %p153, %p154
    %s157 = sadd.s32 %s156, 1
    %p160 = scmp.eq.s32.totalorder %s15, 1
    %p161 = scmp.ne.s32.totalorder %s156, %s158
    %p162 = scmp.eq.s32.totalorder %s15, 0
    %p163 = por %p161, %p162
    %p164 = scmp.ne.s32.totalorder %s156, %s158
    %p165 = scmp.eq.s32.totalorder %s20, 1
    %p166 = por %p164, %p165
    %p167 = scmp.ne.s32.totalorder %s158, %s159
    %p168 = scmp.eq.s32.totalorder %s20, 0
    %p169 = por %p167, %p168
    %p170 = scmp.ne.s32.totalorder %s158, %s159
    %p171 = scmp.eq.s32.totalorder %s21, 1
    %p172 = por %p170, %p171
    %p174 = scmp.ne.s32.totalorder %s159, %s173
    %p175 = scmp.eq.s32.totalorder %s21, 0
    %p176 = por %p174, %p175
    %s178 = sadd.s32 %s177, 1
    %p181 = scmp.eq.s32.totalorder %s15, 1
    %p182 = scmp.ne.s32.totalorder %s177, %s179
    %p183 = scmp.eq.s32.totalorder %s15, 0
    %p184 = por %p182, %p183
    %p185 = scmp.ne.s32.totalorder %s177, %s179
    %p186 = scmp.eq.s32.totalorder %s20, 1
    %p187 = por %p185, %p186
    %p188 = scmp.ne.s32.totalorder %s179, %s180
    %p189 = scmp.eq.s32.totalorder %s20, 0
    %p190 = por %p188, %p189
    %p191 = scmp.ne.s32.totalorder %s179, %s180
    %p192 = scmp.eq.s32.totalorder %s21, 1
    %p193 = por %p191, %p192
    %p195 = scmp.ne.s32.totalorder %s180, %s194
    %p196 = scmp.eq.s32.totalorder %s21, 0
    %p197 = por %p195, %p196
    %s199 = sadd.s32 %s198, 1
    %p202 = scmp.eq.s32.totalorder %s15, 1
    %p203 = scmp.ne.s32.totalorder %s198, %s200
    %p204 = scmp.eq.s32.totalorder %s15, 0
    %p205 = por %p203, %p204
    %p206 = scmp.ne.s32.totalorder %s198, %s200
    %p207 = scmp.eq.s32.totalorder %s20, 1
    %p208 = por %p206, %p207
    %p209 = scmp.ne.s32.totalorder %s200, %s201
    %p210 = scmp.eq.s32.totalorder %s20, 0
    %p211 = por %p209, %p210
    %p212 = scmp.ne.s32.totalorder %s200, %s201
    %p213 = scmp.eq.s32.totalorder %s21, 1
    %p214 = por %p212, %p213
    %p216 = scmp.ne.s32.totalorder %s201, %s215
    %p217 = scmp.eq.s32.totalorder %s21, 0
    %p218 = por %p216, %p217
    %s220 = sadd.s32 %s219, 1
    %p223 = scmp.eq.s32.totalorder %s15, 1
    %p224 = scmp.ne.s32.totalorder %s219, %s221
    %p225 = scmp.eq.s32.totalorder %s15, 0
    %p226 = por %p224, %p225
    %p227 = scmp.ne.s32.totalorder %s219, %s221
    %p228 = scmp.eq.s32.totalorder %s20, 1
    %p229 = por %p227, %p228
    %p230 = scmp.ne.s32.totalorder %s221, %s222
    %p231 = scmp.eq.s32.totalorder %s20, 0
    %p232 = por %p230, %p231
    %p233 = scmp.ne.s32.totalorder %s221, %s222
    %p234 = scmp.eq.s32.totalorder %s21, 1
    %p235 = por %p233, %p234
    %p237 = scmp.ne.s32.totalorder %s222, %s236
    %p238 = scmp.eq.s32.totalorder %s21, 0
    %p239 = por %p237, %p238
    %s241 = sadd.s32 %s240, 1
    %p244 = scmp.eq.s32.totalorder %s15, 1
    %p245 = scmp.ne.s32.totalorder %s240, %s242
    %p246 = scmp.eq.s32.totalorder %s15, 0
    %p247 = por %p245, %p246
    %p248 = scmp.ne.s32.totalorder %s240, %s242
    %p249 = scmp.eq.s32.totalorder %s20, 1
    %p250 = por %p248, %p249
    %p251 = scmp.ne.s32.totalorder %s242, %s243
    %p252 = scmp.eq.s32.totalorder %s20, 0
    %p253 = por %p251, %p252
    %p254 = scmp.ne.s32.totalorder %s242, %s243
    %p255 = scmp.eq.s32.totalorder %s21, 1
    %p256 = por %p254, %p255
    %p258 = scmp.ne.s32.totalorder %s243, %s257
    %p259 = scmp.eq.s32.totalorder %s21, 0
    %p260 = por %p258, %p259
    %s261 = ssub.s32 %s22, %s34
    %s262 = ssub.s32 %s23, %s30
    %s263 = sor.u32 %s261, %s262
    %p264 = scmp.eq.s32.totalorder %s263, 0
    %s266 = sadd.s32 %s265, 1
    %s267 = scalar_select %p264, %s265, %s266
    %p270 = pneg %p264
    %p271 = scmp.eq.s32.totalorder %s15, 1
    %p272 = por %p270, %p271
    %p273 = scmp.ne.s32.totalorder %s265, %s268
    %p274 = scmp.eq.s32.totalorder %s15, 0
    %p275 = por %p273, %p274
    %p276 = scmp.ne.s32.totalorder %s265, %s268
    %p277 = scmp.eq.s32.totalorder %s20, 1
    %p278 = por %p276, %p277
    %p279 = scmp.ne.s32.totalorder %s268, %s269
    %p280 = scmp.eq.s32.totalorder %s20, 0
    %p281 = por %p279, %p280
    %p282 = scmp.ne.s32.totalorder %s268, %s269
    %p283 = scmp.eq.s32.totalorder %s21, 1
    %p284 = por %p282, %p283
    %p286 = scmp.ne.s32.totalorder %s269, %s285
    %p287 = scmp.eq.s32.totalorder %s21, 0
    %p288 = por %p286, %p287
    %p289 = scmp.le.s32.totalorder 1, %s15
    %p290 = scmp.lt.s32.totalorder %s15, 3
    %p291 = pnand %p289, %p290
    %p292 = pneg %p291
    // Predicated region
    $region9: #{bottleneck_block_forward.1} parent=5 // pred_check
      _
    $region10: #{bottleneck_block_forward.1} parent=5 // pred_check_branch
      %294 = sbr.rel (%p291) target = $region12
    $region11: #{bottleneck_block_forward.1} parent=5 // pred_region
      %s295 = ssub.s32 %s15, 1
      // Predicated region
      $region13: #{bottleneck_block_forward.1} parent=11 // pred_check
        %p296 = pneg %p148
      $region14: #{bottleneck_block_forward.1} parent=11 // pred_check_branch
        %298 = sbr.rel (%p296) target = $region16
      $region15: #{bottleneck_block_forward.1} parent=11 // pred_region
        _
      $region16: #{bottleneck_block_forward.1} parent=11 // pred_fallthru
        _
      // Predicated region
      $region17: #{bottleneck_block_forward.1} parent=11 // pred_check
        %p299 = pneg %p169
      $region18: #{bottleneck_block_forward.1} parent=11 // pred_check_branch
        %301 = sbr.rel (%p299) target = $region20
      $region19: #{bottleneck_block_forward.1} parent=11 // pred_region
        _
      $region20: #{bottleneck_block_forward.1} parent=11 // pred_fallthru
        _
      // Predicated region
      $region21: #{bottleneck_block_forward.1} parent=11 // pred_check
        %p302 = pneg %p190
      $region22: #{bottleneck_block_forward.1} parent=11 // pred_check_branch
        %304 = sbr.rel (%p302) target = $region24
      $region23: #{bottleneck_block_forward.1} parent=11 // pred_region
        _
      $region24: #{bottleneck_block_forward.1} parent=11 // pred_fallthru
        _
      // Predicated region
      $region25: #{bottleneck_block_forward.1} parent=11 // pred_check
        %p305 = pneg %p211
      $region26: #{bottleneck_block_forward.1} parent=11 // pred_check_branch
        %307 = sbr.rel (%p305) target = $region28
      $region27: #{bottleneck_block_forward.1} parent=11 // pred_region
        _
      $region28: #{bottleneck_block_forward.1} parent=11 // pred_fallthru
        _
      // Predicated region
      $region29: #{bottleneck_block_forward.1} parent=11 // pred_check
        %p308 = pneg %p232
      $region30: #{bottleneck_block_forward.1} parent=11 // pred_check_branch
        %310 = sbr.rel (%p308) target = $region32
      $region31: #{bottleneck_block_forward.1} parent=11 // pred_region
        _
      $region32: #{bottleneck_block_forward.1} parent=11 // pred_fallthru
        _
      // Predicated region
      $region33: #{bottleneck_block_forward.1} parent=11 // pred_check
        %p311 = pneg %p253
      $region34: #{bottleneck_block_forward.1} parent=11 // pred_check_branch
        %313 = sbr.rel (%p311) target = $region36
      $region35: #{bottleneck_block_forward.1} parent=11 // pred_region
        _
      $region36: #{bottleneck_block_forward.1} parent=11 // pred_fallthru
        _
    $region12: #{bottleneck_block_forward.1} parent=5 // pred_fallthru
      _
    %p314 = scmp.lt.s32.totalorder %s15, 2
    // Predicated region
    $region37: #{bottleneck_block_forward.1} parent=5 // pred_check
      %p315 = pneg %p314
    $region38: #{bottleneck_block_forward.1} parent=5 // pred_check_branch
      %317 = sbr.rel (%p315) target = $region40
    $region39: #{bottleneck_block_forward.1} parent=5 // pred_region
      // Predicated region
      $region41: #{bottleneck_block_forward.1} parent=39 // pred_check
        %p318 = pneg %p57
      $region42: #{bottleneck_block_forward.1} parent=39 // pred_check_branch
        %320 = sbr.rel (%p318) target = $region44
      $region43: #{bottleneck_block_forward.1} parent=39 // pred_region
        %s321 = smul.u32 %s23, 16
        %s322 = ssub.s32 %s321, 1
        %p323 = scmp.gt.s32.totalorder %s322, 0
        %s324 = scalar_select %p323, %s322, 0
        %s325 = smul.u32 2, %s324
        %p326 = scmp.lt.s32.totalorder %s22, 1
        %s327 = scalar_select %p326, %s22, 1
        %p328 = scmp.lt.s32.totalorder %s325, 31
        %s329 = scalar_select %p328, %s325, 31
        %s330 = smul.addr %s327, 32
        %s331 = sadd.s32 %s329, %s330
        %s332 = smul.addr %s331, 8
        %s333 = scalar_lea.vmem %s0, %s332
        %s334 = smul.u32 %s23, 16
        %s335 = ssub.s32 %s334, 1
        %p336 = scmp.gt.s32.totalorder %s335, 0
        %s337 = scalar_select %p336, %s335, 0
        %s338 = smul.u32 2, %s337
      $region44: #{bottleneck_block_forward.1} parent=39 // pred_fallthru
        _
      // Predicated region
      $region45: #{bottleneck_block_forward.1} parent=39 // pred_check
        %p339 = pneg %p85
      $region46: #{bottleneck_block_forward.1} parent=39 // pred_check_branch
        %341 = sbr.rel (%p339) target = $region48
      $region47: #{bottleneck_block_forward.1} parent=39 // pred_region
        %s342 = smul.u32 32, %s23
        %p343 = scmp.lt.s32.totalorder %s22, 1
        %s344 = scalar_select %p343, %s22, 1
        %p345 = scmp.lt.s32.totalorder %s342, 31
        %s346 = scalar_select %p345, %s342, 31
        %s347 = smul.addr %s344, 32
        %s348 = sadd.s32 %s346, %s347
        %s349 = smul.addr %s348, 8
        %s350 = scalar_lea.vmem %s1, %s349
        %s351 = smul.u32 32, %s23
      $region48: #{bottleneck_block_forward.1} parent=39 // pred_fallthru
        _
      // Predicated region
      $region49: #{bottleneck_block_forward.1} parent=39 // pred_check
        %p352 = pneg %p121
      $region50: #{bottleneck_block_forward.1} parent=39 // pred_check_branch
        %354 = sbr.rel (%p352) target = $region52
      $region51: #{bottleneck_block_forward.1} parent=39 // pred_region
        %s355 = sadd.s32 %s23, 1
        %s356 = smul.u32 %s355, 16
        %p357 = scmp.lt.s32.totalorder %s356, 15
        %s358 = scalar_select %p357, %s356, 15
        %s359 = smul.u32 2, %s358
        %p360 = scmp.lt.s32.totalorder %s22, 1
        %s361 = scalar_select %p360, %s22, 1
        %p362 = scmp.lt.s32.totalorder %s359, 31
        %s363 = scalar_select %p362, %s359, 31
        %s364 = smul.addr %s361, 32
        %s365 = sadd.s32 %s363, %s364
        %s366 = smul.addr %s365, 8
        %s367 = scalar_lea.vmem %s2, %s366
        %s368 = sadd.s32 %s23, 1
        %s369 = smul.u32 %s368, 16
        %p370 = scmp.lt.s32.totalorder %s369, 15
        %s371 = scalar_select %p370, %s369, 15
        %s372 = smul.u32 2, %s371
      $region52: #{bottleneck_block_forward.1} parent=39 // pred_fallthru
        _
    $region40: #{bottleneck_block_forward.1} parent=5 // pred_fallthru
      _
    %p373 = scmp.le.s32.totalorder 1, %s15
    %p374 = scmp.lt.s32.totalorder %s15, 3
    %p375 = pnand %p373, %p374
    %p376 = pneg %p375
    // Predicated region
    $region53: #{bottleneck_block_forward.1} parent=5 // pred_check
      _
    $region54: #{bottleneck_block_forward.1} parent=5 // pred_check_branch
      %378 = sbr.rel (%p375) target = $region56
    $region55: #{bottleneck_block_forward.1} parent=5 // pred_region
      %s379 = ssub.s32 %s15, 1
      %s380 = smul.u32 %s25, 16
      %s381 = ssub.s32 %s380, 1
      %p382 = scmp.gt.s32.totalorder %s381, 0
      %s383 = scalar_select %p382, %s381, 0
      %s384 = smul.u32 2, %s383
      %p385 = scmp.lt.s32.totalorder %s24, 1
      %s386 = scalar_select %p385, %s24, 1
      %p387 = scmp.lt.s32.totalorder %s384, 31
      %s388 = scalar_select %p387, %s384, 31
      %s389 = smul.addr %s386, 32
      %s390 = sadd.s32 %s388, %s389
      %s391 = smul.addr %s390, 8
      %s392 = scalar_lea.vmem %s0, %s391
      %p393 = pneg %p63
      %p394 = pneg %p60
      %s395 = smul.u32 32, %s25
      %p396 = scmp.lt.s32.totalorder %s24, 1
      %s397 = scalar_select %p396, %s24, 1
      %p398 = scmp.lt.s32.totalorder %s395, 31
      %s399 = scalar_select %p398, %s395, 31
      %s400 = smul.addr %s397, 32
      %s401 = sadd.s32 %s399, %s400
      %s402 = smul.addr %s401, 8
      %s403 = scalar_lea.vmem %s1, %s402
      %p404 = pneg %p91
      %p405 = pneg %p88
      %s406 = sadd.s32 %s25, 1
      %s407 = smul.u32 %s406, 16
      %p408 = scmp.lt.s32.totalorder %s407, 15
      %s409 = scalar_select %p408, %s407, 15
      %s410 = smul.u32 2, %s409
      %p411 = scmp.lt.s32.totalorder %s24, 1
      %s412 = scalar_select %p411, %s24, 1
      %p413 = scmp.lt.s32.totalorder %s410, 31
      %s414 = scalar_select %p413, %s410, 31
      %s415 = smul.addr %s412, 32
      %s416 = sadd.s32 %s414, %s415
      %s417 = smul.addr %s416, 8
      %s418 = scalar_lea.vmem %s2, %s417
      %p419 = pneg %p127
      %p420 = pneg %p124
      %p421 = pneg %p148
      %p422 = pneg %p145
      %p423 = pneg %p169
      %p424 = pneg %p166
      %p425 = pneg %p190
      %p426 = pneg %p187
      %p427 = pneg %p211
      %p428 = pneg %p208
      %p429 = pneg %p232
      %p430 = pneg %p229
      %p431 = pneg %p253
      %p432 = pneg %p250
      %p433 = pneg %p281
      %p434 = pneg %p278
      %s435 = smul.u32 32, %s25
      %p436 = scmp.lt.s32.totalorder %s24, 1
      %s437 = scalar_select %p436, %s24, 1
      %p438 = scmp.lt.s32.totalorder %s435, 31
      %s439 = scalar_select %p438, %s435, 31
      %s440 = smul.addr %s437, 32
      %s441 = sadd.s32 %s439, %s440
      %s442 = smul.addr %s441, 8
      %s443 = scalar_lea.vmem %s9, %s442
      %s444 = smul.u32 %s25, 16
      %s445 = ssub.s32 %s444, 1
      %p446 = scmp.gt.s32.totalorder %s445, 0
      %s447 = scalar_select %p446, %s445, 0
      %s448 = smul.u32 2, %s447
      %p449 = scmp.lt.s32.totalorder %s24, 1
      %s450 = scalar_select %p449, %s24, 1
      %p451 = scmp.lt.s32.totalorder %s448, 31
      %s452 = scalar_select %p451, %s448, 31
      %s453 = smul.addr %s450, 32
      %s454 = sadd.s32 %s452, %s453
      %s455 = smul.addr %s454, 8
      %s456 = scalar_lea.vmem %s0, %s455
      %s457 = smul.u32 %s25, 16
      %s458 = ssub.s32 %s457, 1
      %p459 = scmp.gt.s32.totalorder %s458, 0
      %s460 = scalar_select %p459, %s458, 0
      %s461 = smul.u32 2, %s460
      %s462 = smul.u32 32, %s25
      %p463 = scmp.lt.s32.totalorder %s24, 1
      %s464 = scalar_select %p463, %s24, 1
      %p465 = scmp.lt.s32.totalorder %s462, 31
      %s466 = scalar_select %p465, %s462, 31
      %s467 = smul.addr %s464, 32
      %s468 = sadd.s32 %s466, %s467
      %s469 = smul.addr %s468, 8
      %s470 = scalar_lea.vmem %s1, %s469
      %s471 = smul.u32 32, %s25
      %s472 = sadd.s32 %s25, 1
      %s473 = smul.u32 %s472, 16
      %p474 = scmp.lt.s32.totalorder %s473, 15
      %s475 = scalar_select %p474, %s473, 15
      %s476 = smul.u32 2, %s475
      %p477 = scmp.lt.s32.totalorder %s24, 1
      %s478 = scalar_select %p477, %s24, 1
      %p479 = scmp.lt.s32.totalorder %s476, 31
      %s480 = scalar_select %p479, %s476, 31
      %s481 = smul.addr %s478, 32
      %s482 = sadd.s32 %s480, %s481
      %s483 = smul.addr %s482, 8
      %s484 = scalar_lea.vmem %s2, %s483
      %s485 = sadd.s32 %s25, 1
      %s486 = smul.u32 %s485, 16
      %p487 = scmp.lt.s32.totalorder %s486, 15
      %s488 = scalar_select %p487, %s486, 15
      %s489 = smul.u32 2, %s488
      %s490 = smul.u32 32, %s25
      %p491 = scmp.lt.s32.totalorder %s24, 1
      %s492 = scalar_select %p491, %s24, 1
      %p493 = scmp.lt.s32.totalorder %s490, 31
      %s494 = scalar_select %p493, %s490, 31
      %s495 = smul.addr %s492, 32
      %s496 = sadd.s32 %s494, %s495
      %s497 = smul.addr %s496, 8
      %s498 = scalar_lea.vmem %s9, %s497
      %s499 = smul.u32 32, %s25
      %p501 = scmp.eq.s32.totalorder %s25, 0
      %v502 = vld [vmem:[%s3] sm:$0x1]
      %v503 = vld [vmem:[%s4] sm:$0x1]
      %v504 = vld [vmem:[%s6] sm:$0x1]
      %v505 = vld [vmem:[%s7] sm:$0x1]
      %v506 = vld [vmem:[%s5] sm:$0x3]
      %v507 = vld [vmem:[%s470] sm:$0xff]
      %v508 = vld [vmem:[%s470 + $0x8] sm:$0xff]
      %v509 = vld [vmem:[%s470 + $0x10] sm:$0xff]
      %v510 = vld [vmem:[%s470 + $0x18] sm:$0xff]
      %v511 = vld [vmem:[%s470 + $0x20] sm:$0xff]
      %v512 = vld [vmem:[%s470 + $0x28] sm:$0xff]
      %v513 = vld [vmem:[%s470 + $0x30] sm:$0xff]
      %v514 = vld [vmem:[%s470 + $0x38] sm:$0xff]
      %v515 = vld [vmem:[%s470 + $0x40] sm:$0xff]
      %v516 = vld [vmem:[%s470 + $0x48] sm:$0xff]
      %v517 = vld [vmem:[%s470 + $0x50] sm:$0xff]
      %v518 = vld [vmem:[%s470 + $0x58] sm:$0xff]
      %v519 = vld [vmem:[%s470 + $0x60] sm:$0xff]
      %v520 = vld [vmem:[%s470 + $0x68] sm:$0xff]
      %v521 = vld [vmem:[%s470 + $0x70] sm:$0xff]
      %v522 = vld [vmem:[%s470 + $0x78] sm:$0xff]
      %v523 = vld [vmem:[%s470 + $0x80] sm:$0xff]
      %v524 = vld [vmem:[%s470 + $0x88] sm:$0xff]
      %v525 = vld [vmem:[%s470 + $0x90] sm:$0xff]
      %v526 = vld [vmem:[%s470 + $0x98] sm:$0xff]
      %v527 = vld [vmem:[%s470 + $0xa0] sm:$0xff]
      %v528 = vld [vmem:[%s470 + $0xa8] sm:$0xff]
      %v529 = vld [vmem:[%s470 + $0xb0] sm:$0xff]
      %v530 = vld [vmem:[%s470 + $0xb8] sm:$0xff]
      %v531 = vld [vmem:[%s470 + $0xc0] sm:$0xff]
      %v532 = vld [vmem:[%s470 + $0xc8] sm:$0xff]
      %v533 = vld [vmem:[%s470 + $0xd0] sm:$0xff]
      %v534 = vld [vmem:[%s470 + $0xd8] sm:$0xff]
      %v535 = vld [vmem:[%s470 + $0xe0] sm:$0xff]
      %v536 = vld [vmem:[%s470 + $0xe8] sm:$0xff]
      %v537 = vld [vmem:[%s470 + $0xf0] sm:$0xff]
      %v538 = vld [vmem:[%s470 + $0xf8] sm:$0xff]
      %v540 = vlaneseq
      %v541 = vshrl.u32 %v540, 7
      %v542 = vsub.s32 0, %v541
      %v543 = vrot.slane %v502, %v542
      %v545 = vmul.f32 %v507, %v543
      %v546 = vmul.f32 %v508, %v543
      %v547 = vmul.f32 %v509, %v543
      %v548 = vmul.f32 %v510, %v543
      %v549 = vmul.f32 %v511, %v543
      %v550 = vmul.f32 %v512, %v543
      %v551 = vmul.f32 %v513, %v543
      %v552 = vmul.f32 %v514, %v543
      %v553 = vmul.f32 %v515, %v543
      %v554 = vmul.f32 %v516, %v543
      %v555 = vmul.f32 %v517, %v543
      %v556 = vmul.f32 %v518, %v543
      %v557 = vmul.f32 %v519, %v543
      %v558 = vmul.f32 %v520, %v543
      %v559 = vmul.f32 %v521, %v543
      %v560 = vmul.f32 %v522, %v543
      %v561 = vmul.f32 %v523, %v543
      %v562 = vmul.f32 %v524, %v543
      %v563 = vmul.f32 %v525, %v543
      %v564 = vmul.f32 %v526, %v543
      %v565 = vmul.f32 %v527, %v543
      %v566 = vmul.f32 %v528, %v543
      %v567 = vmul.f32 %v529, %v543
      %v568 = vmul.f32 %v530, %v543
      %v569 = vmul.f32 %v531, %v543
      %v570 = vmul.f32 %v532, %v543
      %v571 = vmul.f32 %v533, %v543
      %v572 = vmul.f32 %v534, %v543
      %v573 = vmul.f32 %v535, %v543
      %v574 = vmul.f32 %v536, %v543
      %v575 = vmul.f32 %v537, %v543
      %v576 = vmul.f32 %v538, %v543
      %v578 = vlaneseq
      %v579 = vshrl.u32 %v578, 7
      %v580 = vsub.s32 0, %v579
      %v581 = vrot.slane %v503, %v580
      %v583 = vadd.f32 %v545, %v581
      %v584 = vadd.f32 %v546, %v581
      %v585 = vadd.f32 %v547, %v581
      %v586 = vadd.f32 %v548, %v581
      %v587 = vadd.f32 %v549, %v581
      %v588 = vadd.f32 %v550, %v581
      %v589 = vadd.f32 %v551, %v581
      %v590 = vadd.f32 %v552, %v581
      %v591 = vadd.f32 %v553, %v581
      %v592 = vadd.f32 %v554, %v581
      %v593 = vadd.f32 %v555, %v581
      %v594 = vadd.f32 %v556, %v581
      %v595 = vadd.f32 %v557, %v581
      %v596 = vadd.f32 %v558, %v581
      %v597 = vadd.f32 %v559, %v581
      %v598 = vadd.f32 %v560, %v581
      %v599 = vadd.f32 %v561, %v581
      %v600 = vadd.f32 %v562, %v581
      %v601 = vadd.f32 %v563, %v581
      %v602 = vadd.f32 %v564, %v581
      %v603 = vadd.f32 %v565, %v581
      %v604 = vadd.f32 %v566, %v581
      %v605 = vadd.f32 %v567, %v581
      %v606 = vadd.f32 %v568, %v581
      %v607 = vadd.f32 %v569, %v581
      %v608 = vadd.f32 %v570, %v581
      %v609 = vadd.f32 %v571, %v581
      %v610 = vadd.f32 %v572, %v581
      %v611 = vadd.f32 %v573, %v581
      %v612 = vadd.f32 %v574, %v581
      %v613 = vadd.f32 %v575, %v581
      %v614 = vadd.f32 %v576, %v581
      %v615 = vmax.f32 %v583, 0.0
      %v616 = vmax.f32 %v584, 0.0
      %v617 = vmax.f32 %v585, 0.0
      %v618 = vmax.f32 %v586, 0.0
      %v619 = vmax.f32 %v587, 0.0
      %v620 = vmax.f32 %v588, 0.0
      %v621 = vmax.f32 %v589, 0.0
      %v622 = vmax.f32 %v590, 0.0
      %v623 = vmax.f32 %v591, 0.0
      %v624 = vmax.f32 %v592, 0.0
      %v625 = vmax.f32 %v593, 0.0
      %v626 = vmax.f32 %v594, 0.0
      %v627 = vmax.f32 %v595, 0.0
      %v628 = vmax.f32 %v596, 0.0
      %v629 = vmax.f32 %v597, 0.0
      %v630 = vmax.f32 %v598, 0.0
      %v631 = vmax.f32 %v599, 0.0
      %v632 = vmax.f32 %v600, 0.0
      %v633 = vmax.f32 %v601, 0.0
      %v634 = vmax.f32 %v602, 0.0
      %v635 = vmax.f32 %v603, 0.0
      %v636 = vmax.f32 %v604, 0.0
      %v637 = vmax.f32 %v605, 0.0
      %v638 = vmax.f32 %v606, 0.0
      %v639 = vmax.f32 %v607, 0.0
      %v640 = vmax.f32 %v608, 0.0
      %v641 = vmax.f32 %v609, 0.0
      %v642 = vmax.f32 %v610, 0.0
      %v643 = vmax.f32 %v611, 0.0
      %v644 = vmax.f32 %v612, 0.0
      %v645 = vmax.f32 %v613, 0.0
      %v646 = vmax.f32 %v614, 0.0
      %v647 = vpack.c.bf16 %v616, %v615
      %v648 = vpack.c.bf16 %v618, %v617
      %v649 = vpack.c.bf16 %v620, %v619
      %v650 = vpack.c.bf16 %v622, %v621
      %v651 = vpack.c.bf16 %v624, %v623
      %v652 = vpack.c.bf16 %v626, %v625
      %v653 = vpack.c.bf16 %v628, %v627
      %v654 = vpack.c.bf16 %v630, %v629
      %v655 = vpack.c.bf16 %v632, %v631
      %v656 = vpack.c.bf16 %v634, %v633
      %v657 = vpack.c.bf16 %v636, %v635
      %v658 = vpack.c.bf16 %v638, %v637
      %v659 = vpack.c.bf16 %v640, %v639
      %v660 = vpack.c.bf16 %v642, %v641
      %v661 = vpack.c.bf16 %v644, %v643
      %v662 = vpack.c.bf16 %v646, %v645
      %vm663 = vcmask 31744
      %v665 = vsel %vm663, %v647, 0
      %v668 = vsel %vm663, %v648, 0
      %v671 = vsel %vm663, %v649, 0
      %v674 = vsel %vm663, %v650, 0
      %v677 = vsel %vm663, %v651, 0
      %v680 = vsel %vm663, %v652, 0
      %v683 = vsel %vm663, %v653, 0
      %v686 = vsel %vm663, %v654, 0
      %v689 = vsel %vm663, %v655, 0
      %v692 = vsel %vm663, %v656, 0
      %v695 = vsel %vm663, %v657, 0
      %v698 = vsel %vm663, %v658, 0
      %v701 = vsel %vm663, %v659, 0
      %v704 = vsel %vm663, %v660, 0
      %v707 = vsel %vm663, %v661, 0
      %v710 = vsel %vm663, %v662, 0
      %vm712 = vcmask 1041408
      %v714 = vsel %vm712, %v506, 0
      %716 = vmatprep.subr.bf16.mxu0 0
      %717 = vmatpush1.bf16.msra.mxu0 %v714
      %718 = vmatprep.subr.bf16.mxu0 0
      %719 = vmatpush1.bf16.msra.mxu0 0
      %720 = vmatprep.subr.bf16.mxu0 0
      %721 = vmatpush1.bf16.msra.mxu0 0
      %722 = vmatprep.subr.bf16.mxu0 0
      %723 = vmatpush1.bf16.msra.mxu0 0
      %724 = vmatprep.subr.bf16.mxu0 0
      %725 = vmatpush1.bf16.msra.mxu0 0
      %726 = vmatprep.subr.bf16.mxu0 0
      %727 = vmatpush1.bf16.msra.mxu0 0
      %728 = vmatprep.subr.bf16.mxu0 0
      %729 = vmatpush1.bf16.msra.mxu0 0
      %730 = vmatprep.subr.bf16.mxu0 0
      %731 = vmatpush1.bf16.msra.mxu0 0
      %732 = vmatprep.subr.bf16.mxu0 0
      %733 = vmatpush1.bf16.msra.mxu0 0
      %734 = vmatprep.subr.bf16.mxu0 0
      %735 = vmatpush1.bf16.msra.mxu0 0
      %736 = vmatprep.subr.bf16.mxu0 0
      %737 = vmatpush1.bf16.msra.mxu0 0
      %738 = vmatprep.subr.bf16.mxu0 0
      %739 = vmatpush1.bf16.msra.mxu0 0
      %740 = vmatprep.subr.bf16.mxu0 0
      %741 = vmatpush1.bf16.msra.mxu0 0
      %742 = vmatprep.subr.bf16.mxu0 0
      %743 = vmatpush1.bf16.msra.mxu0 0
      %744 = vmatprep.subr.bf16.mxu0 0
      %745 = vmatpush1.bf16.msra.mxu0 0
      %746 = vmatprep.subr.bf16.mxu0 0
      %747 = vmatpush1.bf16.msra.mxu0 0
      %748 = vmatprep.mubr.bf16.mxu0 0
      %749 = vmatmul.mubr.bf16.gmra.mrb[0].mxu0 %v665
      %v750 = vpop.f32.mrb[0].mxu0
      %v751 = vadd.f32 0.0, %v750
      %v752 = vpop.f32.mrb[0].mxu0
      %v753 = vpop.f32.mrb[0].mxu0
      %v754 = vadd.f32 0.0, %v753
      %v755 = vpop.f32.mrb[0].mxu0
      %756 = vmatprep.mubr.bf16.mxu0 0
      %757 = vmatmul.mubr.bf16.gmra.mrb[0].mxu0 %v668
      %v758 = vpop.f32.mrb[0].mxu0
      %v759 = vadd.f32 0.0, %v758
      %v760 = vpop.f32.mrb[0].mxu0
      %v761 = vpop.f32.mrb[0].mxu0
      %v762 = vadd.f32 0.0, %v761
      %v763 = vpop.f32.mrb[0].mxu0
      %764 = vmatprep.mubr.bf16.mxu0 0
      %765 = vmatmul.mubr.bf16.gmra.mrb[0].mxu0 %v671
      %v766 = vpop.f32.mrb[0].mxu0
      %v767 = vadd.f32 0.0, %v766
      %v768 = vpop.f32.mrb[0].mxu0
      %v769 = vpop.f32.mrb[0].mxu0
      %v770 = vadd.f32 0.0, %v769
      %v771 = vpop.f32.mrb[0].mxu0
      %772 = vmatprep.mubr.bf16.mxu0 0
      %773 = vmatmul.mubr.bf16.gmra.mrb[0].mxu0 %v674
      %v774 = vpop.f32.mrb[0].mxu0
      %v775 = vadd.f32 0.0, %v774
      %v776 = vpop.f32.mrb[0].mxu0
      %v777 = vpop.f32.mrb[0].mxu0
      %v778 = vadd.f32 0.0, %v777
      %v779 = vpop.f32.mrb[0].mxu0
      %780 = vmatprep.mubr.bf16.mxu0 0
      %781 = vmatmul.mubr.bf16.gmra.mrb[0].mxu0 %v677
      %v782 = vpop.f32.mrb[0].mxu0
      %v783 = vadd.f32 0.0, %v782
      %v784 = vpop.f32.mrb[0].mxu0
      %v785 = vpop.f32.mrb[0].mxu0
      %v786 = vadd.f32 0.0, %v785
      %v787 = vpop.f32.mrb[0].mxu0
      %788 = vmatprep.mubr.bf16.mxu0 0
      %789 = vmatmul.mubr.bf16.gmra.mrb[0].mxu0 %v680
      %v790 = vpop.f32.mrb[0].mxu0
      %v791 = vadd.f32 0.0, %v790
      %v792 = vpop.f32.mrb[0].mxu0
      %v793 = vpop.f32.mrb[0].mxu0
      %v794 = vadd.f32 0.0, %v793
      %v795 = vpop.f32.mrb[0].mxu0
      %796 = vmatprep.mubr.bf16.mxu0 0
      %797 = vmatmul.mubr.bf16.gmra.mrb[0].mxu0 %v683
      %v798 = vpop.f32.mrb[0].mxu0
      %v799 = vadd.f32 0.0, %v798
      %v800 = vpop.f32.mrb[0].mxu0
      %v801 = vpop.f32.mrb[0].mxu0
      %v802 = vadd.f32 0.0, %v801
      %v803 = vpop.f32.mrb[0].mxu0
      %804 = vmatprep.mubr.bf16.mxu0 0
      %805 = vmatmul.mubr.bf16.gmra.mrb[0].mxu0 %v686
      %v806 = vpop.f32.mrb[0].mxu0
      %v807 = vadd.f32 0.0, %v806
      %v808 = vpop.f32.mrb[0].mxu0
      %v809 = vpop.f32.mrb[0].mxu0
      %v810 = vadd.f32 0.0, %v809
      %v811 = vpop.f32.mrb[0].mxu0
      %812 = vmatprep.mubr.bf16.mxu0 0
      %813 = vmatmul.mubr.bf16.gmra.mrb[0].mxu0 %v689
      %v814 = vpop.f32.mrb[0].mxu0
      %v815 = vadd.f32 0.0, %v814
      %v816 = vpop.f32.mrb[0].mxu0
      %v817 = vpop.f32.mrb[0].mxu0
      %v818 = vadd.f32 0.0, %v817
      %v819 = vpop.f32.mrb[0].mxu0
      %820 = vmatprep.mubr.bf16.mxu0 0
      %821 = vmatmul.mubr.bf16.gmra.mrb[0].mxu0 %v692
      %v822 = vpop.f32.mrb[0].mxu0
      %v823 = vadd.f32 0.0, %v822
      %v824 = vpop.f32.mrb[0].mxu0
      %v825 = vpop.f32.mrb[0].mxu0
      %v826 = vadd.f32 0.0, %v825
      %v827 = vpop.f32.mrb[0].mxu0
      %828 = vmatprep.mubr.bf16.mxu0 0
      %829 = vmatmul.mubr.bf16.gmra.mrb[0].mxu0 %v695
      %v830 = vpop.f32.mrb[0].mxu0
      %v831 = vadd.f32 0.0, %v830
      %v832 = vpop.f32.mrb[0].mxu0
      %v833 = vpop.f32.mrb[0].mxu0
      %v834 = vadd.f32 0.0, %v833
      %v835 = vpop.f32.mrb[0].mxu0
      %836 = vmatprep.mubr.bf16.mxu0 0
      %837 = vmatmul.mubr.bf16.gmra.mrb[0].mxu0 %v698
      %v838 = vpop.f32.mrb[0].mxu0
      %v839 = vadd.f32 0.0, %v838
      %v840 = vpop.f32.mrb[0].mxu0
      %v841 = vpop.f32.mrb[0].mxu0
      %v842 = vadd.f32 0.0, %v841
      %v843 = vpop.f32.mrb[0].mxu0
      %844 = vmatprep.mubr.bf16.mxu0 0
      %845 = vmatmul.mubr.bf16.gmra.mrb[0].mxu0 %v701
      %v846 = vpop.f32.mrb[0].mxu0
      %v847 = vadd.f32 0.0, %v846
      %v848 = vpop.f32.mrb[0].mxu0
      %v849 = vpop.f32.mrb[0].mxu0
      %v850 = vadd.f32 0.0, %v849
      %v851 = vpop.f32.mrb[0].mxu0
      %852 = vmatprep.mubr.bf16.mxu0 0
      %853 = vmatmul.mubr.bf16.gmra.mrb[0].mxu0 %v704
      %v854 = vpop.f32.mrb[0].mxu0
      %v855 = vadd.f32 0.0, %v854
      %v856 = vpop.f32.mrb[0].mxu0
      %v857 = vpop.f32.mrb[0].mxu0
      %v858 = vadd.f32 0.0, %v857
      %v859 = vpop.f32.mrb[0].mxu0
      %860 = vmatprep.mubr.bf16.mxu0 0
      %861 = vmatmul.mubr.bf16.gmra.mrb[0].mxu0 %v707
      %v862 = vpop.f32.mrb[0].mxu0
      %v863 = vadd.f32 0.0, %v862
      %v864 = vpop.f32.mrb[0].mxu0
      %v865 = vpop.f32.mrb[0].mxu0
      %v866 = vadd.f32 0.0, %v865
      %v867 = vpop.f32.mrb[0].mxu0
      %868 = vmatprep.mubr.bf16.mxu0 0
      %869 = vmatmul.mubr.bf16.gmra.mrb[0].mxu0 %v710
      %v870 = vpop.f32.mrb[0].mxu0
      %v871 = vadd.f32 0.0, %v870
      %v872 = vpop.f32.mrb[0].mxu0
      %v873 = vpop.f32.mrb[0].mxu0
      %v874 = vadd.f32 0.0, %v873
      %v875 = vpop.f32.mrb[0].mxu0
      %876 = vdwg.mxu0
      %v878 = vlaneseq
      %v879 = vshrl.u32 %v878, 7
      %v880 = vsub.s32 0, %v879
      %v881 = vrot.slane %v504, %v880
      %v883 = vmul.f32 %v751, %v881
      %v884 = vmul.f32 %v754, %v881
      %v885 = vmul.f32 %v759, %v881
      %v886 = vmul.f32 %v762, %v881
      %v887 = vmul.f32 %v767, %v881
      %v888 = vmul.f32 %v770, %v881
      %v889 = vmul.f32 %v775, %v881
      %v890 = vmul.f32 %v778, %v881
      %v891 = vmul.f32 %v783, %v881
      %v892 = vmul.f32 %v786, %v881
      %v893 = vmul.f32 %v791, %v881
      %v894 = vmul.f32 %v794, %v881
      %v895 = vmul.f32 %v799, %v881
      %v896 = vmul.f32 %v802, %v881
      %v897 = vmul.f32 %v807, %v881
      %v898 = vmul.f32 %v810, %v881
      %v899 = vmul.f32 %v815, %v881
      %v900 = vmul.f32 %v818, %v881
      %v901 = vmul.f32 %v823, %v881
      %v902 = vmul.f32 %v826, %v881
      %v903 = vmul.f32 %v831, %v881
      %v904 = vmul.f32 %v834, %v881
      %v905 = vmul.f32 %v839, %v881
      %v906 = vmul.f32 %v842, %v881
      %v907 = vmul.f32 %v847, %v881
      %v908 = vmul.f32 %v850, %v881
      %v909 = vmul.f32 %v855, %v881
      %v910 = vmul.f32 %v858, %v881
      %v911 = vmul.f32 %v863, %v881
      %v912 = vmul.f32 %v866, %v881
      %v913 = vmul.f32 %v871, %v881
      %v914 = vmul.f32 %v874, %v881
      %v916 = vlaneseq
      %v917 = vshrl.u32 %v916, 7
      %v918 = vsub.s32 0, %v917
      %v919 = vrot.slane %v505, %v918
      %v921 = vadd.f32 %v883, %v919
      %v922 = vadd.f32 %v884, %v919
      %v923 = vadd.f32 %v885, %v919
      %v924 = vadd.f32 %v886, %v919
      %v925 = vadd.f32 %v887, %v919
      %v926 = vadd.f32 %v888, %v919
      %v927 = vadd.f32 %v889, %v919
      %v928 = vadd.f32 %v890, %v919
      %v929 = vadd.f32 %v891, %v919
      %v930 = vadd.f32 %v892, %v919
      %v931 = vadd.f32 %v893, %v919
      %v932 = vadd.f32 %v894, %v919
      %v933 = vadd.f32 %v895, %v919
      %v934 = vadd.f32 %v896, %v919
      %v935 = vadd.f32 %v897, %v919
      %v936 = vadd.f32 %v898, %v919
      %v937 = vadd.f32 %v899, %v919
      %v938 = vadd.f32 %v900, %v919
      %v939 = vadd.f32 %v901, %v919
      %v940 = vadd.f32 %v902, %v919
      %v941 = vadd.f32 %v903, %v919
      %v942 = vadd.f32 %v904, %v919
      %v943 = vadd.f32 %v905, %v919
      %v944 = vadd.f32 %v906, %v919
      %v945 = vadd.f32 %v907, %v919
      %v946 = vadd.f32 %v908, %v919
      %v947 = vadd.f32 %v909, %v919
      %v948 = vadd.f32 %v910, %v919
      %v949 = vadd.f32 %v911, %v919
      %v950 = vadd.f32 %v912, %v919
      %v951 = vadd.f32 %v913, %v919
      %v952 = vadd.f32 %v914, %v919
      %v953 = vmax.f32 %v921, 0.0
      %v954 = vmax.f32 %v922, 0.0
      %v955 = vmax.f32 %v923, 0.0
      %v956 = vmax.f32 %v924, 0.0
      %v957 = vmax.f32 %v925, 0.0
      %v958 = vmax.f32 %v926, 0.0
      %v959 = vmax.f32 %v927, 0.0
      %v960 = vmax.f32 %v928, 0.0
      %v961 = vmax.f32 %v929, 0.0
      %v962 = vmax.f32 %v930, 0.0
      %v963 = vmax.f32 %v931, 0.0
      %v964 = vmax.f32 %v932, 0.0
      %v965 = vmax.f32 %v933, 0.0
      %v966 = vmax.f32 %v934, 0.0
      %v967 = vmax.f32 %v935, 0.0
      %v968 = vmax.f32 %v936, 0.0
      %v969 = vmax.f32 %v937, 0.0
      %v970 = vmax.f32 %v938, 0.0
      %v971 = vmax.f32 %v939, 0.0
      %v972 = vmax.f32 %v940, 0.0
      %v973 = vmax.f32 %v941, 0.0
      %v974 = vmax.f32 %v942, 0.0
      %v975 = vmax.f32 %v943, 0.0
      %v976 = vmax.f32 %v944, 0.0
      %v977 = vmax.f32 %v945, 0.0
      %v978 = vmax.f32 %v946, 0.0
      %v979 = vmax.f32 %v947, 0.0
      %v980 = vmax.f32 %v948, 0.0
      %v981 = vmax.f32 %v949, 0.0
      %v982 = vmax.f32 %v950, 0.0
      %v983 = vmax.f32 %v951, 0.0
      %v984 = vmax.f32 %v952, 0.0
      %985 = vst [vmem:[#allocation2 + $0x10] sm:$0xff] %v953
      %986 = vst [vmem:[#allocation2 + $0x18] sm:$0xff] %v954
      %987 = vst [vmem:[#allocation2 + $0x20] sm:$0xff] %v955
      %988 = vst [vmem:[#allocation2 + $0x28] sm:$0xff] %v956
      %989 = vst [vmem:[#allocation2 + $0x30] sm:$0xff] %v957
      %990 = vst [vmem:[#allocation2 + $0x38] sm:$0xff] %v958
      %991 = vst [vmem:[#allocation2 + $0x40] sm:$0xff] %v959
      %992 = vst [vmem:[#allocation2 + $0x48] sm:$0xff] %v960
      %993 = vst [vmem:[#allocation2 + $0x50] sm:$0xff] %v961
      %994 = vst [vmem:[#allocation2 + $0x58] sm:$0xff] %v962
      %995 = vst [vmem:[#allocation2 + $0x60] sm:$0xff] %v963
      %996 = vst [vmem:[#allocation2 + $0x68] sm:$0xff] %v964
      %997 = vst [vmem:[#allocation2 + $0x70] sm:$0xff] %v965
      %998 = vst [vmem:[#allocation2 + $0x78] sm:$0xff] %v966
      %999 = vst [vmem:[#allocation2 + $0x80] sm:$0xff] %v967
      %1000 = vst [vmem:[#allocation2 + $0x88] sm:$0xff] %v968
      %1001 = vst [vmem:[#allocation2 + $0x90] sm:$0xff] %v969
      %1002 = vst [vmem:[#allocation2 + $0x98] sm:$0xff] %v970
      %1003 = vst [vmem:[#allocation2 + $0xa0] sm:$0xff] %v971
      %1004 = vst [vmem:[#allocation2 + $0xa8] sm:$0xff] %v972
      %1005 = vst [vmem:[#allocation2 + $0xb0] sm:$0xff] %v973
      %1006 = vst [vmem:[#allocation2 + $0xb8] sm:$0xff] %v974
      %1007 = vst [vmem:[#allocation2 + $0xc0] sm:$0xff] %v975
      %1008 = vst [vmem:[#allocation2 + $0xc8] sm:$0xff] %v976
      %1009 = vst [vmem:[#allocation2 + $0xd0] sm:$0xff] %v977
      %1010 = vst [vmem:[#allocation2 + $0xd8] sm:$0xff] %v978
      %1011 = vst [vmem:[#allocation2 + $0xe0] sm:$0xff] %v979
      %1012 = vst [vmem:[#allocation2 + $0xe8] sm:$0xff] %v980
      %1013 = vst [vmem:[#allocation2 + $0xf0] sm:$0xff] %v981
      %1014 = vst [vmem:[#allocation2 + $0xf8] sm:$0xff] %v982
      %1015 = vst [vmem:[#allocation2 + $0x100] sm:$0xff] %v983
      %1016 = vst [vmem:[#allocation2 + $0x108] sm:$0xff] %v984
      // Predicated region
      $region57: #{bottleneck_block_forward.1} parent=55 // pred_check
        %p1017 = pneg %p501
      $region58: #{bottleneck_block_forward.1} parent=55 // pred_check_branch
        %1019 = sbr.rel (%p1017) target = $region60
      $region59: #{bottleneck_block_forward.1} parent=55 // pred_region
        %1020 = vst [vmem:[#allocation2] sm:$0xff] 0.0
        %1021 = vst [vmem:[#allocation2 + $0x8] sm:$0xff] 0.0
      $region60: #{bottleneck_block_forward.1} parent=55 // pred_fallthru
        _
      %p1022 = scmp.ne.s32.totalorder %s25, 0
      // Predicated region
      $region61: #{bottleneck_block_forward.1} parent=55 // pred_check
        %p1023 = pneg %p1022
      $region62: #{bottleneck_block_forward.1} parent=55 // pred_check_branch
        %1025 = sbr.rel (%p1023) target = $region64
      $region63: #{bottleneck_block_forward.1} parent=55 // pred_region
        %v1026 = vld [vmem:[%s456] sm:$0xff]
        %v1027 = vld [vmem:[%s456 + $0x8] sm:$0xff]
        %v1028 = vmul.f32 %v1026, %v543
        %v1029 = vmul.f32 %v1027, %v543
        %v1030 = vadd.f32 %v1028, %v581
        %v1031 = vadd.f32 %v1029, %v581
        %v1032 = vmax.f32 %v1030, 0.0
        %v1033 = vmax.f32 %v1031, 0.0
        %v1034 = vpack.c.bf16 %v1033, %v1032
        %v1036 = vsel %vm663, %v1034, 0
        %1038 = vmatprep.subr.bf16.mxu0 0
        %1039 = vmatpush1.bf16.msra.mxu0 %v714
        %1040 = vmatprep.subr.bf16.mxu0 0
        %1041 = vmatpush1.bf16.msra.mxu0 0
        %1042 = vmatprep.subr.bf16.mxu0 0
        %1043 = vmatpush1.bf16.msra.mxu0 0
        %1044 = vmatprep.subr.bf16.mxu0 0
        %1045 = vmatpush1.bf16.msra.mxu0 0
        %1046 = vmatprep.subr.bf16.mxu0 0
        %1047 = vmatpush1.bf16.msra.mxu0 0
        %1048 = vmatprep.subr.bf16.mxu0 0
        %1049 = vmatpush1.bf16.msra.mxu0 0
        %1050 = vmatprep.subr.bf16.mxu0 0
        %1051 = vmatpush1.bf16.msra.mxu0 0
        %1052 = vmatprep.subr.bf16.mxu0 0
        %1053 = vmatpush1.bf16.msra.mxu0 0
        %1054 = vmatprep.subr.bf16.mxu0 0
        %1055 = vmatpush1.bf16.msra.mxu0 0
        %1056 = vmatprep.subr.bf16.mxu0 0
        %1057 = vmatpush1.bf16.msra.mxu0 0
        %1058 = vmatprep.subr.bf16.mxu0 0
        %1059 = vmatpush1.bf16.msra.mxu0 0
        %1060 = vmatprep.subr.bf16.mxu0 0
        %1061 = vmatpush1.bf16.msra.mxu0 0
        %1062 = vmatprep.subr.bf16.mxu0 0
        %1063 = vmatpush1.bf16.msra.mxu0 0
        %1064 = vmatprep.subr.bf16.mxu0 0
        %1065 = vmatpush1.bf16.msra.mxu0 0
        %1066 = vmatprep.subr.bf16.mxu0 0
        %1067 = vmatpush1.bf16.msra.mxu0 0
        %1068 = vmatprep.subr.bf16.mxu0 0
        %1069 = vmatpush1.bf16.msra.mxu0 0
        %1070 = vmatprep.mubr.bf16.mxu0 0
        %1071 = vmatmul.mubr.bf16.gmra.mrb[0].mxu0 %v1036
        %v1072 = vpop.f32.mrb[0].mxu0
        %v1073 = vadd.f32 0.0, %v1072
        %v1074 = vpop.f32.mrb[0].mxu0
        %v1075 = vpop.f32.mrb[0].mxu0
        %v1076 = vadd.f32 0.0, %v1075
        %v1077 = vpop.f32.mrb[0].mxu0
        %1078 = vdwg.mxu0
        %v1079 = vmul.f32 %v1073, %v881
        %v1080 = vmul.f32 %v1076, %v881
        %v1081 = vadd.f32 %v1079, %v919
        %v1082 = vadd.f32 %v1080, %v919
        %v1083 = vmax.f32 %v1081, 0.0
        %v1084 = vmax.f32 %v1082, 0.0
        %1085 = vst [vmem:[#allocation2] sm:$0xff] %v1083
        %1086 = vst [vmem:[#allocation2 + $0x8] sm:$0xff] %v1084
      $region64: #{bottleneck_block_forward.1} parent=55 // pred_fallthru
        _
      // Predicated region
      $region65: #{bottleneck_block_forward.1} parent=55 // pred_check
        %p1087 = pneg %p501
      $region66: #{bottleneck_block_forward.1} parent=55 // pred_check_branch
        %1089 = sbr.rel (%p1087) target = $region68
      $region67: #{bottleneck_block_forward.1} parent=55 // pred_region
        %1090 = vst [vmem:[#allocation2 + $0x110] sm:$0xff] 0.0
        %1091 = vst [vmem:[#allocation2 + $0x118] sm:$0xff] 0.0
      $region68: #{bottleneck_block_forward.1} parent=55 // pred_fallthru
        _
      // Predicated region
      $region69: #{bottleneck_block_forward.1} parent=55 // pred_check
        %p1092 = pneg %p1022
      $region70: #{bottleneck_block_forward.1} parent=55 // pred_check_branch
        %1094 = sbr.rel (%p1092) target = $region72
      $region71: #{bottleneck_block_forward.1} parent=55 // pred_region
        %v1095 = vld [vmem:[%s484] sm:$0xff]
        %v1096 = vld [vmem:[%s484 + $0x8] sm:$0xff]
        %v1097 = vmul.f32 %v1095, %v543
        %v1098 = vmul.f32 %v1096, %v543
        %v1099 = vadd.f32 %v1097, %v581
        %v1100 = vadd.f32 %v1098, %v581
        %v1101 = vmax.f32 %v1099, 0.0
        %v1102 = vmax.f32 %v1100, 0.0
        %v1103 = vpack.c.bf16 %v1102, %v1101
        %v1105 = vsel %vm663, %v1103, 0
        %1107 = vmatprep.subr.bf16.mxu0 0
        %1108 = vmatpush1.bf16.msra.mxu0 %v714
        %1109 = vmatprep.subr.bf16.mxu0 0
        %1110 = vmatpush1.bf16.msra.mxu0 0
        %1111 = vmatprep.subr.bf16.mxu0 0
        %1112 = vmatpush1.bf16.msra.mxu0 0
        %1113 = vmatprep.subr.bf16.mxu0 0
        %1114 = vmatpush1.bf16.msra.mxu0 0
        %1115 = vmatprep.subr.bf16.mxu0 0
        %1116 = vmatpush1.bf16.msra.mxu0 0
        %1117 = vmatprep.subr.bf16.mxu0 0
        %1118 = vmatpush1.bf16.msra.mxu0 0
        %1119 = vmatprep.subr.bf16.mxu0 0
        %1120 = vmatpush1.bf16.msra.mxu0 0
        %1121 = vmatprep.subr.bf16.mxu0 0
        %1122 = vmatpush1.bf16.msra.mxu0 0
        %1123 = vmatprep.subr.bf16.mxu0 0
        %1124 = vmatpush1.bf16.msra.mxu0 0
        %1125 = vmatprep.subr.bf16.mxu0 0
        %1126 = vmatpush1.bf16.msra.mxu0 0
        %1127 = vmatprep.subr.bf16.mxu0 0
        %1128 = vmatpush1.bf16.msra.mxu0 0
        %1129 = vmatprep.subr.bf16.mxu0 0
        %1130 = vmatpush1.bf16.msra.mxu0 0
        %1131 = vmatprep.subr.bf16.mxu0 0
        %1132 = vmatpush1.bf16.msra.mxu0 0
        %1133 = vmatprep.subr.bf16.mxu0 0
        %1134 = vmatpush1.bf16.msra.mxu0 0
        %1135 = vmatprep.subr.bf16.mxu0 0
        %1136 = vmatpush1.bf16.msra.mxu0 0
        %1137 = vmatprep.subr.bf16.mxu0 0
        %1138 = vmatpush1.bf16.msra.mxu0 0
        %1139 = vmatprep.mubr.bf16.mxu0 0
        %1140 = vmatmul.mubr.bf16.gmra.mrb[0].mxu0 %v1105
        %v1141 = vpop.f32.mrb[0].mxu0
        %v1142 = vadd.f32 0.0, %v1141
        %v1143 = vpop.f32.mrb[0].mxu0
        %v1144 = vpop.f32.mrb[0].mxu0
        %v1145 = vadd.f32 0.0, %v1144
        %v1146 = vpop.f32.mrb[0].mxu0
        %1147 = vdwg.mxu0
        %v1148 = vmul.f32 %v1142, %v881
        %v1149 = vmul.f32 %v1145, %v881
        %v1150 = vadd.f32 %v1148, %v919
        %v1151 = vadd.f32 %v1149, %v919
        %v1152 = vmax.f32 %v1150, 0.0
        %v1153 = vmax.f32 %v1151, 0.0
        %1154 = vst [vmem:[#allocation2 + $0x110] sm:$0xff] %v1152
        %1155 = vst [vmem:[#allocation2 + $0x118] sm:$0xff] %v1153
      $region72: #{bottleneck_block_forward.1} parent=55 // pred_fallthru
        _
      %v1156 = vld [vmem:[#allocation2] sm:$0xff]
      %v1157 = vld [vmem:[#allocation2 + $0x8] sm:$0xff]
      %v1158 = vld [vmem:[#allocation2 + $0x10] sm:$0xff]
      %v1159 = vld [vmem:[#allocation2 + $0x18] sm:$0xff]
      %v1160 = vld [vmem:[#allocation2 + $0x20] sm:$0xff]
      %v1161 = vld [vmem:[#allocation2 + $0x28] sm:$0xff]
      %v1162 = vld [vmem:[#allocation2 + $0x30] sm:$0xff]
      %v1163 = vld [vmem:[#allocation2 + $0x38] sm:$0xff]
      %v1164 = vld [vmem:[#allocation2 + $0x40] sm:$0xff]
      %v1165 = vld [vmem:[#allocation2 + $0x48] sm:$0xff]
      %v1166 = vld [vmem:[#allocation2 + $0x50] sm:$0xff]
      %v1167 = vld [vmem:[#allocation2 + $0x58] sm:$0xff]
      %v1168 = vld [vmem:[#allocation2 + $0x60] sm:$0xff]
      %v1169 = vld [vmem:[#allocation2 + $0x68] sm:$0xff]
      %v1170 = vld [vmem:[#allocation2 + $0x70] sm:$0xff]
      %v1171 = vld [vmem:[#allocation2 + $0x78] sm:$0xff]
      %v1172 = vld [vmem:[#allocation2 + $0x80] sm:$0xff]
      %v1173 = vld [vmem:[#allocation2 + $0x88] sm:$0xff]
      %v1174 = vld [vmem:[#allocation2 + $0x90] sm:$0xff]
      %v1175 = vld [vmem:[#allocation2 + $0x98] sm:$0xff]
      %v1176 = vld [vmem:[#allocation2 + $0xa0] sm:$0xff]
      %v1177 = vld [vmem:[#allocation2 + $0xa8] sm:$0xff]
      %v1178 = vld [vmem:[#allocation2 + $0xb0] sm:$0xff]
      %v1179 = vld [vmem:[#allocation2 + $0xb8] sm:$0xff]
      %v1180 = vld [vmem:[#allocation2 + $0xc0] sm:$0xff]
      %v1181 = vld [vmem:[#allocation2 + $0xc8] sm:$0xff]
      %v1182 = vld [vmem:[#allocation2 + $0xd0] sm:$0xff]
      %v1183 = vld [vmem:[#allocation2 + $0xd8] sm:$0xff]
      %v1184 = vld [vmem:[#allocation2 + $0xe0] sm:$0xff]
      %v1185 = vld [vmem:[#allocation2 + $0xe8] sm:$0xff]
      %v1186 = vld [vmem:[#allocation2 + $0xf0] sm:$0xff]
      %v1187 = vld [vmem:[#allocation2 + $0xf8] sm:$0xff]
      %v1188 = vld [vmem:[#allocation2 + $0x100] sm:$0xff]
      %v1189 = vld [vmem:[#allocation2 + $0x108] sm:$0xff]
      %v1190 = vld [vmem:[#allocation2 + $0x110] sm:$0xff]
      %v1191 = vld [vmem:[#allocation2 + $0x118] sm:$0xff]
      %v1192 = vpack.c.bf16 %v1157, %v1156
      %v1193 = vpack.c.bf16 %v1159, %v1158
      %v1194 = vpack.c.bf16 %v1161, %v1160
      %v1195 = vpack.c.bf16 %v1163, %v1162
      %v1196 = vpack.c.bf16 %v1165, %v1164
      %v1197 = vpack.c.bf16 %v1167, %v1166
      %v1198 = vpack.c.bf16 %v1169, %v1168
      %v1199 = vpack.c.bf16 %v1171, %v1170
      %v1200 = vpack.c.bf16 %v1173, %v1172
      %v1201 = vpack.c.bf16 %v1175, %v1174
      %v1202 = vpack.c.bf16 %v1177, %v1176
      %v1203 = vpack.c.bf16 %v1179, %v1178
      %v1204 = vpack.c.bf16 %v1181, %v1180
      %v1205 = vpack.c.bf16 %v1183, %v1182
      %v1206 = vpack.c.bf16 %v1185, %v1184
      %v1207 = vpack.c.bf16 %v1187, %v1186
      %v1208 = vpack.c.bf16 %v1189, %v1188
      %v1209 = vpack.c.bf16 %v1191, %v1190
      %v1210 = vld [vmem:[%s8] sm:$0xff]
      %v1211 = vld [vmem:[%s8 + $0x8] sm:$0xff]
      %v1212 = vld [vmem:[%s8 + $0x10] sm:$0xff]
      %v1213 = vld [vmem:[%s8 + $0x18] sm:$0xff]
      %v1214 = vld [vmem:[%s8 + $0x20] sm:$0xf]
      %v1215 = vld [vmem:[%s8 + $0x24] sm:$0xff]
      %v1216 = vld [vmem:[%s8 + $0x2c] sm:$0xff]
      %v1217 = vld [vmem:[%s8 + $0x34] sm:$0xff]
      %v1218 = vld [vmem:[%s8 + $0x3c] sm:$0xff]
      %v1219 = vld [vmem:[%s8 + $0x44] sm:$0xf]
      %v1220 = vld [vmem:[%s8 + $0x48] sm:$0xff]
      %v1221 = vld [vmem:[%s8 + $0x50] sm:$0xff]
      %v1222 = vld [vmem:[%s8 + $0x58] sm:$0xff]
      %v1223 = vld [vmem:[%s8 + $0x60] sm:$0xff]
      %v1224 = vld [vmem:[%s8 + $0x68] sm:$0xf]
      %v1225 = vld [vmem:[%s8 + $0x6c] sm:$0xff]
      %v1226 = vld [vmem:[%s8 + $0x74] sm:$0xff]
      %v1227 = vld [vmem:[%s8 + $0x7c] sm:$0xff]
      %v1228 = vld [vmem:[%s8 + $0x84] sm:$0xff]
      %v1229 = vld [vmem:[%s8 + $0x8c] sm:$0xf]
      %v1230 = vld [vmem:[%s8 + $0x90] sm:$0xff]
      %v1231 = vld [vmem:[%s8 + $0x98] sm:$0xff]
      %v1232 = vld [vmem:[%s8 + $0xa0] sm:$0xff]
      %v1233 = vld [vmem:[%s8 + $0xa8] sm:$0xff]
      %v1234 = vld [vmem:[%s8 + $0xb0] sm:$0xf]
      %v1235 = vld [vmem:[%s8 + $0xb4] sm:$0xff]
      %v1236 = vld [vmem:[%s8 + $0xbc] sm:$0xff]
      %v1237 = vld [vmem:[%s8 + $0xc4] sm:$0xff]
      %v1238 = vld [vmem:[%s8 + $0xcc] sm:$0xff]
      %v1239 = vld [vmem:[%s8 + $0xd4] sm:$0xf]
      %v1240 = vld [vmem:[%s8 + $0xd8] sm:$0xff]
      %v1241 = vld [vmem:[%s8 + $0xe0] sm:$0xff]
      %v1242 = vld [vmem:[%s8 + $0xe8] sm:$0xff]
      %v1243 = vld [vmem:[%s8 + $0xf0] sm:$0xff]
      %v1244 = vld [vmem:[%s8 + $0xf8] sm:$0xf]
      %v1245 = vld [vmem:[%s8 + $0xfc] sm:$0xff]
      %v1246 = vld [vmem:[%s8 + $0x104] sm:$0xff]
      %v1247 = vld [vmem:[%s8 + $0x10c] sm:$0xff]
      %v1248 = vld [vmem:[%s8 + $0x114] sm:$0xff]
      %v1249 = vld [vmem:[%s8 + $0x11c] sm:$0xf]
      %v1250 = vld [vmem:[%s8 + $0x120] sm:$0xff]
      %v1251 = vld [vmem:[%s8 + $0x128] sm:$0xff]
      %v1252 = vld [vmem:[%s8 + $0x130] sm:$0xff]
      %v1253 = vld [vmem:[%s8 + $0x138] sm:$0xff]
      %v1254 = vld [vmem:[%s8 + $0x140] sm:$0xf]
      %v1255 = vld [vmem:[%s8 + $0x144] sm:$0xff]
      %v1256 = vld [vmem:[%s8 + $0x14c] sm:$0xff]
      %v1257 = vld [vmem:[%s8 + $0x154] sm:$0xff]
      %v1258 = vld [vmem:[%s8 + $0x15c] sm:$0xff]
      %v1259 = vld [vmem:[%s8 + $0x164] sm:$0xf]
      %v1260 = vld [vmem:[%s8 + $0x168] sm:$0xff]
      %v1261 = vld [vmem:[%s8 + $0x170] sm:$0xff]
      %v1262 = vld [vmem:[%s8 + $0x178] sm:$0xff]
      %v1263 = vld [vmem:[%s8 + $0x180] sm:$0xff]
      %v1264 = vld [vmem:[%s8 + $0x188] sm:$0xf]
      %v1265 = vld [vmem:[%s8 + $0x18c] sm:$0xff]
      %v1266 = vld [vmem:[%s8 + $0x194] sm:$0xff]
      %v1267 = vld [vmem:[%s8 + $0x19c] sm:$0xff]
      %v1268 = vld [vmem:[%s8 + $0x1a4] sm:$0xff]
      %v1269 = vld [vmem:[%s8 + $0x1ac] sm:$0xf]
      %v1270 = vld [vmem:[%s8 + $0x1b0] sm:$0xff]
      %v1271 = vld [vmem:[%s8 + $0x1b8] sm:$0xff]
      %v1272 = vld [vmem:[%s8 + $0x1c0] sm:$0xff]
      %v1273 = vld [vmem:[%s8 + $0x1c8] sm:$0xff]
      %v1274 = vld [vmem:[%s8 + $0x1d0] sm:$0xf]
      %v1275 = vld [vmem:[%s8 + $0x1d4] sm:$0xff]
      %v1276 = vld [vmem:[%s8 + $0x1dc] sm:$0xff]
      %v1277 = vld [vmem:[%s8 + $0x1e4] sm:$0xff]
      %v1278 = vld [vmem:[%s8 + $0x1ec] sm:$0xff]
      %v1279 = vld [vmem:[%s8 + $0x1f4] sm:$0xf]
      %v1280 = vld [vmem:[%s8 + $0x1f8] sm:$0xff]
      %v1281 = vld [vmem:[%s8 + $0x200] sm:$0xff]
      %v1282 = vld [vmem:[%s8 + $0x208] sm:$0xff]
      %v1283 = vld [vmem:[%s8 + $0x210] sm:$0xff]
      %v1284 = vld [vmem:[%s8 + $0x218] sm:$0xf]
      %v1285 = vld [vmem:[%s8 + $0x21c] sm:$0xff]
      %v1286 = vld [vmem:[%s8 + $0x224] sm:$0xff]
      %v1287 = vld [vmem:[%s8 + $0x22c] sm:$0xff]
      %v1288 = vld [vmem:[%s8 + $0x234] sm:$0xff]
      %v1289 = vld [vmem:[%s8 + $0x23c] sm:$0xf]
      %v1370 = vunpack.c.l.b16 %v1210
      %v1371 = vunpack.c.h.b16 %v1210
      %v1372 = vunpack.c.l.b16 %v1211
      %v1373 = vunpack.c.h.b16 %v1211
      %v1374 = vunpack.c.l.b16 %v1212
      %v1375 = vunpack.c.h.b16 %v1212
      %v1376 = vunpack.c.l.b16 %v1213
      %v1377 = vunpack.c.h.b16 %v1213
      %v1378 = vunpack.c.l.b16 %v1214
      %v1379 = vunpack.c.l.b16 %v1215
      %v1380 = vunpack.c.h.b16 %v1215
      %v1381 = vunpack.c.l.b16 %v1216
      %v1382 = vunpack.c.h.b16 %v1216
      %v1383 = vunpack.c.l.b16 %v1217
      %v1384 = vunpack.c.h.b16 %v1217
      %v1385 = vunpack.c.l.b16 %v1218
      %v1386 = vunpack.c.h.b16 %v1218
      %v1387 = vunpack.c.l.b16 %v1219
      %v1388 = vunpack.c.l.b16 %v1220
      %v1389 = vunpack.c.h.b16 %v1220
      %v1390 = vunpack.c.l.b16 %v1221
      %v1391 = vunpack.c.h.b16 %v1221
      %v1392 = vunpack.c.l.b16 %v1222
      %v1393 = vunpack.c.h.b16 %v1222
      %v1394 = vunpack.c.l.b16 %v1223
      %v1395 = vunpack.c.h.b16 %v1223
      %v1396 = vunpack.c.l.b16 %v1224
      %v1397 = vunpack.c.l.b16 %v1225
      %v1398 = vunpack.c.h.b16 %v1225
      %v1399 = vunpack.c.l.b16 %v1226
      %v1400 = vunpack.c.h.b16 %v1226
      %v1401 = vunpack.c.l.b16 %v1227
      %v1402 = vunpack.c.h.b16 %v1227
      %v1403 = vunpack.c.l.b16 %v1228
      %v1404 = vunpack.c.h.b16 %v1228
      %v1405 = vunpack.c.l.b16 %v1229
      %v1406 = vunpack.c.l.b16 %v1230
      %v1407 = vunpack.c.h.b16 %v1230
      %v1408 = vunpack.c.l.b16 %v1231
      %v1409 = vunpack.c.h.b16 %v1231
      %v1410 = vunpack.c.l.b16 %v1232
      %v1411 = vunpack.c.h.b16 %v1232
      %v1412 = vunpack.c.l.b16 %v1233
      %v1413 = vunpack.c.h.b16 %v1233
      %v1414 = vunpack.c.l.b16 %v1234
      %v1415 = vunpack.c.l.b16 %v1235
      %v1416 = vunpack.c.h.b16 %v1235
      %v1417 = vunpack.c.l.b16 %v1236
      %v1418 = vunpack.c.h.b16 %v1236
      %v1419 = vunpack.c.l.b16 %v1237
      %v1420 = vunpack.c.h.b16 %v1237
      %v1421 = vunpack.c.l.b16 %v1238
      %v1422 = vunpack.c.h.b16 %v1238
      %v1423 = vunpack.c.l.b16 %v1239
      %v1424 = vunpack.c.l.b16 %v1240
      %v1425 = vunpack.c.h.b16 %v1240
      %v1426 = vunpack.c.l.b16 %v1241
      %v1427 = vunpack.c.h.b16 %v1241
      %v1428 = vunpack.c.l.b16 %v1242
      %v1429 = vunpack.c.h.b16 %v1242
      %v1430 = vunpack.c.l.b16 %v1243
      %v1431 = vunpack.c.h.b16 %v1243
      %v1432 = vunpack.c.l.b16 %v1244
      %v1433 = vunpack.c.l.b16 %v1245
      %v1434 = vunpack.c.h.b16 %v1245
      %v1435 = vunpack.c.l.b16 %v1246
      %v1436 = vunpack.c.h.b16 %v1246
      %v1437 = vunpack.c.l.b16 %v1247
      %v1438 = vunpack.c.h.b16 %v1247
      %v1439 = vunpack.c.l.b16 %v1248
      %v1440 = vunpack.c.h.b16 %v1248
      %v1441 = vunpack.c.l.b16 %v1249
      %v1442 = vunpack.c.l.b16 %v1250
      %v1443 = vunpack.c.h.b16 %v1250
      %v1444 = vunpack.c.l.b16 %v1251
      %v1445 = vunpack.c.h.b16 %v1251
      %v1446 = vunpack.c.l.b16 %v1252
      %v1447 = vunpack.c.h.b16 %v1252
      %v1448 = vunpack.c.l.b16 %v1253
      %v1449 = vunpack.c.h.b16 %v1253
      %v1450 = vunpack.c.l.b16 %v1254
      %v1451 = vunpack.c.l.b16 %v1255
      %v1452 = vunpack.c.h.b16 %v1255
      %v1453 = vunpack.c.l.b16 %v1256
      %v1454 = vunpack.c.h.b16 %v1256
      %v1455 = vunpack.c.l.b16 %v1257
      %v1456 = vunpack.c.h.b16 %v1257
      %v1457 = vunpack.c.l.b16 %v1258
      %v1458 = vunpack.c.h.b16 %v1258
      %v1459 = vunpack.c.l.b16 %v1259
      %v1460 = vunpack.c.l.b16 %v1260
      %v1461 = vunpack.c.h.b16 %v1260
      %v1462 = vunpack.c.l.b16 %v1261
      %v1463 = vunpack.c.h.b16 %v1261
      %v1464 = vunpack.c.l.b16 %v1262
      %v1465 = vunpack.c.h.b16 %v1262
      %v1466 = vunpack.c.l.b16 %v1263
      %v1467 = vunpack.c.h.b16 %v1263
      %v1468 = vunpack.c.l.b16 %v1264
      %v1469 = vunpack.c.l.b16 %v1265
      %v1470 = vunpack.c.h.b16 %v1265
      %v1471 = vunpack.c.l.b16 %v1266
      %v1472 = vunpack.c.h.b16 %v1266
      %v1473 = vunpack.c.l.b16 %v1267
      %v1474 = vunpack.c.h.b16 %v1267
      %v1475 = vunpack.c.l.b16 %v1268
      %v1476 = vunpack.c.h.b16 %v1268
      %v1477 = vunpack.c.l.b16 %v1269
      %v1478 = vunpack.c.l.b16 %v1270
      %v1479 = vunpack.c.h.b16 %v1270
      %v1480 = vunpack.c.l.b16 %v1271
      %v1481 = vunpack.c.h.b16 %v1271
      %v1482 = vunpack.c.l.b16 %v1272
      %v1483 = vunpack.c.h.b16 %v1272
      %v1484 = vunpack.c.l.b16 %v1273
      %v1485 = vunpack.c.h.b16 %v1273
      %v1486 = vunpack.c.l.b16 %v1274
      %v1487 = vunpack.c.l.b16 %v1275
      %v1488 = vunpack.c.h.b16 %v1275
      %v1489 = vunpack.c.l.b16 %v1276
      %v1490 = vunpack.c.h.b16 %v1276
      %v1491 = vunpack.c.l.b16 %v1277
      %v1492 = vunpack.c.h.b16 %v1277
      %v1493 = vunpack.c.l.b16 %v1278
      %v1494 = vunpack.c.h.b16 %v1278
      %v1495 = vunpack.c.l.b16 %v1279
      %v1496 = vunpack.c.l.b16 %v1280
      %v1497 = vunpack.c.h.b16 %v1280
      %v1498 = vunpack.c.l.b16 %v1281
      %v1499 = vunpack.c.h.b16 %v1281
      %v1500 = vunpack.c.l.b16 %v1282
      %v1501 = vunpack.c.h.b16 %v1282
      %v1502 = vunpack.c.l.b16 %v1283
      %v1503 = vunpack.c.h.b16 %v1283
      %v1504 = vunpack.c.l.b16 %v1284
      %v1505 = vunpack.c.l.b16 %v1285
      %v1506 = vunpack.c.h.b16 %v1285
      %v1507 = vunpack.c.l.b16 %v1286
      %v1508 = vunpack.c.h.b16 %v1286
      %v1509 = vunpack.c.l.b16 %v1287
      %v1510 = vunpack.c.h.b16 %v1287
      %v1511 = vunpack.c.l.b16 %v1288
      %v1512 = vunpack.c.h.b16 %v1288
      %v1513 = vunpack.c.l.b16 %v1289
      %v1514 = vpack.c.b16 %v1379, %v1370
      %v1515 = vpack.c.b16 %v1380, %v1371
      %v1516 = vpack.c.b16 %v1381, %v1372
      %v1517 = vpack.c.b16 %v1382, %v1373
      %v1518 = vpack.c.b16 %v1383, %v1374
      %v1519 = vpack.c.b16 %v1384, %v1375
      %v1520 = vpack.c.b16 %v1385, %v1376
      %v1521 = vpack.c.b16 %v1386, %v1377
      %v1522 = vpack.c.b16 %v1387, %v1378
      %v1523 = vpack.c.b16 %v1397, %v1388
      %v1524 = vpack.c.b16 %v1398, %v1389
      %v1525 = vpack.c.b16 %v1399, %v1390
      %v1526 = vpack.c.b16 %v1400, %v1391
      %v1527 = vpack.c.b16 %v1401, %v1392
      %v1528 = vpack.c.b16 %v1402, %v1393
      %v1529 = vpack.c.b16 %v1403, %v1394
      %v1530 = vpack.c.b16 %v1404, %v1395
      %v1531 = vpack.c.b16 %v1405, %v1396
      %v1532 = vpack.c.b16 %v1415, %v1406
      %v1533 = vpack.c.b16 %v1416, %v1407
      %v1534 = vpack.c.b16 %v1417, %v1408
      %v1535 = vpack.c.b16 %v1418, %v1409
      %v1536 = vpack.c.b16 %v1419, %v1410
      %v1537 = vpack.c.b16 %v1420, %v1411
      %v1538 = vpack.c.b16 %v1421, %v1412
      %v1539 = vpack.c.b16 %v1422, %v1413
      %v1540 = vpack.c.b16 %v1423, %v1414
      %v1541 = vpack.c.b16 %v1433, %v1424
      %v1542 = vpack.c.b16 %v1434, %v1425
      %v1543 = vpack.c.b16 %v1435, %v1426
      %v1544 = vpack.c.b16 %v1436, %v1427
      %v1545 = vpack.c.b16 %v1437, %v1428
      %v1546 = vpack.c.b16 %v1438, %v1429
      %v1547 = vpack.c.b16 %v1439, %v1430
      %v1548 = vpack.c.b16 %v1440, %v1431
      %v1549 = vpack.c.b16 %v1441, %v1432
      %v1550 = vpack.c.b16 %v1451, %v1442
      %v1551 = vpack.c.b16 %v1452, %v1443
      %v1552 = vpack.c.b16 %v1453, %v1444
      %v1553 = vpack.c.b16 %v1454, %v1445
      %v1554 = vpack.c.b16 %v1455, %v1446
      %v1555 = vpack.c.b16 %v1456, %v1447
      %v1556 = vpack.c.b16 %v1457, %v1448
      %v1557 = vpack.c.b16 %v1458, %v1449
      %v1558 = vpack.c.b16 %v1459, %v1450
      %v1559 = vpack.c.b16 %v1469, %v1460
      %v1560 = vpack.c.b16 %v1470, %v1461
      %v1561 = vpack.c.b16 %v1471, %v1462
      %v1562 = vpack.c.b16 %v1472, %v1463
      %v1563 = vpack.c.b16 %v1473, %v1464
      %v1564 = vpack.c.b16 %v1474, %v1465
      %v1565 = vpack.c.b16 %v1475, %v1466
      %v1566 = vpack.c.b16 %v1476, %v1467
      %v1567 = vpack.c.b16 %v1477, %v1468
      %v1568 = vpack.c.b16 %v1487, %v1478
      %v1569 = vpack.c.b16 %v1488, %v1479
      %v1570 = vpack.c.b16 %v1489, %v1480
      %v1571 = vpack.c.b16 %v1490, %v1481
      %v1572 = vpack.c.b16 %v1491, %v1482
      %v1573 = vpack.c.b16 %v1492, %v1483
      %v1574 = vpack.c.b16 %v1493, %v1484
      %v1575 = vpack.c.b16 %v1494, %v1485
      %v1576 = vpack.c.b16 %v1495, %v1486
      %v1577 = vpack.c.b16 %v1505, %v1496
      %v1578 = vpack.c.b16 %v1506, %v1497
      %v1579 = vpack.c.b16 %v1507, %v1498
      %v1580 = vpack.c.b16 %v1508, %v1499
      %v1581 = vpack.c.b16 %v1509, %v1500
      %v1582 = vpack.c.b16 %v1510, %v1501
      %v1583 = vpack.c.b16 %v1511, %v1502
      %v1584 = vpack.c.b16 %v1512, %v1503
      %v1585 = vpack.c.b16 %v1513, %v1504
      %1658 = vmatprep.subr.bf16.mxu0 %v1515
      %1659 = vmatpush1.bf16.msra.mxu0 %v1514
      %1660 = vmatprep.subr.bf16.mxu0 %v1524
      %1661 = vmatpush1.bf16.msra.mxu0 %v1523
      %1662 = vmatprep.subr.bf16.mxu0 %v1533
      %1663 = vmatpush1.bf16.msra.mxu0 %v1532
      %1664 = vmatprep.subr.bf16.mxu0 %v1542
      %1665 = vmatpush1.bf16.msra.mxu0 %v1541
      %1666 = vmatprep.subr.bf16.mxu0 %v1551
      %1667 = vmatpush1.bf16.msra.mxu0 %v1550
      %1668 = vmatprep.subr.bf16.mxu0 %v1560
      %1669 = vmatpush1.bf16.msra.mxu0 %v1559
      %1670 = vmatprep.subr.bf16.mxu0 %v1569
      %1671 = vmatpush1.bf16.msra.mxu0 %v1568
      %1672 = vmatprep.subr.bf16.mxu0 %v1578
      %1673 = vmatpush1.bf16.msra.mxu0 %v1577
      %1674 = vmatprep.subr.bf16.mxu0 0
      %1675 = vmatpush1.bf16.msra.mxu0 0
      %1676 = vmatprep.subr.bf16.mxu0 0
      %1677 = vmatpush1.bf16.msra.mxu0 0
      %1678 = vmatprep.subr.bf16.mxu0 0
      %1679 = vmatpush1.bf16.msra.mxu0 0
      %1680 = vmatprep.subr.bf16.mxu0 0
      %1681 = vmatpush1.bf16.msra.mxu0 0
      %1682 = vmatprep.subr.bf16.mxu0 0
      %1683 = vmatpush1.bf16.msra.mxu0 0
      %1684 = vmatprep.subr.bf16.mxu0 0
      %1685 = vmatpush1.bf16.msra.mxu0 0
      %1686 = vmatprep.subr.bf16.mxu0 0
      %1687 = vmatpush1.bf16.msra.mxu0 0
      %1688 = vmatprep.subr.bf16.mxu0 0
      %1689 = vmatpush1.bf16.msra.mxu0 0
      %1690 = vmatprep.mubr.bf16.mxu0 0
      %1691 = vmatmul.mubr.bf16.gmra.mrb[0].mxu0 %v1192
      %v1692 = vpop.f32.mrb[0].mxu0
      %v1693 = vadd.f32 0.0, %v1692
      %v1694 = vpop.f32.mrb[0].mxu0
      %v1695 = vadd.f32 0.0, %v1694
      %v1696 = vpop.f32.mrb[0].mxu0
      %v1697 = vadd.f32 0.0, %v1696
      %v1698 = vpop.f32.mrb[0].mxu0
      %v1699 = vadd.f32 0.0, %v1698
      %1700 = vmatprep.mubr.bf16.mxu0 0
      %1701 = vmatmul.mubr.bf16.gmra.mrb[0].mxu0 %v1193
      %v1702 = vpop.f32.mrb[0].mxu0
      %v1703 = vadd.f32 0.0, %v1702
      %v1704 = vpop.f32.mrb[0].mxu0
      %v1705 = vadd.f32 0.0, %v1704
      %v1706 = vpop.f32.mrb[0].mxu0
      %v1707 = vadd.f32 0.0, %v1706
      %v1708 = vpop.f32.mrb[0].mxu0
      %v1709 = vadd.f32 0.0, %v1708
      %1710 = vmatprep.mubr.bf16.mxu0 0
      %1711 = vmatmul.mubr.bf16.gmra.mrb[0].mxu0 %v1194
      %v1712 = vpop.f32.mrb[0].mxu0
      %v1713 = vadd.f32 0.0, %v1712
      %v1714 = vpop.f32.mrb[0].mxu0
      %v1715 = vadd.f32 0.0, %v1714
      %v1716 = vpop.f32.mrb[0].mxu0
      %v1717 = vadd.f32 0.0, %v1716
      %v1718 = vpop.f32.mrb[0].mxu0
      %v1719 = vadd.f32 0.0, %v1718
      %1720 = vmatprep.mubr.bf16.mxu0 0
      %1721 = vmatmul.mubr.bf16.gmra.mrb[0].mxu0 %v1195
      %v1722 = vpop.f32.mrb[0].mxu0
      %v1723 = vadd.f32 0.0, %v1722
      %v1724 = vpop.f32.mrb[0].mxu0
      %v1725 = vadd.f32 0.0, %v1724
      %v1726 = vpop.f32.mrb[0].mxu0
      %v1727 = vadd.f32 0.0, %v1726
      %v1728 = vpop.f32.mrb[0].mxu0
      %v1729 = vadd.f32 0.0, %v1728
      %1730 = vmatprep.mubr.bf16.mxu0 0
      %1731 = vmatmul.mubr.bf16.gmra.mrb[0].mxu0 %v1196
      %v1732 = vpop.f32.mrb[0].mxu0
      %v1733 = vadd.f32 0.0, %v1732
      %v1734 = vpop.f32.mrb[0].mxu0
      %v1735 = vadd.f32 0.0, %v1734
      %v1736 = vpop.f32.mrb[0].mxu0
      %v1737 = vadd.f32 0.0, %v1736
      %v1738 = vpop.f32.mrb[0].mxu0
      %v1739 = vadd.f32 0.0, %v1738
      %1740 = vmatprep.mubr.bf16.mxu0 0
      %1741 = vmatmul.mubr.bf16.gmra.mrb[0].mxu0 %v1197
      %v1742 = vpop.f32.mrb[0].mxu0
      %v1743 = vadd.f32 0.0, %v1742
      %v1744 = vpop.f32.mrb[0].mxu0
      %v1745 = vadd.f32 0.0, %v1744
      %v1746 = vpop.f32.mrb[0].mxu0
      %v1747 = vadd.f32 0.0, %v1746
      %v1748 = vpop.f32.mrb[0].mxu0
      %v1749 = vadd.f32 0.0, %v1748
      %1750 = vmatprep.mubr.bf16.mxu0 0
      %1751 = vmatmul.mubr.bf16.gmra.mrb[0].mxu0 %v1198
      %v1752 = vpop.f32.mrb[0].mxu0
      %v1753 = vadd.f32 0.0, %v1752
      %v1754 = vpop.f32.mrb[0].mxu0
      %v1755 = vadd.f32 0.0, %v1754
      %v1756 = vpop.f32.mrb[0].mxu0
      %v1757 = vadd.f32 0.0, %v1756
      %v1758 = vpop.f32.mrb[0].mxu0
      %v1759 = vadd.f32 0.0, %v1758
      %1760 = vmatprep.mubr.bf16.mxu0 0
      %1761 = vmatmul.mubr.bf16.gmra.mrb[0].mxu0 %v1199
      %v1762 = vpop.f32.mrb[0].mxu0
      %v1763 = vadd.f32 0.0, %v1762
      %v1764 = vpop.f32.mrb[0].mxu0
      %v1765 = vadd.f32 0.0, %v1764
      %v1766 = vpop.f32.mrb[0].mxu0
      %v1767 = vadd.f32 0.0, %v1766
      %v1768 = vpop.f32.mrb[0].mxu0
      %v1769 = vadd.f32 0.0, %v1768
      %1770 = vmatprep.mubr.bf16.mxu0 0
      %1771 = vmatmul.mubr.bf16.gmra.mrb[0].mxu0 %v1200
      %v1772 = vpop.f32.mrb[0].mxu0
      %v1773 = vadd.f32 0.0, %v1772
      %v1774 = vpop.f32.mrb[0].mxu0
      %v1775 = vadd.f32 0.0, %v1774
      %v1776 = vpop.f32.mrb[0].mxu0
      %v1777 = vadd.f32 0.0, %v1776
      %v1778 = vpop.f32.mrb[0].mxu0
      %v1779 = vadd.f32 0.0, %v1778
      %1780 = vmatprep.mubr.bf16.mxu0 0
      %1781 = vmatmul.mubr.bf16.gmra.mrb[0].mxu0 %v1201
      %v1782 = vpop.f32.mrb[0].mxu0
      %v1783 = vadd.f32 0.0, %v1782
      %v1784 = vpop.f32.mrb[0].mxu0
      %v1785 = vadd.f32 0.0, %v1784
      %v1786 = vpop.f32.mrb[0].mxu0
      %v1787 = vadd.f32 0.0, %v1786
      %v1788 = vpop.f32.mrb[0].mxu0
      %v1789 = vadd.f32 0.0, %v1788
      %1790 = vmatprep.mubr.bf16.mxu0 0
      %1791 = vmatmul.mubr.bf16.gmra.mrb[0].mxu0 %v1202
      %v1792 = vpop.f32.mrb[0].mxu0
      %v1793 = vadd.f32 0.0, %v1792
      %v1794 = vpop.f32.mrb[0].mxu0
      %v1795 = vadd.f32 0.0, %v1794
      %v1796 = vpop.f32.mrb[0].mxu0
      %v1797 = vadd.f32 0.0, %v1796
      %v1798 = vpop.f32.mrb[0].mxu0
      %v1799 = vadd.f32 0.0, %v1798
      %1800 = vmatprep.mubr.bf16.mxu0 0
      %1801 = vmatmul.mubr.bf16.gmra.mrb[0].mxu0 %v1203
      %v1802 = vpop.f32.mrb[0].mxu0
      %v1803 = vadd.f32 0.0, %v1802
      %v1804 = vpop.f32.mrb[0].mxu0
      %v1805 = vadd.f32 0.0, %v1804
      %v1806 = vpop.f32.mrb[0].mxu0
      %v1807 = vadd.f32 0.0, %v1806
      %v1808 = vpop.f32.mrb[0].mxu0
      %v1809 = vadd.f32 0.0, %v1808
      %1810 = vmatprep.mubr.bf16.mxu0 0
      %1811 = vmatmul.mubr.bf16.gmra.mrb[0].mxu0 %v1204
      %v1812 = vpop.f32.mrb[0].mxu0
      %v1813 = vadd.f32 0.0, %v1812
      %v1814 = vpop.f32.mrb[0].mxu0
      %v1815 = vadd.f32 0.0, %v1814
      %v1816 = vpop.f32.mrb[0].mxu0
      %v1817 = vadd.f32 0.0, %v1816
      %v1818 = vpop.f32.mrb[0].mxu0
      %v1819 = vadd.f32 0.0, %v1818
      %1820 = vmatprep.mubr.bf16.mxu0 0
      %1821 = vmatmul.mubr.bf16.gmra.mrb[0].mxu0 %v1205
      %v1822 = vpop.f32.mrb[0].mxu0
      %v1823 = vadd.f32 0.0, %v1822
      %v1824 = vpop.f32.mrb[0].mxu0
      %v1825 = vadd.f32 0.0, %v1824
      %v1826 = vpop.f32.mrb[0].mxu0
      %v1827 = vadd.f32 0.0, %v1826
      %v1828 = vpop.f32.mrb[0].mxu0
      %v1829 = vadd.f32 0.0, %v1828
      %1830 = vmatprep.mubr.bf16.mxu0 0
      %1831 = vmatmul.mubr.bf16.gmra.mrb[0].mxu0 %v1206
      %v1832 = vpop.f32.mrb[0].mxu0
      %v1833 = vadd.f32 0.0, %v1832
      %v1834 = vpop.f32.mrb[0].mxu0
      %v1835 = vadd.f32 0.0, %v1834
      %v1836 = vpop.f32.mrb[0].mxu0
      %v1837 = vadd.f32 0.0, %v1836
      %v1838 = vpop.f32.mrb[0].mxu0
      %v1839 = vadd.f32 0.0, %v1838
      %1840 = vmatprep.mubr.bf16.mxu0 0
      %1841 = vmatmul.mubr.bf16.gmra.mrb[0].mxu0 %v1207
      %v1842 = vpop.f32.mrb[0].mxu0
      %v1843 = vadd.f32 0.0, %v1842
      %v1844 = vpop.f32.mrb[0].mxu0
      %v1845 = vadd.f32 0.0, %v1844
      %v1846 = vpop.f32.mrb[0].mxu0
      %v1847 = vadd.f32 0.0, %v1846
      %v1848 = vpop.f32.mrb[0].mxu0
      %v1849 = vadd.f32 0.0, %v1848
      %1850 = vmatprep.mubr.bf16.mxu0 0
      %1851 = vmatmul.mubr.bf16.gmra.mrb[0].mxu0 %v1208
      %v1852 = vpop.f32.mrb[0].mxu0
      %v1853 = vpop.f32.mrb[0].mxu0
      %v1854 = vpop.f32.mrb[0].mxu0
      %v1855 = vpop.f32.mrb[0].mxu0
      %1856 = vmatprep.mubr.bf16.mxu0 0
      %1857 = vmatmul.mubr.bf16.gmra.mrb[0].mxu0 %v1209
      %v1858 = vpop.f32.mrb[0].mxu0
      %v1859 = vpop.f32.mrb[0].mxu0
      %v1860 = vpop.f32.mrb[0].mxu0
      %v1861 = vpop.f32.mrb[0].mxu0
      %1862 = vdwg.mxu0
      %1863 = vmatprep.subr.bf16.mxu0 %v1517
      %1864 = vmatpush1.bf16.msra.mxu0 %v1516
      %1865 = vmatprep.subr.bf16.mxu0 %v1526
      %1866 = vmatpush1.bf16.msra.mxu0 %v1525
      %1867 = vmatprep.subr.bf16.mxu0 %v1535
      %1868 = vmatpush1.bf16.msra.mxu0 %v1534
      %1869 = vmatprep.subr.bf16.mxu0 %v1544
      %1870 = vmatpush1.bf16.msra.mxu0 %v1543
      %1871 = vmatprep.subr.bf16.mxu0 %v1553
      %1872 = vmatpush1.bf16.msra.mxu0 %v1552
      %1873 = vmatprep.subr.bf16.mxu0 %v1562
      %1874 = vmatpush1.bf16.msra.mxu0 %v1561
      %1875 = vmatprep.subr.bf16.mxu0 %v1571
      %1876 = vmatpush1.bf16.msra.mxu0 %v1570
      %1877 = vmatprep.subr.bf16.mxu0 %v1580
      %1878 = vmatpush1.bf16.msra.mxu0 %v1579
      %1879 = vmatprep.subr.bf16.mxu0 0
      %1880 = vmatpush1.bf16.msra.mxu0 0
      %1881 = vmatprep.subr.bf16.mxu0 0
      %1882 = vmatpush1.bf16.msra.mxu0 0
      %1883 = vmatprep.subr.bf16.mxu0 0
      %1884 = vmatpush1.bf16.msra.mxu0 0
      %1885 = vmatprep.subr.bf16.mxu0 0
      %1886 = vmatpush1.bf16.msra.mxu0 0
      %1887 = vmatprep.subr.bf16.mxu0 0
      %1888 = vmatpush1.bf16.msra.mxu0 0
      %1889 = vmatprep.subr.bf16.mxu0 0
      %1890 = vmatpush1.bf16.msra.mxu0 0
      %1891 = vmatprep.subr.bf16.mxu0 0
      %1892 = vmatpush1.bf16.msra.mxu0 0
      %1893 = vmatprep.subr.bf16.mxu0 0
      %1894 = vmatpush1.bf16.msra.mxu0 0
      %1895 = vmatprep.mubr.bf16.mxu0 0
      %1896 = vmatmul.mubr.bf16.gmra.mrb[0].mxu0 %v1192
      %v1897 = vpop.f32.mrb[0].mxu0
      %v1898 = vadd.f32 0.0, %v1897
      %v1899 = vpop.f32.mrb[0].mxu0
      %v1900 = vpop.f32.mrb[0].mxu0
      %v1901 = vadd.f32 0.0, %v1900
      %v1902 = vpop.f32.mrb[0].mxu0
      %1903 = vmatprep.mubr.bf16.mxu0 0
      %1904 = vmatmul.mubr.bf16.gmra.mrb[0].mxu0 %v1193
      %v1905 = vpop.f32.mrb[0].mxu0
      %v1906 = vadd.f32 0.0, %v1905
      %v1907 = vpop.f32.mrb[0].mxu0
      %v1908 = vadd.f32 0.0, %v1907
      %v1909 = vpop.f32.mrb[0].mxu0
      %v1910 = vadd.f32 0.0, %v1909
      %v1911 = vpop.f32.mrb[0].mxu0
      %v1912 = vadd.f32 0.0, %v1911
      %1913 = vmatprep.mubr.bf16.mxu0 0
      %1914 = vmatmul.mubr.bf16.gmra.mrb[0].mxu0 %v1194
      %v1915 = vpop.f32.mrb[0].mxu0
      %v1916 = vadd.f32 0.0, %v1915
      %v1917 = vpop.f32.mrb[0].mxu0
      %v1918 = vadd.f32 0.0, %v1917
      %v1919 = vpop.f32.mrb[0].mxu0
      %v1920 = vadd.f32 0.0, %v1919
      %v1921 = vpop.f32.mrb[0].mxu0
      %v1922 = vadd.f32 0.0, %v1921
      %1923 = vmatprep.mubr.bf16.mxu0 0
      %1924 = vmatmul.mubr.bf16.gmra.mrb[0].mxu0 %v1195
      %v1925 = vpop.f32.mrb[0].mxu0
      %v1926 = vadd.f32 0.0, %v1925
      %v1927 = vpop.f32.mrb[0].mxu0
      %v1928 = vadd.f32 0.0, %v1927
      %v1929 = vpop.f32.mrb[0].mxu0
      %v1930 = vadd.f32 0.0, %v1929
      %v1931 = vpop.f32.mrb[0].mxu0
      %v1932 = vadd.f32 0.0, %v1931
      %1933 = vmatprep.mubr.bf16.mxu0 0
      %1934 = vmatmul.mubr.bf16.gmra.mrb[0].mxu0 %v1196
      %v1935 = vpop.f32.mrb[0].mxu0
      %v1936 = vadd.f32 0.0, %v1935
      %v1937 = vpop.f32.mrb[0].mxu0
      %v1938 = vadd.f32 0.0, %v1937
      %v1939 = vpop.f32.mrb[0].mxu0
      %v1940 = vadd.f32 0.0, %v1939
      %v1941 = vpop.f32.mrb[0].mxu0
      %v1942 = vadd.f32 0.0, %v1941
      %1943 = vmatprep.mubr.bf16.mxu0 0
      %1944 = vmatmul.mubr.bf16.gmra.mrb[0].mxu0 %v1197
      %v1945 = vpop.f32.mrb[0].mxu0
      %v1946 = vadd.f32 0.0, %v1945
      %v1947 = vpop.f32.mrb[0].mxu0
      %v1948 = vadd.f32 0.0, %v1947
      %v1949 = vpop.f32.mrb[0].mxu0
      %v1950 = vadd.f32 0.0, %v1949
      %v1951 = vpop.f32.mrb[0].mxu0
      %v1952 = vadd.f32 0.0, %v1951
      %1953 = vmatprep.mubr.bf16.mxu0 0
      %1954 = vmatmul.mubr.bf16.gmra.mrb[0].mxu0 %v1198
      %v1955 = vpop.f32.mrb[0].mxu0
      %v1956 = vadd.f32 0.0, %v1955
      %v1957 = vpop.f32.mrb[0].mxu0
      %v1958 = vadd.f32 0.0, %v1957
      %v1959 = vpop.f32.mrb[0].mxu0
      %v1960 = vadd.f32 0.0, %v1959
      %v1961 = vpop.f32.mrb[0].mxu0
      %v1962 = vadd.f32 0.0, %v1961
      %1963 = vmatprep.mubr.bf16.mxu0 0
      %1964 = vmatmul.mubr.bf16.gmra.mrb[0].mxu0 %v1199
      %v1965 = vpop.f32.mrb[0].mxu0
      %v1966 = vadd.f32 0.0, %v1965
      %v1967 = vpop.f32.mrb[0].mxu0
      %v1968 = vadd.f32 0.0, %v1967
      %v1969 = vpop.f32.mrb[0].mxu0
      %v1970 = vadd.f32 0.0, %v1969
      %v1971 = vpop.f32.mrb[0].mxu0
      %v1972 = vadd.f32 0.0, %v1971
      %1973 = vmatprep.mubr.bf16.mxu0 0
      %1974 = vmatmul.mubr.bf16.gmra.mrb[0].mxu0 %v1200
      %v1975 = vpop.f32.mrb[0].mxu0
      %v1976 = vadd.f32 0.0, %v1975
      %v1977 = vpop.f32.mrb[0].mxu0
      %v1978 = vadd.f32 0.0, %v1977
      %v1979 = vpop.f32.mrb[0].mxu0
      %v1980 = vadd.f32 0.0, %v1979
      %v1981 = vpop.f32.mrb[0].mxu0
      %v1982 = vadd.f32 0.0, %v1981
      %1983 = vmatprep.mubr.bf16.mxu0 0
      %1984 = vmatmul.mubr.bf16.gmra.mrb[0].mxu0 %v1201
      %v1985 = vpop.f32.mrb[0].mxu0
      %v1986 = vadd.f32 0.0, %v1985
      %v1987 = vpop.f32.mrb[0].mxu0
      %v1988 = vadd.f32 0.0, %v1987
      %v1989 = vpop.f32.mrb[0].mxu0
      %v1990 = vadd.f32 0.0, %v1989
      %v1991 = vpop.f32.mrb[0].mxu0
      %v1992 = vadd.f32 0.0, %v1991
      %1993 = vmatprep.mubr.bf16.mxu0 0
      %1994 = vmatmul.mubr.bf16.gmra.mrb[0].mxu0 %v1202
      %v1995 = vpop.f32.mrb[0].mxu0
      %v1996 = vadd.f32 0.0, %v1995
      %v1997 = vpop.f32.mrb[0].mxu0
      %v1998 = vadd.f32 0.0, %v1997
      %v1999 = vpop.f32.mrb[0].mxu0
      %v2000 = vadd.f32 0.0, %v1999
      %v2001 = vpop.f32.mrb[0].mxu0
      %v2002 = vadd.f32 0.0, %v2001
      %2003 = vmatprep.mubr.bf16.mxu0 0
      %2004 = vmatmul.mubr.bf16.gmra.mrb[0].mxu0 %v1203
      %v2005 = vpop.f32.mrb[0].mxu0
      %v2006 = vadd.f32 0.0, %v2005
      %v2007 = vpop.f32.mrb[0].mxu0
      %v2008 = vadd.f32 0.0, %v2007
      %v2009 = vpop.f32.mrb[0].mxu0
      %v2010 = vadd.f32 0.0, %v2009
      %v2011 = vpop.f32.mrb[0].mxu0
      %v2012 = vadd.f32 0.0, %v2011
      %2013 = vmatprep.mubr.bf16.mxu0 0
      %2014 = vmatmul.mubr.bf16.gmra.mrb[0].mxu0 %v1204
      %v2015 = vpop.f32.mrb[0].mxu0
      %v2016 = vadd.f32 0.0, %v2015
      %v2017 = vpop.f32.mrb[0].mxu0
      %v2018 = vadd.f32 0.0, %v2017
      %v2019 = vpop.f32.mrb[0].mxu0
      %v2020 = vadd.f32 0.0, %v2019
      %v2021 = vpop.f32.mrb[0].mxu0
      %v2022 = vadd.f32 0.0, %v2021
      %2023 = vmatprep.mubr.bf16.mxu0 0
      %2024 = vmatmul.mubr.bf16.gmra.mrb[0].mxu0 %v1205
      %v2025 = vpop.f32.mrb[0].mxu0
      %v2026 = vadd.f32 0.0, %v2025
      %v2027 = vpop.f32.mrb[0].mxu0
      %v2028 = vadd.f32 0.0, %v2027
      %v2029 = vpop.f32.mrb[0].mxu0
      %v2030 = vadd.f32 0.0, %v2029
      %v2031 = vpop.f32.mrb[0].mxu0
      %v2032 = vadd.f32 0.0, %v2031
      %2033 = vmatprep.mubr.bf16.mxu0 0
      %2034 = vmatmul.mubr.bf16.gmra.mrb[0].mxu0 %v1206
      %v2035 = vpop.f32.mrb[0].mxu0
      %v2036 = vadd.f32 0.0, %v2035
      %v2037 = vpop.f32.mrb[0].mxu0
      %v2038 = vadd.f32 0.0, %v2037
      %v2039 = vpop.f32.mrb[0].mxu0
      %v2040 = vadd.f32 0.0, %v2039
      %v2041 = vpop.f32.mrb[0].mxu0
      %v2042 = vadd.f32 0.0, %v2041
      %2043 = vmatprep.mubr.bf16.mxu0 0
      %2044 = vmatmul.mubr.bf16.gmra.mrb[0].mxu0 %v1207
      %v2045 = vpop.f32.mrb[0].mxu0
      %v2046 = vadd.f32 0.0, %v2045
      %v2047 = vpop.f32.mrb[0].mxu0
      %v2048 = vadd.f32 0.0, %v2047
      %v2049 = vpop.f32.mrb[0].mxu0
      %v2050 = vadd.f32 0.0, %v2049
      %v2051 = vpop.f32.mrb[0].mxu0
      %v2052 = vadd.f32 0.0, %v2051
      %2053 = vmatprep.mubr.bf16.mxu0 0
      %2054 = vmatmul.mubr.bf16.gmra.mrb[0].mxu0 %v1208
      %v2055 = vpop.f32.mrb[0].mxu0
      %v2056 = vpop.f32.mrb[0].mxu0
      %v2057 = vadd.f32 0.0, %v2056
      %v2058 = vpop.f32.mrb[0].mxu0
      %v2059 = vpop.f32.mrb[0].mxu0
      %v2060 = vadd.f32 0.0, %v2059
      %2061 = vmatprep.mubr.bf16.mxu0 0
      %2062 = vmatmul.mubr.bf16.gmra.mrb[0].mxu0 %v1209
      %v2063 = vpop.f32.mrb[0].mxu0
      %v2064 = vpop.f32.mrb[0].mxu0
      %v2065 = vpop.f32.mrb[0].mxu0
      %v2066 = vpop.f32.mrb[0].mxu0
      %2067 = vdwg.mxu0
      %2068 = vmatprep.subr.bf16.mxu0 %v1519
      %2069 = vmatpush1.bf16.msra.mxu0 %v1518
      %2070 = vmatprep.subr.bf16.mxu0 %v1528
      %2071 = vmatpush1.bf16.msra.mxu0 %v1527
      %2072 = vmatprep.subr.bf16.mxu0 %v1537
      %2073 = vmatpush1.bf16.msra.mxu0 %v1536
      %2074 = vmatprep.subr.bf16.mxu0 %v1546
      %2075 = vmatpush1.bf16.msra.mxu0 %v1545
      %2076 = vmatprep.subr.bf16.mxu0 %v1555
      %2077 = vmatpush1.bf16.msra.mxu0 %v1554
      %2078 = vmatprep.subr.bf16.mxu0 %v1564
      %2079 = vmatpush1.bf16.msra.mxu0 %v1563
      %2080 = vmatprep.subr.bf16.mxu0 %v1573
      %2081 = vmatpush1.bf16.msra.mxu0 %v1572
      %2082 = vmatprep.subr.bf16.mxu0 %v1582
      %2083 = vmatpush1.bf16.msra.mxu0 %v1581
      %2084 = vmatprep.subr.bf16.mxu0 0
      %2085 = vmatpush1.bf16.msra.mxu0 0
      %2086 = vmatprep.subr.bf16.mxu0 0
      %2087 = vmatpush1.bf16.msra.mxu0 0
      %2088 = vmatprep.subr.bf16.mxu0 0
      %2089 = vmatpush1.bf16.msra.mxu0 0
      %2090 = vmatprep.subr.bf16.mxu0 0
      %2091 = vmatpush1.bf16.msra.mxu0 0
      %2092 = vmatprep.subr.bf16.mxu0 0
      %2093 = vmatpush1.bf16.msra.mxu0 0
      %2094 = vmatprep.subr.bf16.mxu0 0
      %2095 = vmatpush1.bf16.msra.mxu0 0
      %2096 = vmatprep.subr.bf16.mxu0 0
      %2097 = vmatpush1.bf16.msra.mxu0 0
      %2098 = vmatprep.subr.bf16.mxu0 0
      %2099 = vmatpush1.bf16.msra.mxu0 0
      %2100 = vmatprep.mubr.bf16.mxu0 0
      %2101 = vmatmul.mubr.bf16.gmra.mrb[0].mxu0 %v1192
      %v2102 = vpop.f32.mrb[0].mxu0
      %v2103 = vpop.f32.mrb[0].mxu0
      %v2104 = vpop.f32.mrb[0].mxu0
      %v2105 = vpop.f32.mrb[0].mxu0
      %2106 = vmatprep.mubr.bf16.mxu0 0
      %2107 = vmatmul.mubr.bf16.gmra.mrb[0].mxu0 %v1193
      %v2108 = vpop.f32.mrb[0].mxu0
      %v2109 = vadd.f32 0.0, %v2108
      %v2110 = vpop.f32.mrb[0].mxu0
      %v2111 = vadd.f32 0.0, %v2110
      %v2112 = vpop.f32.mrb[0].mxu0
      %v2113 = vadd.f32 0.0, %v2112
      %v2114 = vpop.f32.mrb[0].mxu0
      %v2115 = vadd.f32 0.0, %v2114
      %2116 = vmatprep.mubr.bf16.mxu0 0
      %2117 = vmatmul.mubr.bf16.gmra.mrb[0].mxu0 %v1194
      %v2118 = vpop.f32.mrb[0].mxu0
      %v2119 = vadd.f32 0.0, %v2118
      %v2120 = vpop.f32.mrb[0].mxu0
      %v2121 = vadd.f32 0.0, %v2120
      %v2122 = vpop.f32.mrb[0].mxu0
      %v2123 = vadd.f32 0.0, %v2122
      %v2124 = vpop.f32.mrb[0].mxu0
      %v2125 = vadd.f32 0.0, %v2124
      %2126 = vmatprep.mubr.bf16.mxu0 0
      %2127 = vmatmul.mubr.bf16.gmra.mrb[0].mxu0 %v1195
      %v2128 = vpop.f32.mrb[0].mxu0
      %v2129 = vadd.f32 0.0, %v2128
      %v2130 = vpop.f32.mrb[0].mxu0
      %v2131 = vadd.f32 0.0, %v2130
      %v2132 = vpop.f32.mrb[0].mxu0
      %v2133 = vadd.f32 0.0, %v2132
      %v2134 = vpop.f32.mrb[0].mxu0
      %v2135 = vadd.f32 0.0, %v2134
      %2136 = vmatprep.mubr.bf16.mxu0 0
      %2137 = vmatmul.mubr.bf16.gmra.mrb[0].mxu0 %v1196
      %v2138 = vpop.f32.mrb[0].mxu0
      %v2139 = vadd.f32 0.0, %v2138
      %v2140 = vpop.f32.mrb[0].mxu0
      %v2141 = vadd.f32 0.0, %v2140
      %v2142 = vpop.f32.mrb[0].mxu0
      %v2143 = vadd.f32 0.0, %v2142
      %v2144 = vpop.f32.mrb[0].mxu0
      %v2145 = vadd.f32 0.0, %v2144
      %2146 = vmatprep.mubr.bf16.mxu0 0
      %2147 = vmatmul.mubr.bf16.gmra.mrb[0].mxu0 %v1197
      %v2148 = vpop.f32.mrb[0].mxu0
      %v2149 = vadd.f32 0.0, %v2148
      %v2150 = vpop.f32.mrb[0].mxu0
      %v2151 = vadd.f32 0.0, %v2150
      %v2152 = vpop.f32.mrb[0].mxu0
      %v2153 = vadd.f32 0.0, %v2152
      %v2154 = vpop.f32.mrb[0].mxu0
      %v2155 = vadd.f32 0.0, %v2154
      %2156 = vmatprep.mubr.bf16.mxu0 0
      %2157 = vmatmul.mubr.bf16.gmra.mrb[0].mxu0 %v1198
      %v2158 = vpop.f32.mrb[0].mxu0
      %v2159 = vadd.f32 0.0, %v2158
      %v2160 = vpop.f32.mrb[0].mxu0
      %v2161 = vadd.f32 0.0, %v2160
      %v2162 = vpop.f32.mrb[0].mxu0
      %v2163 = vadd.f32 0.0, %v2162
      %v2164 = vpop.f32.mrb[0].mxu0
      %v2165 = vadd.f32 0.0, %v2164
      %2166 = vmatprep.mubr.bf16.mxu0 0
      %2167 = vmatmul.mubr.bf16.gmra.mrb[0].mxu0 %v1199
      %v2168 = vpop.f32.mrb[0].mxu0
      %v2169 = vadd.f32 0.0, %v2168
      %v2170 = vpop.f32.mrb[0].mxu0
      %v2171 = vadd.f32 0.0, %v2170
      %v2172 = vpop.f32.mrb[0].mxu0
      %v2173 = vadd.f32 0.0, %v2172
      %v2174 = vpop.f32.mrb[0].mxu0
      %v2175 = vadd.f32 0.0, %v2174
      %2176 = vmatprep.mubr.bf16.mxu0 0
      %2177 = vmatmul.mubr.bf16.gmra.mrb[0].mxu0 %v1200
      %v2178 = vpop.f32.mrb[0].mxu0
      %v2179 = vadd.f32 0.0, %v2178
      %v2180 = vpop.f32.mrb[0].mxu0
      %v2181 = vadd.f32 0.0, %v2180
      %v2182 = vpop.f32.mrb[0].mxu0
      %v2183 = vadd.f32 0.0, %v2182
      %v2184 = vpop.f32.mrb[0].mxu0
      %v2185 = vadd.f32 0.0, %v2184
      %2186 = vmatprep.mubr.bf16.mxu0 0
      %2187 = vmatmul.mubr.bf16.gmra.mrb[0].mxu0 %v1201
      %v2188 = vpop.f32.mrb[0].mxu0
      %v2189 = vadd.f32 0.0, %v2188
      %v2190 = vpop.f32.mrb[0].mxu0
      %v2191 = vadd.f32 0.0, %v2190
      %v2192 = vpop.f32.mrb[0].mxu0
      %v2193 = vadd.f32 0.0, %v2192
      %v2194 = vpop.f32.mrb[0].mxu0
      %v2195 = vadd.f32 0.0, %v2194
      %2196 = vmatprep.mubr.bf16.mxu0 0
      %2197 = vmatmul.mubr.bf16.gmra.mrb[0].mxu0 %v1202
      %v2198 = vpop.f32.mrb[0].mxu0
      %v2199 = vadd.f32 0.0, %v2198
      %v2200 = vpop.f32.mrb[0].mxu0
      %v2201 = vadd.f32 0.0, %v2200
      %v2202 = vpop.f32.mrb[0].mxu0
      %v2203 = vadd.f32 0.0, %v2202
      %v2204 = vpop.f32.mrb[0].mxu0
      %v2205 = vadd.f32 0.0, %v2204
      %2206 = vmatprep.mubr.bf16.mxu0 0
      %2207 = vmatmul.mubr.bf16.gmra.mrb[0].mxu0 %v1203
      %v2208 = vpop.f32.mrb[0].mxu0
      %v2209 = vadd.f32 0.0, %v2208
      %v2210 = vpop.f32.mrb[0].mxu0
      %v2211 = vadd.f32 0.0, %v2210
      %v2212 = vpop.f32.mrb[0].mxu0
      %v2213 = vadd.f32 0.0, %v2212
      %v2214 = vpop.f32.mrb[0].mxu0
      %v2215 = vadd.f32 0.0, %v2214
      %2216 = vmatprep.mubr.bf16.mxu0 0
      %2217 = vmatmul.mubr.bf16.gmra.mrb[0].mxu0 %v1204
      %v2218 = vpop.f32.mrb[0].mxu0
      %v2219 = vadd.f32 0.0, %v2218
      %v2220 = vpop.f32.mrb[0].mxu0
      %v2221 = vadd.f32 0.0, %v2220
      %v2222 = vpop.f32.mrb[0].mxu0
      %v2223 = vadd.f32 0.0, %v2222
      %v2224 = vpop.f32.mrb[0].mxu0
      %v2225 = vadd.f32 0.0, %v2224
      %2226 = vmatprep.mubr.bf16.mxu0 0
      %2227 = vmatmul.mubr.bf16.gmra.mrb[0].mxu0 %v1205
      %v2228 = vpop.f32.mrb[0].mxu0
      %v2229 = vadd.f32 0.0, %v2228
      %v2230 = vpop.f32.mrb[0].mxu0
      %v2231 = vadd.f32 0.0, %v2230
      %v2232 = vpop.f32.mrb[0].mxu0
      %v2233 = vadd.f32 0.0, %v2232
      %v2234 = vpop.f32.mrb[0].mxu0
      %v2235 = vadd.f32 0.0, %v2234
      %2236 = vmatprep.mubr.bf16.mxu0 0
      %2237 = vmatmul.mubr.bf16.gmra.mrb[0].mxu0 %v1206
      %v2238 = vpop.f32.mrb[0].mxu0
      %v2239 = vadd.f32 0.0, %v2238
      %v2240 = vpop.f32.mrb[0].mxu0
      %v2241 = vadd.f32 0.0, %v2240
      %v2242 = vpop.f32.mrb[0].mxu0
      %v2243 = vadd.f32 0.0, %v2242
      %v2244 = vpop.f32.mrb[0].mxu0
      %v2245 = vadd.f32 0.0, %v2244
      %2246 = vmatprep.mubr.bf16.mxu0 0
      %2247 = vmatmul.mubr.bf16.gmra.mrb[0].mxu0 %v1207
      %v2248 = vpop.f32.mrb[0].mxu0
      %v2249 = vadd.f32 0.0, %v2248
      %v2250 = vpop.f32.mrb[0].mxu0
      %v2251 = vadd.f32 0.0, %v2250
      %v2252 = vpop.f32.mrb[0].mxu0
      %v2253 = vadd.f32 0.0, %v2252
      %v2254 = vpop.f32.mrb[0].mxu0
      %v2255 = vadd.f32 0.0, %v2254
      %2256 = vmatprep.mubr.bf16.mxu0 0
      %2257 = vmatmul.mubr.bf16.gmra.mrb[0].mxu0 %v1208
      %v2258 = vpop.f32.mrb[0].mxu0
      %v2259 = vadd.f32 0.0, %v2258
      %v2260 = vpop.f32.mrb[0].mxu0
      %v2261 = vadd.f32 0.0, %v2260
      %v2262 = vpop.f32.mrb[0].mxu0
      %v2263 = vadd.f32 0.0, %v2262
      %v2264 = vpop.f32.mrb[0].mxu0
      %v2265 = vadd.f32 0.0, %v2264
      %2266 = vmatprep.mubr.bf16.mxu0 0
      %2267 = vmatmul.mubr.bf16.gmra.mrb[0].mxu0 %v1209
      %v2268 = vpop.f32.mrb[0].mxu0
      %v2269 = vpop.f32.mrb[0].mxu0
      %v2270 = vpop.f32.mrb[0].mxu0
      %v2271 = vpop.f32.mrb[0].mxu0
      %2272 = vdwg.mxu0
      %2273 = vmatprep.subr.bf16.mxu0 %v1521
      %2274 = vmatpush1.bf16.msra.mxu0 %v1520
      %2275 = vmatprep.subr.bf16.mxu0 %v1530
      %2276 = vmatpush1.bf16.msra.mxu0 %v1529
      %2277 = vmatprep.subr.bf16.mxu0 %v1539
      %2278 = vmatpush1.bf16.msra.mxu0 %v1538
      %2279 = vmatprep.subr.bf16.mxu0 %v1548
      %2280 = vmatpush1.bf16.msra.mxu0 %v1547
      %2281 = vmatprep.subr.bf16.mxu0 %v1557
      %2282 = vmatpush1.bf16.msra.mxu0 %v1556
      %2283 = vmatprep.subr.bf16.mxu0 %v1566
      %2284 = vmatpush1.bf16.msra.mxu0 %v1565
      %2285 = vmatprep.subr.bf16.mxu0 %v1575
      %2286 = vmatpush1.bf16.msra.mxu0 %v1574
      %2287 = vmatprep.subr.bf16.mxu0 %v1584
      %2288 = vmatpush1.bf16.msra.mxu0 %v1583
      %2289 = vmatprep.subr.bf16.mxu0 0
      %2290 = vmatpush1.bf16.msra.mxu0 0
      %2291 = vmatprep.subr.bf16.mxu0 0
      %2292 = vmatpush1.bf16.msra.mxu0 0
      %2293 = vmatprep.subr.bf16.mxu0 0
      %2294 = vmatpush1.bf16.msra.mxu0 0
      %2295 = vmatprep.subr.bf16.mxu0 0
      %2296 = vmatpush1.bf16.msra.mxu0 0
      %2297 = vmatprep.subr.bf16.mxu0 0
      %2298 = vmatpush1.bf16.msra.mxu0 0
      %2299 = vmatprep.subr.bf16.mxu0 0
      %2300 = vmatpush1.bf16.msra.mxu0 0
      %2301 = vmatprep.subr.bf16.mxu0 0
      %2302 = vmatpush1.bf16.msra.mxu0 0
      %2303 = vmatprep.subr.bf16.mxu0 0
      %2304 = vmatpush1.bf16.msra.mxu0 0
      %2305 = vmatprep.mubr.bf16.mxu0 0
      %2306 = vmatmul.mubr.bf16.gmra.mrb[0].mxu0 %v1192
      %v2307 = vpop.f32.mrb[0].mxu0
      %v2308 = vpop.f32.mrb[0].mxu0
      %v2309 = vpop.f32.mrb[0].mxu0
      %v2310 = vpop.f32.mrb[0].mxu0
      %2311 = vmatprep.mubr.bf16.mxu0 0
      %2312 = vmatmul.mubr.bf16.gmra.mrb[0].mxu0 %v1193
      %v2313 = vpop.f32.mrb[0].mxu0
      %v2314 = vpop.f32.mrb[0].mxu0
      %v2315 = vpop.f32.mrb[0].mxu0
      %v2316 = vpop.f32.mrb[0].mxu0
      %2317 = vmatprep.mubr.bf16.mxu0 0
      %2318 = vmatmul.mubr.bf16.gmra.mrb[0].mxu0 %v1194
      %v2319 = vpop.f32.mrb[0].mxu0
      %v2320 = vadd.f32 0.0, %v2319
      %v2321 = vpop.f32.mrb[0].mxu0
      %v2322 = vadd.f32 0.0, %v2321
      %v2323 = vpop.f32.mrb[0].mxu0
      %v2324 = vadd.f32 0.0, %v2323
      %v2325 = vpop.f32.mrb[0].mxu0
      %v2326 = vadd.f32 0.0, %v2325
      %2327 = vmatprep.mubr.bf16.mxu0 0
      %2328 = vmatmul.mubr.bf16.gmra.mrb[0].mxu0 %v1195
      %v2329 = vpop.f32.mrb[0].mxu0
      %v2330 = vadd.f32 0.0, %v2329
      %v2331 = vpop.f32.mrb[0].mxu0
      %v2332 = vadd.f32 0.0, %v2331
      %v2333 = vpop.f32.mrb[0].mxu0
      %v2334 = vadd.f32 0.0, %v2333
      %v2335 = vpop.f32.mrb[0].mxu0
      %v2336 = vadd.f32 0.0, %v2335
      %2337 = vmatprep.mubr.bf16.mxu0 0
      %2338 = vmatmul.mubr.bf16.gmra.mrb[0].mxu0 %v1196
      %v2339 = vpop.f32.mrb[0].mxu0
      %v2340 = vadd.f32 0.0, %v2339
      %v2341 = vpop.f32.mrb[0].mxu0
      %v2342 = vadd.f32 0.0, %v2341
      %v2343 = vpop.f32.mrb[0].mxu0
      %v2344 = vadd.f32 0.0, %v2343
      %v2345 = vpop.f32.mrb[0].mxu0
      %v2346 = vadd.f32 0.0, %v2345
      %2347 = vmatprep.mubr.bf16.mxu0 0
      %2348 = vmatmul.mubr.bf16.gmra.mrb[0].mxu0 %v1197
      %v2349 = vpop.f32.mrb[0].mxu0
      %v2350 = vadd.f32 0.0, %v2349
      %v2351 = vpop.f32.mrb[0].mxu0
      %v2352 = vadd.f32 0.0, %v2351
      %v2353 = vpop.f32.mrb[0].mxu0
      %v2354 = vadd.f32 0.0, %v2353
      %v2355 = vpop.f32.mrb[0].mxu0
      %v2356 = vadd.f32 0.0, %v2355
      %2357 = vmatprep.mubr.bf16.mxu0 0
      %2358 = vmatmul.mubr.bf16.gmra.mrb[0].mxu0 %v1198
      %v2359 = vpop.f32.mrb[0].mxu0
      %v2360 = vadd.f32 0.0, %v2359
      %v2361 = vpop.f32.mrb[0].mxu0
      %v2362 = vadd.f32 0.0, %v2361
      %v2363 = vpop.f32.mrb[0].mxu0
      %v2364 = vadd.f32 0.0, %v2363
      %v2365 = vpop.f32.mrb[0].mxu0
      %v2366 = vadd.f32 0.0, %v2365
      %2367 = vmatprep.mubr.bf16.mxu0 0
      %2368 = vmatmul.mubr.bf16.gmra.mrb[0].mxu0 %v1199
      %v2369 = vpop.f32.mrb[0].mxu0
      %v2370 = vadd.f32 0.0, %v2369
      %v2371 = vpop.f32.mrb[0].mxu0
      %v2372 = vadd.f32 0.0, %v2371
      %v2373 = vpop.f32.mrb[0].mxu0
      %v2374 = vadd.f32 0.0, %v2373
      %v2375 = vpop.f32.mrb[0].mxu0
      %v2376 = vadd.f32 0.0, %v2375
      %2377 = vmatprep.mubr.bf16.mxu0 0
      %2378 = vmatmul.mubr.bf16.gmra.mrb[0].mxu0 %v1200
      %v2379 = vpop.f32.mrb[0].mxu0
      %v2380 = vadd.f32 0.0, %v2379
      %v2381 = vpop.f32.mrb[0].mxu0
      %v2382 = vadd.f32 0.0, %v2381
      %v2383 = vpop.f32.mrb[0].mxu0
      %v2384 = vadd.f32 0.0, %v2383
      %v2385 = vpop.f32.mrb[0].mxu0
      %v2386 = vadd.f32 0.0, %v2385
      %2387 = vmatprep.mubr.bf16.mxu0 0
      %2388 = vmatmul.mubr.bf16.gmra.mrb[0].mxu0 %v1201
      %v2389 = vpop.f32.mrb[0].mxu0
      %v2390 = vadd.f32 0.0, %v2389
      %v2391 = vpop.f32.mrb[0].mxu0
      %v2392 = vadd.f32 0.0, %v2391
      %v2393 = vpop.f32.mrb[0].mxu0
      %v2394 = vadd.f32 0.0, %v2393
      %v2395 = vpop.f32.mrb[0].mxu0
      %v2396 = vadd.f32 0.0, %v2395
      %2397 = vmatprep.mubr.bf16.mxu0 0
      %2398 = vmatmul.mubr.bf16.gmra.mrb[0].mxu0 %v1202
      %v2399 = vpop.f32.mrb[0].mxu0
      %v2400 = vadd.f32 0.0, %v2399
      %v2401 = vpop.f32.mrb[0].mxu0
      %v2402 = vadd.f32 0.0, %v2401
      %v2403 = vpop.f32.mrb[0].mxu0
      %v2404 = vadd.f32 0.0, %v2403
      %v2405 = vpop.f32.mrb[0].mxu0
      %v2406 = vadd.f32 0.0, %v2405
      %2407 = vmatprep.mubr.bf16.mxu0 0
      %2408 = vmatmul.mubr.bf16.gmra.mrb[0].mxu0 %v1203
      %v2409 = vpop.f32.mrb[0].mxu0
      %v2410 = vadd.f32 0.0, %v2409
      %v2411 = vpop.f32.mrb[0].mxu0
      %v2412 = vadd.f32 0.0, %v2411
      %v2413 = vpop.f32.mrb[0].mxu0
      %v2414 = vadd.f32 0.0, %v2413
      %v2415 = vpop.f32.mrb[0].mxu0
      %v2416 = vadd.f32 0.0, %v2415
      %2417 = vmatprep.mubr.bf16.mxu0 0
      %2418 = vmatmul.mubr.bf16.gmra.mrb[0].mxu0 %v1204
      %v2419 = vpop.f32.mrb[0].mxu0
      %v2420 = vadd.f32 0.0, %v2419
      %v2421 = vpop.f32.mrb[0].mxu0
      %v2422 = vadd.f32 0.0, %v2421
      %v2423 = vpop.f32.mrb[0].mxu0
      %v2424 = vadd.f32 0.0, %v2423
      %v2425 = vpop.f32.mrb[0].mxu0
      %v2426 = vadd.f32 0.0, %v2425
      %2427 = vmatprep.mubr.bf16.mxu0 0
      %2428 = vmatmul.mubr.bf16.gmra.mrb[0].mxu0 %v1205
      %v2429 = vpop.f32.mrb[0].mxu0
      %v2430 = vadd.f32 0.0, %v2429
      %v2431 = vpop.f32.mrb[0].mxu0
      %v2432 = vadd.f32 0.0, %v2431
      %v2433 = vpop.f32.mrb[0].mxu0
      %v2434 = vadd.f32 0.0, %v2433
      %v2435 = vpop.f32.mrb[0].mxu0
      %v2436 = vadd.f32 0.0, %v2435
      %2437 = vmatprep.mubr.bf16.mxu0 0
      %2438 = vmatmul.mubr.bf16.gmra.mrb[0].mxu0 %v1206
      %v2439 = vpop.f32.mrb[0].mxu0
      %v2440 = vadd.f32 0.0, %v2439
      %v2441 = vpop.f32.mrb[0].mxu0
      %v2442 = vadd.f32 0.0, %v2441
      %v2443 = vpop.f32.mrb[0].mxu0
      %v2444 = vadd.f32 0.0, %v2443
      %v2445 = vpop.f32.mrb[0].mxu0
      %v2446 = vadd.f32 0.0, %v2445
      %2447 = vmatprep.mubr.bf16.mxu0 0
      %2448 = vmatmul.mubr.bf16.gmra.mrb[0].mxu0 %v1207
      %v2449 = vpop.f32.mrb[0].mxu0
      %v2450 = vadd.f32 0.0, %v2449
      %v2451 = vpop.f32.mrb[0].mxu0
      %v2452 = vadd.f32 0.0, %v2451
      %v2453 = vpop.f32.mrb[0].mxu0
      %v2454 = vadd.f32 0.0, %v2453
      %v2455 = vpop.f32.mrb[0].mxu0
      %v2456 = vadd.f32 0.0, %v2455
      %2457 = vmatprep.mubr.bf16.mxu0 0
      %2458 = vmatmul.mubr.bf16.gmra.mrb[0].mxu0 %v1208
      %v2459 = vpop.f32.mrb[0].mxu0
      %v2460 = vadd.f32 0.0, %v2459
      %v2461 = vpop.f32.mrb[0].mxu0
      %v2462 = vadd.f32 0.0, %v2461
      %v2463 = vpop.f32.mrb[0].mxu0
      %v2464 = vadd.f32 0.0, %v2463
      %v2465 = vpop.f32.mrb[0].mxu0
      %v2466 = vadd.f32 0.0, %v2465
      %2467 = vmatprep.mubr.bf16.mxu0 0
      %2468 = vmatmul.mubr.bf16.gmra.mrb[0].mxu0 %v1209
      %v2469 = vpop.f32.mrb[0].mxu0
      %v2470 = vadd.f32 0.0, %v2469
      %v2471 = vpop.f32.mrb[0].mxu0
      %v2472 = vadd.f32 0.0, %v2471
      %v2473 = vpop.f32.mrb[0].mxu0
      %v2474 = vadd.f32 0.0, %v2473
      %v2475 = vpop.f32.mrb[0].mxu0
      %v2476 = vadd.f32 0.0, %v2475
      %2477 = vdwg.mxu0
      %2478 = vmatprep.subr.bf16.mxu0 0
      %2479 = vmatpush1.bf16.msra.mxu0 %v1522
      %2480 = vmatprep.subr.bf16.mxu0 0
      %2481 = vmatpush1.bf16.msra.mxu0 %v1531
      %2482 = vmatprep.subr.bf16.mxu0 0
      %2483 = vmatpush1.bf16.msra.mxu0 %v1540
      %2484 = vmatprep.subr.bf16.mxu0 0
      %2485 = vmatpush1.bf16.msra.mxu0 %v1549
      %2486 = vmatprep.subr.bf16.mxu0 0
      %2487 = vmatpush1.bf16.msra.mxu0 %v1558
      %2488 = vmatprep.subr.bf16.mxu0 0
      %2489 = vmatpush1.bf16.msra.mxu0 %v1567
      %2490 = vmatprep.subr.bf16.mxu0 0
      %2491 = vmatpush1.bf16.msra.mxu0 %v1576
      %2492 = vmatprep.subr.bf16.mxu0 0
      %2493 = vmatpush1.bf16.msra.mxu0 %v1585
      %2494 = vmatprep.subr.bf16.mxu0 0
      %2495 = vmatpush1.bf16.msra.mxu0 0
      %2496 = vmatprep.subr.bf16.mxu0 0
      %2497 = vmatpush1.bf16.msra.mxu0 0
      %2498 = vmatprep.subr.bf16.mxu0 0
      %2499 = vmatpush1.bf16.msra.mxu0 0
      %2500 = vmatprep.subr.bf16.mxu0 0
      %2501 = vmatpush1.bf16.msra.mxu0 0
      %2502 = vmatprep.subr.bf16.mxu0 0
      %2503 = vmatpush1.bf16.msra.mxu0 0
      %2504 = vmatprep.subr.bf16.mxu0 0
      %2505 = vmatpush1.bf16.msra.mxu0 0
      %2506 = vmatprep.subr.bf16.mxu0 0
      %2507 = vmatpush1.bf16.msra.mxu0 0
      %2508 = vmatprep.subr.bf16.mxu0 0
      %2509 = vmatpush1.bf16.msra.mxu0 0
      %2510 = vmatprep.mubr.bf16.mxu0 0
      %2511 = vmatmul.mubr.bf16.gmra.mrb[0].mxu0 %v1192
      %v2512 = vpop.f32.mrb[0].mxu0
      %v2513 = vpop.f32.mrb[0].mxu0
      %v2514 = vpop.f32.mrb[0].mxu0
      %v2515 = vpop.f32.mrb[0].mxu0
      %2516 = vmatprep.mubr.bf16.mxu0 0
      %2517 = vmatmul.mubr.bf16.gmra.mrb[0].mxu0 %v1193
      %v2518 = vpop.f32.mrb[0].mxu0
      %v2519 = vpop.f32.mrb[0].mxu0
      %v2520 = vpop.f32.mrb[0].mxu0
      %v2521 = vpop.f32.mrb[0].mxu0
      %2522 = vmatprep.mubr.bf16.mxu0 0
      %2523 = vmatmul.mubr.bf16.gmra.mrb[0].mxu0 %v1194
      %v2524 = vpop.f32.mrb[0].mxu0
      %v2525 = vadd.f32 0.0, %v2524
      %v2526 = vpop.f32.mrb[0].mxu0
      %v2527 = vpop.f32.mrb[0].mxu0
      %v2528 = vadd.f32 0.0, %v2527
      %v2529 = vpop.f32.mrb[0].mxu0
      %2530 = vmatprep.mubr.bf16.mxu0 0
      %2531 = vmatmul.mubr.bf16.gmra.mrb[0].mxu0 %v1195
      %v2532 = vpop.f32.mrb[0].mxu0
      %v2533 = vadd.f32 0.0, %v2532
      %v2534 = vpop.f32.mrb[0].mxu0
      %v2535 = vpop.f32.mrb[0].mxu0
      %v2536 = vadd.f32 0.0, %v2535
      %v2537 = vpop.f32.mrb[0].mxu0
      %2538 = vmatprep.mubr.bf16.mxu0 0
      %2539 = vmatmul.mubr.bf16.gmra.mrb[0].mxu0 %v1196
      %v2540 = vpop.f32.mrb[0].mxu0
      %v2541 = vadd.f32 0.0, %v2540
      %v2542 = vpop.f32.mrb[0].mxu0
      %v2543 = vpop.f32.mrb[0].mxu0
      %v2544 = vadd.f32 0.0, %v2543
      %v2545 = vpop.f32.mrb[0].mxu0
      %2546 = vmatprep.mubr.bf16.mxu0 0
      %2547 = vmatmul.mubr.bf16.gmra.mrb[0].mxu0 %v1197
      %v2548 = vpop.f32.mrb[0].mxu0
      %v2549 = vadd.f32 0.0, %v2548
      %v2550 = vpop.f32.mrb[0].mxu0
      %v2551 = vpop.f32.mrb[0].mxu0
      %v2552 = vadd.f32 0.0, %v2551
      %v2553 = vpop.f32.mrb[0].mxu0
      %2554 = vmatprep.mubr.bf16.mxu0 0
      %2555 = vmatmul.mubr.bf16.gmra.mrb[0].mxu0 %v1198
      %v2556 = vpop.f32.mrb[0].mxu0
      %v2557 = vadd.f32 0.0, %v2556
      %v2558 = vpop.f32.mrb[0].mxu0
      %v2559 = vpop.f32.mrb[0].mxu0
      %v2560 = vadd.f32 0.0, %v2559
      %v2561 = vpop.f32.mrb[0].mxu0
      %2562 = vmatprep.mubr.bf16.mxu0 0
      %2563 = vmatmul.mubr.bf16.gmra.mrb[0].mxu0 %v1199
      %v2564 = vpop.f32.mrb[0].mxu0
      %v2565 = vadd.f32 0.0, %v2564
      %v2566 = vpop.f32.mrb[0].mxu0
      %v2567 = vpop.f32.mrb[0].mxu0
      %v2568 = vadd.f32 0.0, %v2567
      %v2569 = vpop.f32.mrb[0].mxu0
      %2570 = vmatprep.mubr.bf16.mxu0 0
      %2571 = vmatmul.mubr.bf16.gmra.mrb[0].mxu0 %v1200
      %v2572 = vpop.f32.mrb[0].mxu0
      %v2573 = vadd.f32 0.0, %v2572
      %v2574 = vpop.f32.mrb[0].mxu0
      %v2575 = vpop.f32.mrb[0].mxu0
      %v2576 = vadd.f32 0.0, %v2575
      %v2577 = vpop.f32.mrb[0].mxu0
      %2578 = vmatprep.mubr.bf16.mxu0 0
      %2579 = vmatmul.mubr.bf16.gmra.mrb[0].mxu0 %v1201
      %v2580 = vpop.f32.mrb[0].mxu0
      %v2581 = vadd.f32 0.0, %v2580
      %v2582 = vpop.f32.mrb[0].mxu0
      %v2583 = vpop.f32.mrb[0].mxu0
      %v2584 = vadd.f32 0.0, %v2583
      %v2585 = vpop.f32.mrb[0].mxu0
      %2586 = vmatprep.mubr.bf16.mxu0 0
      %2587 = vmatmul.mubr.bf16.gmra.mrb[0].mxu0 %v1202
      %v2588 = vpop.f32.mrb[0].mxu0
      %v2589 = vadd.f32 0.0, %v2588
      %v2590 = vpop.f32.mrb[0].mxu0
      %v2591 = vpop.f32.mrb[0].mxu0
      %v2592 = vadd.f32 0.0, %v2591
      %v2593 = vpop.f32.mrb[0].mxu0
      %2594 = vmatprep.mubr.bf16.mxu0 0
      %2595 = vmatmul.mubr.bf16.gmra.mrb[0].mxu0 %v1203
      %v2596 = vpop.f32.mrb[0].mxu0
      %v2597 = vadd.f32 0.0, %v2596
      %v2598 = vpop.f32.mrb[0].mxu0
      %v2599 = vpop.f32.mrb[0].mxu0
      %v2600 = vadd.f32 0.0, %v2599
      %v2601 = vpop.f32.mrb[0].mxu0
      %2602 = vmatprep.mubr.bf16.mxu0 0
      %2603 = vmatmul.mubr.bf16.gmra.mrb[0].mxu0 %v1204
      %v2604 = vpop.f32.mrb[0].mxu0
      %v2605 = vadd.f32 0.0, %v2604
      %v2606 = vpop.f32.mrb[0].mxu0
      %v2607 = vpop.f32.mrb[0].mxu0
      %v2608 = vadd.f32 0.0, %v2607
      %v2609 = vpop.f32.mrb[0].mxu0
      %2610 = vmatprep.mubr.bf16.mxu0 0
      %2611 = vmatmul.mubr.bf16.gmra.mrb[0].mxu0 %v1205
      %v2612 = vpop.f32.mrb[0].mxu0
      %v2613 = vadd.f32 0.0, %v2612
      %v2614 = vpop.f32.mrb[0].mxu0
      %v2615 = vpop.f32.mrb[0].mxu0
      %v2616 = vadd.f32 0.0, %v2615
      %v2617 = vpop.f32.mrb[0].mxu0
      %2618 = vmatprep.mubr.bf16.mxu0 0
      %2619 = vmatmul.mubr.bf16.gmra.mrb[0].mxu0 %v1206
      %v2620 = vpop.f32.mrb[0].mxu0
      %v2621 = vadd.f32 0.0, %v2620
      %v2622 = vpop.f32.mrb[0].mxu0
      %v2623 = vpop.f32.mrb[0].mxu0
      %v2624 = vadd.f32 0.0, %v2623
      %v2625 = vpop.f32.mrb[0].mxu0
      %2626 = vmatprep.mubr.bf16.mxu0 0
      %2627 = vmatmul.mubr.bf16.gmra.mrb[0].mxu0 %v1207
      %v2628 = vpop.f32.mrb[0].mxu0
      %v2629 = vadd.f32 0.0, %v2628
      %v2630 = vpop.f32.mrb[0].mxu0
      %v2631 = vpop.f32.mrb[0].mxu0
      %v2632 = vadd.f32 0.0, %v2631
      %v2633 = vpop.f32.mrb[0].mxu0
      %2634 = vmatprep.mubr.bf16.mxu0 0
      %2635 = vmatmul.mubr.bf16.gmra.mrb[0].mxu0 %v1208
      %v2636 = vpop.f32.mrb[0].mxu0
      %v2637 = vadd.f32 0.0, %v2636
      %v2638 = vpop.f32.mrb[0].mxu0
      %v2639 = vpop.f32.mrb[0].mxu0
      %v2640 = vadd.f32 0.0, %v2639
      %v2641 = vpop.f32.mrb[0].mxu0
      %2642 = vmatprep.mubr.bf16.mxu0 0
      %2643 = vmatmul.mubr.bf16.gmra.mrb[0].mxu0 %v1209
      %v2644 = vpop.f32.mrb[0].mxu0
      %v2645 = vadd.f32 0.0, %v2644
      %v2646 = vpop.f32.mrb[0].mxu0
      %v2647 = vpop.f32.mrb[0].mxu0
      %v2648 = vadd.f32 0.0, %v2647
      %v2649 = vpop.f32.mrb[0].mxu0
      %2650 = vdwg.mxu0
      %v2651 = vadd.f32 %v1693, 0.0
      %v2652 = vadd.f32 %v1697, 0.0
      %v2653 = vadd.f32 %v1703, 0.0
      %v2654 = vadd.f32 %v1707, 0.0
      %v2655 = vadd.f32 %v1713, 0.0
      %v2656 = vadd.f32 %v1717, 0.0
      %v2657 = vadd.f32 %v1723, 0.0
      %v2658 = vadd.f32 %v1727, 0.0
      %v2659 = vadd.f32 %v1733, 0.0
      %v2660 = vadd.f32 %v1737, 0.0
      %v2661 = vadd.f32 %v1743, 0.0
      %v2662 = vadd.f32 %v1747, 0.0
      %v2663 = vadd.f32 %v1753, 0.0
      %v2664 = vadd.f32 %v1757, 0.0
      %v2665 = vadd.f32 %v1763, 0.0
      %v2666 = vadd.f32 %v1767, 0.0
      %v2667 = vadd.f32 %v1773, 0.0
      %v2668 = vadd.f32 %v1777, 0.0
      %v2669 = vadd.f32 %v1783, 0.0
      %v2670 = vadd.f32 %v1787, 0.0
      %v2671 = vadd.f32 %v1793, 0.0
      %v2672 = vadd.f32 %v1797, 0.0
      %v2673 = vadd.f32 %v1803, 0.0
      %v2674 = vadd.f32 %v1807, 0.0
      %v2675 = vadd.f32 %v1813, 0.0
      %v2676 = vadd.f32 %v1817, 0.0
      %v2677 = vadd.f32 %v1823, 0.0
      %v2678 = vadd.f32 %v1827, 0.0
      %v2679 = vadd.f32 %v1833, 0.0
      %v2680 = vadd.f32 %v1837, 0.0
      %v2681 = vadd.f32 %v1843, 0.0
      %v2682 = vadd.f32 %v1847, 0.0
      %v2683 = vadd.f32 %v1695, 0.0
      %v2684 = vadd.f32 %v1699, 0.0
      %v2685 = vadd.f32 %v1705, 0.0
      %v2686 = vadd.f32 %v1709, 0.0
      %v2687 = vadd.f32 %v1715, 0.0
      %v2688 = vadd.f32 %v1719, 0.0
      %v2689 = vadd.f32 %v1725, 0.0
      %v2690 = vadd.f32 %v1729, 0.0
      %v2691 = vadd.f32 %v1735, 0.0
      %v2692 = vadd.f32 %v1739, 0.0
      %v2693 = vadd.f32 %v1745, 0.0
      %v2694 = vadd.f32 %v1749, 0.0
      %v2695 = vadd.f32 %v1755, 0.0
      %v2696 = vadd.f32 %v1759, 0.0
      %v2697 = vadd.f32 %v1765, 0.0
      %v2698 = vadd.f32 %v1769, 0.0
      %v2699 = vadd.f32 %v1775, 0.0
      %v2700 = vadd.f32 %v1779, 0.0
      %v2701 = vadd.f32 %v1785, 0.0
      %v2702 = vadd.f32 %v1789, 0.0
      %v2703 = vadd.f32 %v1795, 0.0
      %v2704 = vadd.f32 %v1799, 0.0
      %v2705 = vadd.f32 %v1805, 0.0
      %v2706 = vadd.f32 %v1809, 0.0
      %v2707 = vadd.f32 %v1815, 0.0
      %v2708 = vadd.f32 %v1819, 0.0
      %v2709 = vadd.f32 %v1825, 0.0
      %v2710 = vadd.f32 %v1829, 0.0
      %v2711 = vadd.f32 %v1835, 0.0
      %v2712 = vadd.f32 %v1839, 0.0
      %v2713 = vadd.f32 %v1845, 0.0
      %v2714 = vadd.f32 %v1849, 0.0
      %v2715 = vadd.f32 %v1898, 0.0
      %v2716 = vadd.f32 %v1901, 0.0
      %v2717 = vadd.f32 %v1906, 0.0
      %v2718 = vadd.f32 %v1910, 0.0
      %v2719 = vadd.f32 %v1916, 0.0
      %v2720 = vadd.f32 %v1920, 0.0
      %v2721 = vadd.f32 %v1926, 0.0
      %v2722 = vadd.f32 %v1930, 0.0
      %v2723 = vadd.f32 %v1936, 0.0
      %v2724 = vadd.f32 %v1940, 0.0
      %v2725 = vadd.f32 %v1946, 0.0
      %v2726 = vadd.f32 %v1950, 0.0
      %v2727 = vadd.f32 %v1956, 0.0
      %v2728 = vadd.f32 %v1960, 0.0
      %v2729 = vadd.f32 %v1966, 0.0
      %v2730 = vadd.f32 %v1970, 0.0
      %v2731 = vadd.f32 %v1976, 0.0
      %v2732 = vadd.f32 %v1980, 0.0
      %v2733 = vadd.f32 %v1986, 0.0
      %v2734 = vadd.f32 %v1990, 0.0
      %v2735 = vadd.f32 %v1996, 0.0
      %v2736 = vadd.f32 %v2000, 0.0
      %v2737 = vadd.f32 %v2006, 0.0
      %v2738 = vadd.f32 %v2010, 0.0
      %v2739 = vadd.f32 %v2016, 0.0
      %v2740 = vadd.f32 %v2020, 0.0
      %v2741 = vadd.f32 %v2026, 0.0
      %v2742 = vadd.f32 %v2030, 0.0
      %v2743 = vadd.f32 %v2036, 0.0
      %v2744 = vadd.f32 %v2040, 0.0
      %v2745 = vadd.f32 %v2046, 0.0
      %v2746 = vadd.f32 %v2050, 0.0
      %v2747 = vadd.f32 %v2651, %v1908
      %v2748 = vadd.f32 %v2652, %v1912
      %v2749 = vadd.f32 %v2653, %v1918
      %v2750 = vadd.f32 %v2654, %v1922
      %v2751 = vadd.f32 %v2655, %v1928
      %v2752 = vadd.f32 %v2656, %v1932
      %v2753 = vadd.f32 %v2657, %v1938
      %v2754 = vadd.f32 %v2658, %v1942
      %v2755 = vadd.f32 %v2659, %v1948
      %v2756 = vadd.f32 %v2660, %v1952
      %v2757 = vadd.f32 %v2661, %v1958
      %v2758 = vadd.f32 %v2662, %v1962
      %v2759 = vadd.f32 %v2663, %v1968
      %v2760 = vadd.f32 %v2664, %v1972
      %v2761 = vadd.f32 %v2665, %v1978
      %v2762 = vadd.f32 %v2666, %v1982
      %v2763 = vadd.f32 %v2667, %v1988
      %v2764 = vadd.f32 %v2668, %v1992
      %v2765 = vadd.f32 %v2669, %v1998
      %v2766 = vadd.f32 %v2670, %v2002
      %v2767 = vadd.f32 %v2671, %v2008
      %v2768 = vadd.f32 %v2672, %v2012
      %v2769 = vadd.f32 %v2673, %v2018
      %v2770 = vadd.f32 %v2674, %v2022
      %v2771 = vadd.f32 %v2675, %v2028
      %v2772 = vadd.f32 %v2676, %v2032
      %v2773 = vadd.f32 %v2677, %v2038
      %v2774 = vadd.f32 %v2678, %v2042
      %v2775 = vadd.f32 %v2679, %v2048
      %v2776 = vadd.f32 %v2680, %v2052
      %v2777 = vadd.f32 %v2681, %v2057
      %v2778 = vadd.f32 %v2682, %v2060
      %v2779 = vadd.f32 %v2683, %v2109
      %v2780 = vadd.f32 %v2684, %v2113
      %v2781 = vadd.f32 %v2685, %v2119
      %v2782 = vadd.f32 %v2686, %v2123
      %v2783 = vadd.f32 %v2687, %v2129
      %v2784 = vadd.f32 %v2688, %v2133
      %v2785 = vadd.f32 %v2689, %v2139
      %v2786 = vadd.f32 %v2690, %v2143
      %v2787 = vadd.f32 %v2691, %v2149
      %v2788 = vadd.f32 %v2692, %v2153
      %v2789 = vadd.f32 %v2693, %v2159
      %v2790 = vadd.f32 %v2694, %v2163
      %v2791 = vadd.f32 %v2695, %v2169
      %v2792 = vadd.f32 %v2696, %v2173
      %v2793 = vadd.f32 %v2697, %v2179
      %v2794 = vadd.f32 %v2698, %v2183
      %v2795 = vadd.f32 %v2699, %v2189
      %v2796 = vadd.f32 %v2700, %v2193
      %v2797 = vadd.f32 %v2701, %v2199
      %v2798 = vadd.f32 %v2702, %v2203
      %v2799 = vadd.f32 %v2703, %v2209
      %v2800 = vadd.f32 %v2704, %v2213
      %v2801 = vadd.f32 %v2705, %v2219
      %v2802 = vadd.f32 %v2706, %v2223
      %v2803 = vadd.f32 %v2707, %v2229
      %v2804 = vadd.f32 %v2708, %v2233
      %v2805 = vadd.f32 %v2709, %v2239
      %v2806 = vadd.f32 %v2710, %v2243
      %v2807 = vadd.f32 %v2711, %v2249
      %v2808 = vadd.f32 %v2712, %v2253
      %v2809 = vadd.f32 %v2713, %v2259
      %v2810 = vadd.f32 %v2714, %v2263
      %v2811 = vadd.f32 %v2715, %v2111
      %v2812 = vadd.f32 %v2716, %v2115
      %v2813 = vadd.f32 %v2717, %v2121
      %v2814 = vadd.f32 %v2718, %v2125
      %v2815 = vadd.f32 %v2719, %v2131
      %v2816 = vadd.f32 %v2720, %v2135
      %v2817 = vadd.f32 %v2721, %v2141
      %v2818 = vadd.f32 %v2722, %v2145
      %v2819 = vadd.f32 %v2723, %v2151
      %v2820 = vadd.f32 %v2724, %v2155
      %v2821 = vadd.f32 %v2725, %v2161
      %v2822 = vadd.f32 %v2726, %v2165
      %v2823 = vadd.f32 %v2727, %v2171
      %v2824 = vadd.f32 %v2728, %v2175
      %v2825 = vadd.f32 %v2729, %v2181
      %v2826 = vadd.f32 %v2730, %v2185
      %v2827 = vadd.f32 %v2731, %v2191
      %v2828 = vadd.f32 %v2732, %v2195
      %v2829 = vadd.f32 %v2733, %v2201
      %v2830 = vadd.f32 %v2734, %v2205
      %v2831 = vadd.f32 %v2735, %v2211
      %v2832 = vadd.f32 %v2736, %v2215
      %v2833 = vadd.f32 %v2737, %v2221
      %v2834 = vadd.f32 %v2738, %v2225
      %v2835 = vadd.f32 %v2739, %v2231
      %v2836 = vadd.f32 %v2740, %v2235
      %v2837 = vadd.f32 %v2741, %v2241
      %v2838 = vadd.f32 %v2742, %v2245
      %v2839 = vadd.f32 %v2743, %v2251
      %v2840 = vadd.f32 %v2744, %v2255
      %v2841 = vadd.f32 %v2745, %v2261
      %v2842 = vadd.f32 %v2746, %v2265
      %v2843 = vadd.f32 %v2747, %v2320
      %v2844 = vadd.f32 %v2748, %v2324
      %v2845 = vadd.f32 %v2749, %v2330
      %v2846 = vadd.f32 %v2750, %v2334
      %v2847 = vadd.f32 %v2751, %v2340
      %v2848 = vadd.f32 %v2752, %v2344
      %v2849 = vadd.f32 %v2753, %v2350
      %v2850 = vadd.f32 %v2754, %v2354
      %v2851 = vadd.f32 %v2755, %v2360
      %v2852 = vadd.f32 %v2756, %v2364
      %v2853 = vadd.f32 %v2757, %v2370
      %v2854 = vadd.f32 %v2758, %v2374
      %v2855 = vadd.f32 %v2759, %v2380
      %v2856 = vadd.f32 %v2760, %v2384
      %v2857 = vadd.f32 %v2761, %v2390
      %v2858 = vadd.f32 %v2762, %v2394
      %v2859 = vadd.f32 %v2763, %v2400
      %v2860 = vadd.f32 %v2764, %v2404
      %v2861 = vadd.f32 %v2765, %v2410
      %v2862 = vadd.f32 %v2766, %v2414
      %v2863 = vadd.f32 %v2767, %v2420
      %v2864 = vadd.f32 %v2768, %v2424
      %v2865 = vadd.f32 %v2769, %v2430
      %v2866 = vadd.f32 %v2770, %v2434
      %v2867 = vadd.f32 %v2771, %v2440
      %v2868 = vadd.f32 %v2772, %v2444
      %v2869 = vadd.f32 %v2773, %v2450
      %v2870 = vadd.f32 %v2774, %v2454
      %v2871 = vadd.f32 %v2775, %v2460
      %v2872 = vadd.f32 %v2776, %v2464
      %v2873 = vadd.f32 %v2777, %v2470
      %v2874 = vadd.f32 %v2778, %v2474
      %v2875 = vadd.f32 %v2779, %v2322
      %v2876 = vadd.f32 %v2780, %v2326
      %v2877 = vadd.f32 %v2781, %v2332
      %v2878 = vadd.f32 %v2782, %v2336
      %v2879 = vadd.f32 %v2783, %v2342
      %v2880 = vadd.f32 %v2784, %v2346
      %v2881 = vadd.f32 %v2785, %v2352
      %v2882 = vadd.f32 %v2786, %v2356
      %v2883 = vadd.f32 %v2787, %v2362
      %v2884 = vadd.f32 %v2788, %v2366
      %v2885 = vadd.f32 %v2789, %v2372
      %v2886 = vadd.f32 %v2790, %v2376
      %v2887 = vadd.f32 %v2791, %v2382
      %v2888 = vadd.f32 %v2792, %v2386
      %v2889 = vadd.f32 %v2793, %v2392
      %v2890 = vadd.f32 %v2794, %v2396
      %v2891 = vadd.f32 %v2795, %v2402
      %v2892 = vadd.f32 %v2796, %v2406
      %v2893 = vadd.f32 %v2797, %v2412
      %v2894 = vadd.f32 %v2798, %v2416
      %v2895 = vadd.f32 %v2799, %v2422
      %v2896 = vadd.f32 %v2800, %v2426
      %v2897 = vadd.f32 %v2801, %v2432
      %v2898 = vadd.f32 %v2802, %v2436
      %v2899 = vadd.f32 %v2803, %v2442
      %v2900 = vadd.f32 %v2804, %v2446
      %v2901 = vadd.f32 %v2805, %v2452
      %v2902 = vadd.f32 %v2806, %v2456
      %v2903 = vadd.f32 %v2807, %v2462
      %v2904 = vadd.f32 %v2808, %v2466
      %v2905 = vadd.f32 %v2809, %v2472
      %v2906 = vadd.f32 %v2810, %v2476
      %v2907 = vadd.f32 %v2811, %v2525
      %v2908 = vadd.f32 %v2812, %v2528
      %v2909 = vadd.f32 %v2813, %v2533
      %v2910 = vadd.f32 %v2814, %v2536
      %v2911 = vadd.f32 %v2815, %v2541
      %v2912 = vadd.f32 %v2816, %v2544
      %v2913 = vadd.f32 %v2817, %v2549
      %v2914 = vadd.f32 %v2818, %v2552
      %v2915 = vadd.f32 %v2819, %v2557
      %v2916 = vadd.f32 %v2820, %v2560
      %v2917 = vadd.f32 %v2821, %v2565
      %v2918 = vadd.f32 %v2822, %v2568
      %v2919 = vadd.f32 %v2823, %v2573
      %v2920 = vadd.f32 %v2824, %v2576
      %v2921 = vadd.f32 %v2825, %v2581
      %v2922 = vadd.f32 %v2826, %v2584
      %v2923 = vadd.f32 %v2827, %v2589
      %v2924 = vadd.f32 %v2828, %v2592
      %v2925 = vadd.f32 %v2829, %v2597
      %v2926 = vadd.f32 %v2830, %v2600
      %v2927 = vadd.f32 %v2831, %v2605
      %v2928 = vadd.f32 %v2832, %v2608
      %v2929 = vadd.f32 %v2833, %v2613
      %v2930 = vadd.f32 %v2834, %v2616
      %v2931 = vadd.f32 %v2835, %v2621
      %v2932 = vadd.f32 %v2836, %v2624
      %v2933 = vadd.f32 %v2837, %v2629
      %v2934 = vadd.f32 %v2838, %v2632
      %v2935 = vadd.f32 %v2839, %v2637
      %v2936 = vadd.f32 %v2840, %v2640
      %v2937 = vadd.f32 %v2841, %v2645
      %v2938 = vadd.f32 %v2842, %v2648
      %v2939 = vlaneseq
      %v2940 = vshrl.u32 %v2939, 7
      %v2941 = vadd.s32 %v2940, 8
      %v2942 = vadd.s32 %v2940, 16
      %v2943 = vadd.s32 %v2940, 24
      %v2944 = vadd.s32 %v2940, 32
      %v2945 = vadd.s32 %v2940, 40
      %v2946 = vadd.s32 %v2940, 48
      %v2947 = vadd.s32 %v2940, 56
      %v2948 = vadd.s32 %v2940, 64
      %v2949 = vadd.s32 %v2940, 72
      %v2950 = vadd.s32 %v2940, 80
      %v2951 = vadd.s32 %v2940, 88
      %v2952 = vadd.s32 %v2940, 96
      %v2953 = vadd.s32 %v2940, 104
      %v2954 = vadd.s32 %v2940, 112
      %v2955 = vadd.s32 %v2940, 120
      %v2956 = vadd.s32 %v2940, 128
      %v2957 = vadd.s32 %v2940, 136
      %v2958 = vadd.s32 %v2940, 144
      %v2959 = vadd.s32 %v2940, 152
      %v2960 = vadd.s32 %v2940, 160
      %v2961 = vadd.s32 %v2940, 168
      %v2962 = vadd.s32 %v2940, 176
      %v2963 = vadd.s32 %v2940, 184
      %v2964 = vadd.s32 %v2940, 192
      %v2965 = vadd.s32 %v2940, 200
      %v2966 = vadd.s32 %v2940, 208
      %v2967 = vadd.s32 %v2940, 216
      %v2968 = vadd.s32 %v2940, 224
      %v2969 = vadd.s32 %v2940, 232
      %v2970 = vadd.s32 %v2940, 240
      %v2971 = vadd.s32 %v2940, 248
      %vm2972 = vcmp.lt.s32.totalorder %v2940, 0
      %v2973 = vsub.s32 0, %v2940
      %v2974 = vsel %vm2972, %v2973, %v2940
      %v2975 = vshrl.u32 %v2974, 4
      %v2976 = vand.u32 %v2974, 15
      %v2977 = vsub.s32 0, %v2976
      %v2978 = vsel %vm2972, %v2977, %v2976
      %vm2979 = vcmp.lt.s32.totalorder %v2941, 0
      %v2980 = vsub.s32 0, %v2941
      %v2981 = vsel %vm2979, %v2980, %v2941
      %v2982 = vshrl.u32 %v2981, 4
      %v2983 = vand.u32 %v2981, 15
      %v2984 = vsub.s32 0, %v2983
      %v2985 = vsel %vm2979, %v2984, %v2983
      %vm2986 = vcmp.lt.s32.totalorder %v2942, 0
      %v2987 = vsub.s32 0, %v2942
      %v2988 = vsel %vm2986, %v2987, %v2942
      %v2989 = vshrl.u32 %v2988, 4
      %v2990 = vand.u32 %v2988, 15
      %v2991 = vsub.s32 0, %v2990
      %v2992 = vsel %vm2986, %v2991, %v2990
      %vm2993 = vcmp.lt.s32.totalorder %v2943, 0
      %v2994 = vsub.s32 0, %v2943
      %v2995 = vsel %vm2993, %v2994, %v2943
      %v2996 = vshrl.u32 %v2995, 4
      %v2997 = vand.u32 %v2995, 15
      %v2998 = vsub.s32 0, %v2997
      %v2999 = vsel %vm2993, %v2998, %v2997
      %vm3000 = vcmp.lt.s32.totalorder %v2944, 0
      %v3001 = vsub.s32 0, %v2944
      %v3002 = vsel %vm3000, %v3001, %v2944
      %v3003 = vshrl.u32 %v3002, 4
      %v3004 = vand.u32 %v3002, 15
      %v3005 = vsub.s32 0, %v3004
      %v3006 = vsel %vm3000, %v3005, %v3004
      %vm3007 = vcmp.lt.s32.totalorder %v2945, 0
      %v3008 = vsub.s32 0, %v2945
      %v3009 = vsel %vm3007, %v3008, %v2945
      %v3010 = vshrl.u32 %v3009, 4
      %v3011 = vand.u32 %v3009, 15
      %v3012 = vsub.s32 0, %v3011
      %v3013 = vsel %vm3007, %v3012, %v3011
      %vm3014 = vcmp.lt.s32.totalorder %v2946, 0
      %v3015 = vsub.s32 0, %v2946
      %v3016 = vsel %vm3014, %v3015, %v2946
      %v3017 = vshrl.u32 %v3016, 4
      %v3018 = vand.u32 %v3016, 15
      %v3019 = vsub.s32 0, %v3018
      %v3020 = vsel %vm3014, %v3019, %v3018
      %vm3021 = vcmp.lt.s32.totalorder %v2947, 0
      %v3022 = vsub.s32 0, %v2947
      %v3023 = vsel %vm3021, %v3022, %v2947
      %v3024 = vshrl.u32 %v3023, 4
      %v3025 = vand.u32 %v3023, 15
      %v3026 = vsub.s32 0, %v3025
      %v3027 = vsel %vm3021, %v3026, %v3025
      %vm3028 = vcmp.lt.s32.totalorder %v2948, 0
      %v3029 = vsub.s32 0, %v2948
      %v3030 = vsel %vm3028, %v3029, %v2948
      %v3031 = vshrl.u32 %v3030, 4
      %v3032 = vand.u32 %v3030, 15
      %v3033 = vsub.s32 0, %v3032
      %v3034 = vsel %vm3028, %v3033, %v3032
      %vm3035 = vcmp.lt.s32.totalorder %v2949, 0
      %v3036 = vsub.s32 0, %v2949
      %v3037 = vsel %vm3035, %v3036, %v2949
      %v3038 = vshrl.u32 %v3037, 4
      %v3039 = vand.u32 %v3037, 15
      %v3040 = vsub.s32 0, %v3039
      %v3041 = vsel %vm3035, %v3040, %v3039
      %vm3042 = vcmp.lt.s32.totalorder %v2950, 0
      %v3043 = vsub.s32 0, %v2950
      %v3044 = vsel %vm3042, %v3043, %v2950
      %v3045 = vshrl.u32 %v3044, 4
      %v3046 = vand.u32 %v3044, 15
      %v3047 = vsub.s32 0, %v3046
      %v3048 = vsel %vm3042, %v3047, %v3046
      %vm3049 = vcmp.lt.s32.totalorder %v2951, 0
      %v3050 = vsub.s32 0, %v2951
      %v3051 = vsel %vm3049, %v3050, %v2951
      %v3052 = vshrl.u32 %v3051, 4
      %v3053 = vand.u32 %v3051, 15
      %v3054 = vsub.s32 0, %v3053
      %v3055 = vsel %vm3049, %v3054, %v3053
      %vm3056 = vcmp.lt.s32.totalorder %v2952, 0
      %v3057 = vsub.s32 0, %v2952
      %v3058 = vsel %vm3056, %v3057, %v2952
      %v3059 = vshrl.u32 %v3058, 4
      %v3060 = vand.u32 %v3058, 15
      %v3061 = vsub.s32 0, %v3060
      %v3062 = vsel %vm3056, %v3061, %v3060
      %vm3063 = vcmp.lt.s32.totalorder %v2953, 0
      %v3064 = vsub.s32 0, %v2953
      %v3065 = vsel %vm3063, %v3064, %v2953
      %v3066 = vshrl.u32 %v3065, 4
      %v3067 = vand.u32 %v3065, 15
      %v3068 = vsub.s32 0, %v3067
      %v3069 = vsel %vm3063, %v3068, %v3067
      %vm3070 = vcmp.lt.s32.totalorder %v2954, 0
      %v3071 = vsub.s32 0, %v2954
      %v3072 = vsel %vm3070, %v3071, %v2954
      %v3073 = vshrl.u32 %v3072, 4
      %v3074 = vand.u32 %v3072, 15
      %v3075 = vsub.s32 0, %v3074
      %v3076 = vsel %vm3070, %v3075, %v3074
      %vm3077 = vcmp.lt.s32.totalorder %v2955, 0
      %v3078 = vsub.s32 0, %v2955
      %v3079 = vsel %vm3077, %v3078, %v2955
      %v3080 = vshrl.u32 %v3079, 4
      %v3081 = vand.u32 %v3079, 15
      %v3082 = vsub.s32 0, %v3081
      %v3083 = vsel %vm3077, %v3082, %v3081
      %vm3084 = vcmp.lt.s32.totalorder %v2956, 0
      %v3085 = vsub.s32 0, %v2956
      %v3086 = vsel %vm3084, %v3085, %v2956
      %v3087 = vshrl.u32 %v3086, 4
      %v3088 = vand.u32 %v3086, 15
      %v3089 = vsub.s32 0, %v3088
      %v3090 = vsel %vm3084, %v3089, %v3088
      %vm3091 = vcmp.lt.s32.totalorder %v2957, 0
      %v3092 = vsub.s32 0, %v2957
      %v3093 = vsel %vm3091, %v3092, %v2957
      %v3094 = vshrl.u32 %v3093, 4
      %v3095 = vand.u32 %v3093, 15
      %v3096 = vsub.s32 0, %v3095
      %v3097 = vsel %vm3091, %v3096, %v3095
      %vm3098 = vcmp.lt.s32.totalorder %v2958, 0
      %v3099 = vsub.s32 0, %v2958
      %v3100 = vsel %vm3098, %v3099, %v2958
      %v3101 = vshrl.u32 %v3100, 4
      %v3102 = vand.u32 %v3100, 15
      %v3103 = vsub.s32 0, %v3102
      %v3104 = vsel %vm3098, %v3103, %v3102
      %vm3105 = vcmp.lt.s32.totalorder %v2959, 0
      %v3106 = vsub.s32 0, %v2959
      %v3107 = vsel %vm3105, %v3106, %v2959
      %v3108 = vshrl.u32 %v3107, 4
      %v3109 = vand.u32 %v3107, 15
      %v3110 = vsub.s32 0, %v3109
      %v3111 = vsel %vm3105, %v3110, %v3109
      %vm3112 = vcmp.lt.s32.totalorder %v2960, 0
      %v3113 = vsub.s32 0, %v2960
      %v3114 = vsel %vm3112, %v3113, %v2960
      %v3115 = vshrl.u32 %v3114, 4
      %v3116 = vand.u32 %v3114, 15
      %v3117 = vsub.s32 0, %v3116
      %v3118 = vsel %vm3112, %v3117, %v3116
      %vm3119 = vcmp.lt.s32.totalorder %v2961, 0
      %v3120 = vsub.s32 0, %v2961
      %v3121 = vsel %vm3119, %v3120, %v2961
      %v3122 = vshrl.u32 %v3121, 4
      %v3123 = vand.u32 %v3121, 15
      %v3124 = vsub.s32 0, %v3123
      %v3125 = vsel %vm3119, %v3124, %v3123
      %vm3126 = vcmp.lt.s32.totalorder %v2962, 0
      %v3127 = vsub.s32 0, %v2962
      %v3128 = vsel %vm3126, %v3127, %v2962
      %v3129 = vshrl.u32 %v3128, 4
      %v3130 = vand.u32 %v3128, 15
      %v3131 = vsub.s32 0, %v3130
      %v3132 = vsel %vm3126, %v3131, %v3130
      %vm3133 = vcmp.lt.s32.totalorder %v2963, 0
      %v3134 = vsub.s32 0, %v2963
      %v3135 = vsel %vm3133, %v3134, %v2963
      %v3136 = vshrl.u32 %v3135, 4
      %v3137 = vand.u32 %v3135, 15
      %v3138 = vsub.s32 0, %v3137
      %v3139 = vsel %vm3133, %v3138, %v3137
      %vm3140 = vcmp.lt.s32.totalorder %v2964, 0
      %v3141 = vsub.s32 0, %v2964
      %v3142 = vsel %vm3140, %v3141, %v2964
      %v3143 = vshrl.u32 %v3142, 4
      %v3144 = vand.u32 %v3142, 15
      %v3145 = vsub.s32 0, %v3144
      %v3146 = vsel %vm3140, %v3145, %v3144
      %vm3147 = vcmp.lt.s32.totalorder %v2965, 0
      %v3148 = vsub.s32 0, %v2965
      %v3149 = vsel %vm3147, %v3148, %v2965
      %v3150 = vshrl.u32 %v3149, 4
      %v3151 = vand.u32 %v3149, 15
      %v3152 = vsub.s32 0, %v3151
      %v3153 = vsel %vm3147, %v3152, %v3151
      %vm3154 = vcmp.lt.s32.totalorder %v2966, 0
      %v3155 = vsub.s32 0, %v2966
      %v3156 = vsel %vm3154, %v3155, %v2966
      %v3157 = vshrl.u32 %v3156, 4
      %v3158 = vand.u32 %v3156, 15
      %v3159 = vsub.s32 0, %v3158
      %v3160 = vsel %vm3154, %v3159, %v3158
      %vm3161 = vcmp.lt.s32.totalorder %v2967, 0
      %v3162 = vsub.s32 0, %v2967
      %v3163 = vsel %vm3161, %v3162, %v2967
      %v3164 = vshrl.u32 %v3163, 4
      %v3165 = vand.u32 %v3163, 15
      %v3166 = vsub.s32 0, %v3165
      %v3167 = vsel %vm3161, %v3166, %v3165
      %vm3168 = vcmp.lt.s32.totalorder %v2968, 0
      %v3169 = vsub.s32 0, %v2968
      %v3170 = vsel %vm3168, %v3169, %v2968
      %v3171 = vshrl.u32 %v3170, 4
      %v3172 = vand.u32 %v3170, 15
      %v3173 = vsub.s32 0, %v3172
      %v3174 = vsel %vm3168, %v3173, %v3172
      %vm3175 = vcmp.lt.s32.totalorder %v2969, 0
      %v3176 = vsub.s32 0, %v2969
      %v3177 = vsel %vm3175, %v3176, %v2969
      %v3178 = vshrl.u32 %v3177, 4
      %v3179 = vand.u32 %v3177, 15
      %v3180 = vsub.s32 0, %v3179
      %v3181 = vsel %vm3175, %v3180, %v3179
      %vm3182 = vcmp.lt.s32.totalorder %v2970, 0
      %v3183 = vsub.s32 0, %v2970
      %v3184 = vsel %vm3182, %v3183, %v2970
      %v3185 = vshrl.u32 %v3184, 4
      %v3186 = vand.u32 %v3184, 15
      %v3187 = vsub.s32 0, %v3186
      %v3188 = vsel %vm3182, %v3187, %v3186
      %vm3189 = vcmp.lt.s32.totalorder %v2971, 0
      %v3190 = vsub.s32 0, %v2971
      %v3191 = vsel %vm3189, %v3190, %v2971
      %v3192 = vshrl.u32 %v3191, 4
      %v3193 = vand.u32 %v3191, 15
      %v3194 = vsub.s32 0, %v3193
      %v3195 = vsel %vm3189, %v3194, %v3193
      %vm3196 = vcmp.ne.s32.totalorder %v2978, 0
      %vm3197 = vcmp.ne.s32.totalorder %v2985, 0
      %vm3198 = vcmp.ne.s32.totalorder %v2992, 0
      %vm3199 = vcmp.ne.s32.totalorder %v2999, 0
      %vm3200 = vcmp.ne.s32.totalorder %v3006, 0
      %vm3201 = vcmp.ne.s32.totalorder %v3013, 0
      %vm3202 = vcmp.ne.s32.totalorder %v3020, 0
      %vm3203 = vcmp.ne.s32.totalorder %v3027, 0
      %vm3204 = vcmp.ne.s32.totalorder %v3034, 0
      %vm3205 = vcmp.ne.s32.totalorder %v3041, 0
      %vm3206 = vcmp.ne.s32.totalorder %v3048, 0
      %vm3207 = vcmp.ne.s32.totalorder %v3055, 0
      %vm3208 = vcmp.ne.s32.totalorder %v3062, 0
      %vm3209 = vcmp.ne.s32.totalorder %v3069, 0
      %vm3210 = vcmp.ne.s32.totalorder %v3076, 0
      %vm3211 = vcmp.ne.s32.totalorder %v3083, 0
      %vm3212 = vcmp.ne.s32.totalorder %v3090, 0
      %vm3213 = vcmp.ne.s32.totalorder %v3097, 0
      %vm3214 = vcmp.ne.s32.totalorder %v3104, 0
      %vm3215 = vcmp.ne.s32.totalorder %v3111, 0
      %vm3216 = vcmp.ne.s32.totalorder %v3118, 0
      %vm3217 = vcmp.ne.s32.totalorder %v3125, 0
      %vm3218 = vcmp.ne.s32.totalorder %v3132, 0
      %vm3219 = vcmp.ne.s32.totalorder %v3139, 0
      %vm3220 = vcmp.ne.s32.totalorder %v3146, 0
      %vm3221 = vcmp.ne.s32.totalorder %v3153, 0
      %vm3222 = vcmp.ne.s32.totalorder %v3160, 0
      %vm3223 = vcmp.ne.s32.totalorder %v3167, 0
      %vm3224 = vcmp.ne.s32.totalorder %v3174, 0
      %vm3225 = vcmp.ne.s32.totalorder %v3181, 0
      %vm3226 = vcmp.ne.s32.totalorder %v3188, 0
      %vm3227 = vcmp.ne.s32.totalorder %v3195, 0
      %vm3228 = vcmp.lt.s32.totalorder %v2978, 0
      %vm3229 = vcmp.lt.s32.totalorder %v2985, 0
      %vm3230 = vcmp.lt.s32.totalorder %v2992, 0
      %vm3231 = vcmp.lt.s32.totalorder %v2999, 0
      %vm3232 = vcmp.lt.s32.totalorder %v3006, 0
      %vm3233 = vcmp.lt.s32.totalorder %v3013, 0
      %vm3234 = vcmp.lt.s32.totalorder %v3020, 0
      %vm3235 = vcmp.lt.s32.totalorder %v3027, 0
      %vm3236 = vcmp.lt.s32.totalorder %v3034, 0
      %vm3237 = vcmp.lt.s32.totalorder %v3041, 0
      %vm3238 = vcmp.lt.s32.totalorder %v3048, 0
      %vm3239 = vcmp.lt.s32.totalorder %v3055, 0
      %vm3240 = vcmp.lt.s32.totalorder %v3062, 0
      %vm3241 = vcmp.lt.s32.totalorder %v3069, 0
      %vm3242 = vcmp.lt.s32.totalorder %v3076, 0
      %vm3243 = vcmp.lt.s32.totalorder %v3083, 0
      %vm3244 = vcmp.lt.s32.totalorder %v3090, 0
      %vm3245 = vcmp.lt.s32.totalorder %v3097, 0
      %vm3246 = vcmp.lt.s32.totalorder %v3104, 0
      %vm3247 = vcmp.lt.s32.totalorder %v3111, 0
      %vm3248 = vcmp.lt.s32.totalorder %v3118, 0
      %vm3249 = vcmp.lt.s32.totalorder %v3125, 0
      %vm3250 = vcmp.lt.s32.totalorder %v3132, 0
      %vm3251 = vcmp.lt.s32.totalorder %v3139, 0
      %vm3252 = vcmp.lt.s32.totalorder %v3146, 0
      %vm3253 = vcmp.lt.s32.totalorder %v3153, 0
      %vm3254 = vcmp.lt.s32.totalorder %v3160, 0
      %vm3255 = vcmp.lt.s32.totalorder %v3167, 0
      %vm3256 = vcmp.lt.s32.totalorder %v3174, 0
      %vm3257 = vcmp.lt.s32.totalorder %v3181, 0
      %vm3258 = vcmp.lt.s32.totalorder %v3188, 0
      %vm3259 = vcmp.lt.s32.totalorder %v3195, 0
      %vm3260 = vmand %vm3228, %vm3196
      %vm3261 = vmand %vm3229, %vm3197
      %vm3262 = vmand %vm3230, %vm3198
      %vm3263 = vmand %vm3231, %vm3199
      %vm3264 = vmand %vm3232, %vm3200
      %vm3265 = vmand %vm3233, %vm3201
      %vm3266 = vmand %vm3234, %vm3202
      %vm3267 = vmand %vm3235, %vm3203
      %vm3268 = vmand %vm3236, %vm3204
      %vm3269 = vmand %vm3237, %vm3205
      %vm3270 = vmand %vm3238, %vm3206
      %vm3271 = vmand %vm3239, %vm3207
      %vm3272 = vmand %vm3240, %vm3208
      %vm3273 = vmand %vm3241, %vm3209
      %vm3274 = vmand %vm3242, %vm3210
      %vm3275 = vmand %vm3243, %vm3211
      %vm3276 = vmand %vm3244, %vm3212
      %vm3277 = vmand %vm3245, %vm3213
      %vm3278 = vmand %vm3246, %vm3214
      %vm3279 = vmand %vm3247, %vm3215
      %vm3280 = vmand %vm3248, %vm3216
      %vm3281 = vmand %vm3249, %vm3217
      %vm3282 = vmand %vm3250, %vm3218
      %vm3283 = vmand %vm3251, %vm3219
      %vm3284 = vmand %vm3252, %vm3220
      %vm3285 = vmand %vm3253, %vm3221
      %vm3286 = vmand %vm3254, %vm3222
      %vm3287 = vmand %vm3255, %vm3223
      %vm3288 = vmand %vm3256, %vm3224
      %vm3289 = vmand %vm3257, %vm3225
      %vm3290 = vmand %vm3258, %vm3226
      %vm3291 = vmand %vm3259, %vm3227
      %v3292 = vadd.s32 %v2978, 16
      %v3293 = vadd.s32 %v2985, 16
      %v3294 = vadd.s32 %v2992, 16
      %v3295 = vadd.s32 %v2999, 16
      %v3296 = vadd.s32 %v3006, 16
      %v3297 = vadd.s32 %v3013, 16
      %v3298 = vadd.s32 %v3020, 16
      %v3299 = vadd.s32 %v3027, 16
      %v3300 = vadd.s32 %v3034, 16
      %v3301 = vadd.s32 %v3041, 16
      %v3302 = vadd.s32 %v3048, 16
      %v3303 = vadd.s32 %v3055, 16
      %v3304 = vadd.s32 %v3062, 16
      %v3305 = vadd.s32 %v3069, 16
      %v3306 = vadd.s32 %v3076, 16
      %v3307 = vadd.s32 %v3083, 16
      %v3308 = vadd.s32 %v3090, 16
      %v3309 = vadd.s32 %v3097, 16
      %v3310 = vadd.s32 %v3104, 16
      %v3311 = vadd.s32 %v3111, 16
      %v3312 = vadd.s32 %v3118, 16
      %v3313 = vadd.s32 %v3125, 16
      %v3314 = vadd.s32 %v3132, 16
      %v3315 = vadd.s32 %v3139, 16
      %v3316 = vadd.s32 %v3146, 16
      %v3317 = vadd.s32 %v3153, 16
      %v3318 = vadd.s32 %v3160, 16
      %v3319 = vadd.s32 %v3167, 16
      %v3320 = vadd.s32 %v3174, 16
      %v3321 = vadd.s32 %v3181, 16
      %v3322 = vadd.s32 %v3188, 16
      %v3323 = vadd.s32 %v3195, 16
      %v3324 = vsel %vm3260, %v3292, %v2978
      %v3325 = vsel %vm3261, %v3293, %v2985
      %v3326 = vsel %vm3262, %v3294, %v2992
      %v3327 = vsel %vm3263, %v3295, %v2999
      %v3328 = vsel %vm3264, %v3296, %v3006
      %v3329 = vsel %vm3265, %v3297, %v3013
      %v3330 = vsel %vm3266, %v3298, %v3020
      %v3331 = vsel %vm3267, %v3299, %v3027
      %v3332 = vsel %vm3268, %v3300, %v3034
      %v3333 = vsel %vm3269, %v3301, %v3041
      %v3334 = vsel %vm3270, %v3302, %v3048
      %v3335 = vsel %vm3271, %v3303, %v3055
      %v3336 = vsel %vm3272, %v3304, %v3062
      %v3337 = vsel %vm3273, %v3305, %v3069
      %v3338 = vsel %vm3274, %v3306, %v3076
      %v3339 = vsel %vm3275, %v3307, %v3083
      %v3340 = vsel %vm3276, %v3308, %v3090
      %v3341 = vsel %vm3277, %v3309, %v3097
      %v3342 = vsel %vm3278, %v3310, %v3104
      %v3343 = vsel %vm3279, %v3311, %v3111
      %v3344 = vsel %vm3280, %v3312, %v3118
      %v3345 = vsel %vm3281, %v3313, %v3125
      %v3346 = vsel %vm3282, %v3314, %v3132
      %v3347 = vsel %vm3283, %v3315, %v3139
      %v3348 = vsel %vm3284, %v3316, %v3146
      %v3349 = vsel %vm3285, %v3317, %v3153
      %v3350 = vsel %vm3286, %v3318, %v3160
      %v3351 = vsel %vm3287, %v3319, %v3167
      %v3352 = vsel %vm3288, %v3320, %v3174
      %v3353 = vsel %vm3289, %v3321, %v3181
      %v3354 = vsel %vm3290, %v3322, %v3188
      %v3355 = vsel %vm3291, %v3323, %v3195
      %vm3356 = vcmp.gt.s32.totalorder %v3324, 0
      %vm3357 = vcmp.gt.s32.totalorder %v3325, 0
      %vm3358 = vcmp.gt.s32.totalorder %v3326, 0
      %vm3359 = vcmp.gt.s32.totalorder %v3327, 0
      %vm3360 = vcmp.gt.s32.totalorder %v3328, 0
      %vm3361 = vcmp.gt.s32.totalorder %v3329, 0
      %vm3362 = vcmp.gt.s32.totalorder %v3330, 0
      %vm3363 = vcmp.gt.s32.totalorder %v3331, 0
      %vm3364 = vcmp.gt.s32.totalorder %v3332, 0
      %vm3365 = vcmp.gt.s32.totalorder %v3333, 0
      %vm3366 = vcmp.gt.s32.totalorder %v3334, 0
      %vm3367 = vcmp.gt.s32.totalorder %v3335, 0
      %vm3368 = vcmp.gt.s32.totalorder %v3336, 0
      %vm3369 = vcmp.gt.s32.totalorder %v3337, 0
      %vm3370 = vcmp.gt.s32.totalorder %v3338, 0
      %vm3371 = vcmp.gt.s32.totalorder %v3339, 0
      %vm3372 = vcmp.gt.s32.totalorder %v3340, 0
      %vm3373 = vcmp.gt.s32.totalorder %v3341, 0
      %vm3374 = vcmp.gt.s32.totalorder %v3342, 0
      %vm3375 = vcmp.gt.s32.totalorder %v3343, 0
      %vm3376 = vcmp.gt.s32.totalorder %v3344, 0
      %vm3377 = vcmp.gt.s32.totalorder %v3345, 0
      %vm3378 = vcmp.gt.s32.totalorder %v3346, 0
      %vm3379 = vcmp.gt.s32.totalorder %v3347, 0
      %vm3380 = vcmp.gt.s32.totalorder %v3348, 0
      %vm3381 = vcmp.gt.s32.totalorder %v3349, 0
      %vm3382 = vcmp.gt.s32.totalorder %v3350, 0
      %vm3383 = vcmp.gt.s32.totalorder %v3351, 0
      %vm3384 = vcmp.gt.s32.totalorder %v3352, 0
      %vm3385 = vcmp.gt.s32.totalorder %v3353, 0
      %vm3386 = vcmp.gt.s32.totalorder %v3354, 0
      %vm3387 = vcmp.gt.s32.totalorder %v3355, 0
      %vm3388 = vcmp.lt.s32.totalorder %v3324, 15
      %vm3389 = vcmp.lt.s32.totalorder %v3325, 15
      %vm3390 = vcmp.lt.s32.totalorder %v3326, 15
      %vm3391 = vcmp.lt.s32.totalorder %v3327, 15
      %vm3392 = vcmp.lt.s32.totalorder %v3328, 15
      %vm3393 = vcmp.lt.s32.totalorder %v3329, 15
      %vm3394 = vcmp.lt.s32.totalorder %v3330, 15
      %vm3395 = vcmp.lt.s32.totalorder %v3331, 15
      %vm3396 = vcmp.lt.s32.totalorder %v3332, 15
      %vm3397 = vcmp.lt.s32.totalorder %v3333, 15
      %vm3398 = vcmp.lt.s32.totalorder %v3334, 15
      %vm3399 = vcmp.lt.s32.totalorder %v3335, 15
      %vm3400 = vcmp.lt.s32.totalorder %v3336, 15
      %vm3401 = vcmp.lt.s32.totalorder %v3337, 15
      %vm3402 = vcmp.lt.s32.totalorder %v3338, 15
      %vm3403 = vcmp.lt.s32.totalorder %v3339, 15
      %vm3404 = vcmp.lt.s32.totalorder %v3340, 15
      %vm3405 = vcmp.lt.s32.totalorder %v3341, 15
      %vm3406 = vcmp.lt.s32.totalorder %v3342, 15
      %vm3407 = vcmp.lt.s32.totalorder %v3343, 15
      %vm3408 = vcmp.lt.s32.totalorder %v3344, 15
      %vm3409 = vcmp.lt.s32.totalorder %v3345, 15
      %vm3410 = vcmp.lt.s32.totalorder %v3346, 15
      %vm3411 = vcmp.lt.s32.totalorder %v3347, 15
      %vm3412 = vcmp.lt.s32.totalorder %v3348, 15
      %vm3413 = vcmp.lt.s32.totalorder %v3349, 15
      %vm3414 = vcmp.lt.s32.totalorder %v3350, 15
      %vm3415 = vcmp.lt.s32.totalorder %v3351, 15
      %vm3416 = vcmp.lt.s32.totalorder %v3352, 15
      %vm3417 = vcmp.lt.s32.totalorder %v3353, 15
      %vm3418 = vcmp.lt.s32.totalorder %v3354, 15
      %vm3419 = vcmp.lt.s32.totalorder %v3355, 15
      %v3420 = vrot.slane %v2843, 7
      %v3421 = vrot.slane %v2844, 7
      %v3422 = vrot.slane %v2845, 7
      %v3423 = vrot.slane %v2846, 7
      %v3424 = vrot.slane %v2847, 7
      %v3425 = vrot.slane %v2848, 7
      %v3426 = vrot.slane %v2849, 7
      %v3427 = vrot.slane %v2850, 7
      %v3428 = vrot.slane %v2851, 7
      %v3429 = vrot.slane %v2852, 7
      %v3430 = vrot.slane %v2853, 7
      %v3431 = vrot.slane %v2854, 7
      %v3432 = vrot.slane %v2855, 7
      %v3433 = vrot.slane %v2856, 7
      %v3434 = vrot.slane %v2857, 7
      %v3435 = vrot.slane %v2858, 7
      %v3436 = vrot.slane %v2859, 7
      %v3437 = vrot.slane %v2860, 7
      %v3438 = vrot.slane %v2861, 7
      %v3439 = vrot.slane %v2862, 7
      %v3440 = vrot.slane %v2863, 7
      %v3441 = vrot.slane %v2864, 7
      %v3442 = vrot.slane %v2865, 7
      %v3443 = vrot.slane %v2866, 7
      %v3444 = vrot.slane %v2867, 7
      %v3445 = vrot.slane %v2868, 7
      %v3446 = vrot.slane %v2869, 7
      %v3447 = vrot.slane %v2870, 7
      %v3448 = vrot.slane %v2871, 7
      %v3449 = vrot.slane %v2872, 7
      %v3450 = vrot.slane %v2873, 7
      %v3451 = vrot.slane %v2874, 7
      %vm3452 = vcmp.lt.s32.totalorder %v2940, 1
      %v3453 = vsel %vm3452, %v3450, %v3451
      %v3454 = vsel %vm3452, %v3449, %v3450
      %v3455 = vsel %vm3452, %v3448, %v3449
      %v3456 = vsel %vm3452, %v3447, %v3448
      %v3457 = vsel %vm3452, %v3446, %v3447
      %v3458 = vsel %vm3452, %v3445, %v3446
      %v3459 = vsel %vm3452, %v3444, %v3445
      %v3460 = vsel %vm3452, %v3443, %v3444
      %v3461 = vsel %vm3452, %v3442, %v3443
      %v3462 = vsel %vm3452, %v3441, %v3442
      %v3463 = vsel %vm3452, %v3440, %v3441
      %v3464 = vsel %vm3452, %v3439, %v3440
      %v3465 = vsel %vm3452, %v3438, %v3439
      %v3466 = vsel %vm3452, %v3437, %v3438
      %v3467 = vsel %vm3452, %v3436, %v3437
      %v3468 = vsel %vm3452, %v3435, %v3436
      %v3469 = vsel %vm3452, %v3434, %v3435
      %v3470 = vsel %vm3452, %v3433, %v3434
      %v3471 = vsel %vm3452, %v3432, %v3433
      %v3472 = vsel %vm3452, %v3431, %v3432
      %v3473 = vsel %vm3452, %v3430, %v3431
      %v3474 = vsel %vm3452, %v3429, %v3430
      %v3475 = vsel %vm3452, %v3428, %v3429
      %v3476 = vsel %vm3452, %v3427, %v3428
      %v3477 = vsel %vm3452, %v3426, %v3427
      %v3478 = vsel %vm3452, %v3425, %v3426
      %v3479 = vsel %vm3452, %v3424, %v3425
      %v3480 = vsel %vm3452, %v3423, %v3424
      %v3481 = vsel %vm3452, %v3422, %v3423
      %v3482 = vsel %vm3452, %v3421, %v3422
      %v3483 = vsel %vm3452, %v3420, %v3421
      %v3484 = vsel %vm3452, %v3451, %v3420
      %v3485 = vsel %vm3356, 1, 0
      %v3486 = vsel %vm3357, 1, 0
      %v3487 = vsel %vm3358, 1, 0
      %v3488 = vsel %vm3359, 1, 0
      %v3489 = vsel %vm3360, 1, 0
      %v3490 = vsel %vm3361, 1, 0
      %v3491 = vsel %vm3362, 1, 0
      %v3492 = vsel %vm3363, 1, 0
      %v3493 = vsel %vm3364, 1, 0
      %v3494 = vsel %vm3365, 1, 0
      %v3495 = vsel %vm3366, 1, 0
      %v3496 = vsel %vm3367, 1, 0
      %v3497 = vsel %vm3368, 1, 0
      %v3498 = vsel %vm3369, 1, 0
      %v3499 = vsel %vm3370, 1, 0
      %v3500 = vsel %vm3371, 1, 0
      %v3501 = vsel %vm3372, 1, 0
      %v3502 = vsel %vm3373, 1, 0
      %v3503 = vsel %vm3374, 1, 0
      %v3504 = vsel %vm3375, 1, 0
      %v3505 = vsel %vm3376, 1, 0
      %v3506 = vsel %vm3377, 1, 0
      %v3507 = vsel %vm3378, 1, 0
      %v3508 = vsel %vm3379, 1, 0
      %v3509 = vsel %vm3380, 1, 0
      %v3510 = vsel %vm3381, 1, 0
      %v3511 = vsel %vm3382, 1, 0
      %v3512 = vsel %vm3383, 1, 0
      %v3513 = vsel %vm3384, 1, 0
      %v3514 = vsel %vm3385, 1, 0
      %v3515 = vsel %vm3386, 1, 0
      %v3516 = vsel %vm3387, 1, 0
      %vm3517 = vcmp.eq.s32.totalorder %v3485, 1
      %vm3518 = vcmp.eq.s32.totalorder %v3486, 1
      %vm3519 = vcmp.eq.s32.totalorder %v3487, 1
      %vm3520 = vcmp.eq.s32.totalorder %v3488, 1
      %vm3521 = vcmp.eq.s32.totalorder %v3489, 1
      %vm3522 = vcmp.eq.s32.totalorder %v3490, 1
      %vm3523 = vcmp.eq.s32.totalorder %v3491, 1
      %vm3524 = vcmp.eq.s32.totalorder %v3492, 1
      %vm3525 = vcmp.eq.s32.totalorder %v3493, 1
      %vm3526 = vcmp.eq.s32.totalorder %v3494, 1
      %vm3527 = vcmp.eq.s32.totalorder %v3495, 1
      %vm3528 = vcmp.eq.s32.totalorder %v3496, 1
      %vm3529 = vcmp.eq.s32.totalorder %v3497, 1
      %vm3530 = vcmp.eq.s32.totalorder %v3498, 1
      %vm3531 = vcmp.eq.s32.totalorder %v3499, 1
      %vm3532 = vcmp.eq.s32.totalorder %v3500, 1
      %vm3533 = vcmp.eq.s32.totalorder %v3501, 1
      %vm3534 = vcmp.eq.s32.totalorder %v3502, 1
      %vm3535 = vcmp.eq.s32.totalorder %v3503, 1
      %vm3536 = vcmp.eq.s32.totalorder %v3504, 1
      %vm3537 = vcmp.eq.s32.totalorder %v3505, 1
      %vm3538 = vcmp.eq.s32.totalorder %v3506, 1
      %vm3539 = vcmp.eq.s32.totalorder %v3507, 1
      %vm3540 = vcmp.eq.s32.totalorder %v3508, 1
      %vm3541 = vcmp.eq.s32.totalorder %v3509, 1
      %vm3542 = vcmp.eq.s32.totalorder %v3510, 1
      %vm3543 = vcmp.eq.s32.totalorder %v3511, 1
      %vm3544 = vcmp.eq.s32.totalorder %v3512, 1
      %vm3545 = vcmp.eq.s32.totalorder %v3513, 1
      %vm3546 = vcmp.eq.s32.totalorder %v3514, 1
      %vm3547 = vcmp.eq.s32.totalorder %v3515, 1
      %vm3548 = vcmp.eq.s32.totalorder %v3516, 1
      %v3549 = vsel %vm3517, %v3484, 0.0
      %v3550 = vsel %vm3518, %v3483, 0.0
      %v3551 = vsel %vm3519, %v3482, 0.0
      %v3552 = vsel %vm3520, %v3481, 0.0
      %v3553 = vsel %vm3521, %v3480, 0.0
      %v3554 = vsel %vm3522, %v3479, 0.0
      %v3555 = vsel %vm3523, %v3478, 0.0
      %v3556 = vsel %vm3524, %v3477, 0.0
      %v3557 = vsel %vm3525, %v3476, 0.0
      %v3558 = vsel %vm3526, %v3475, 0.0
      %v3559 = vsel %vm3527, %v3474, 0.0
      %v3560 = vsel %vm3528, %v3473, 0.0
      %v3561 = vsel %vm3529, %v3472, 0.0
      %v3562 = vsel %vm3530, %v3471, 0.0
      %v3563 = vsel %vm3531, %v3470, 0.0
      %v3564 = vsel %vm3532, %v3469, 0.0
      %v3565 = vsel %vm3533, %v3468, 0.0
      %v3566 = vsel %vm3534, %v3467, 0.0
      %v3567 = vsel %vm3535, %v3466, 0.0
      %v3568 = vsel %vm3536, %v3465, 0.0
      %v3569 = vsel %vm3537, %v3464, 0.0
      %v3570 = vsel %vm3538, %v3463, 0.0
      %v3571 = vsel %vm3539, %v3462, 0.0
      %v3572 = vsel %vm3540, %v3461, 0.0
      %v3573 = vsel %vm3541, %v3460, 0.0
      %v3574 = vsel %vm3542, %v3459, 0.0
      %v3575 = vsel %vm3543, %v3458, 0.0
      %v3576 = vsel %vm3544, %v3457, 0.0
      %v3577 = vsel %vm3545, %v3456, 0.0
      %v3578 = vsel %vm3546, %v3455, 0.0
      %v3579 = vsel %vm3547, %v3454, 0.0
      %v3580 = vsel %vm3548, %v3453, 0.0
      %v3581 = vadd.f32 %v2875, %v3549
      %v3582 = vadd.f32 %v2876, %v3550
      %v3583 = vadd.f32 %v2877, %v3551
      %v3584 = vadd.f32 %v2878, %v3552
      %v3585 = vadd.f32 %v2879, %v3553
      %v3586 = vadd.f32 %v2880, %v3554
      %v3587 = vadd.f32 %v2881, %v3555
      %v3588 = vadd.f32 %v2882, %v3556
      %v3589 = vadd.f32 %v2883, %v3557
      %v3590 = vadd.f32 %v2884, %v3558
      %v3591 = vadd.f32 %v2885, %v3559
      %v3592 = vadd.f32 %v2886, %v3560
      %v3593 = vadd.f32 %v2887, %v3561
      %v3594 = vadd.f32 %v2888, %v3562
      %v3595 = vadd.f32 %v2889, %v3563
      %v3596 = vadd.f32 %v2890, %v3564
      %v3597 = vadd.f32 %v2891, %v3565
      %v3598 = vadd.f32 %v2892, %v3566
      %v3599 = vadd.f32 %v2893, %v3567
      %v3600 = vadd.f32 %v2894, %v3568
      %v3601 = vadd.f32 %v2895, %v3569
      %v3602 = vadd.f32 %v2896, %v3570
      %v3603 = vadd.f32 %v2897, %v3571
      %v3604 = vadd.f32 %v2898, %v3572
      %v3605 = vadd.f32 %v2899, %v3573
      %v3606 = vadd.f32 %v2900, %v3574
      %v3607 = vadd.f32 %v2901, %v3575
      %v3608 = vadd.f32 %v2902, %v3576
      %v3609 = vadd.f32 %v2903, %v3577
      %v3610 = vadd.f32 %v2904, %v3578
      %v3611 = vadd.f32 %v2905, %v3579
      %v3612 = vadd.f32 %v2906, %v3580
      %v3613 = vrot.slane %v2907, 1
      %v3614 = vrot.slane %v2908, 1
      %v3615 = vrot.slane %v2909, 1
      %v3616 = vrot.slane %v2910, 1
      %v3617 = vrot.slane %v2911, 1
      %v3618 = vrot.slane %v2912, 1
      %v3619 = vrot.slane %v2913, 1
      %v3620 = vrot.slane %v2914, 1
      %v3621 = vrot.slane %v2915, 1
      %v3622 = vrot.slane %v2916, 1
      %v3623 = vrot.slane %v2917, 1
      %v3624 = vrot.slane %v2918, 1
      %v3625 = vrot.slane %v2919, 1
      %v3626 = vrot.slane %v2920, 1
      %v3627 = vrot.slane %v2921, 1
      %v3628 = vrot.slane %v2922, 1
      %v3629 = vrot.slane %v2923, 1
      %v3630 = vrot.slane %v2924, 1
      %v3631 = vrot.slane %v2925, 1
      %v3632 = vrot.slane %v2926, 1
      %v3633 = vrot.slane %v2927, 1
      %v3634 = vrot.slane %v2928, 1
      %v3635 = vrot.slane %v2929, 1
      %v3636 = vrot.slane %v2930, 1
      %v3637 = vrot.slane %v2931, 1
      %v3638 = vrot.slane %v2932, 1
      %v3639 = vrot.slane %v2933, 1
      %v3640 = vrot.slane %v2934, 1
      %v3641 = vrot.slane %v2935, 1
      %v3642 = vrot.slane %v2936, 1
      %v3643 = vrot.slane %v2937, 1
      %v3644 = vrot.slane %v2938, 1
      %vm3645 = vcmp.lt.s32.totalorder %v2940, 7
      %v3646 = vsel %vm3645, %v3643, %v3644
      %v3647 = vsel %vm3645, %v3642, %v3643
      %v3648 = vsel %vm3645, %v3641, %v3642
      %v3649 = vsel %vm3645, %v3640, %v3641
      %v3650 = vsel %vm3645, %v3639, %v3640
      %v3651 = vsel %vm3645, %v3638, %v3639
      %v3652 = vsel %vm3645, %v3637, %v3638
      %v3653 = vsel %vm3645, %v3636, %v3637
      %v3654 = vsel %vm3645, %v3635, %v3636
      %v3655 = vsel %vm3645, %v3634, %v3635
      %v3656 = vsel %vm3645, %v3633, %v3634
      %v3657 = vsel %vm3645, %v3632, %v3633
      %v3658 = vsel %vm3645, %v3631, %v3632
      %v3659 = vsel %vm3645, %v3630, %v3631
      %v3660 = vsel %vm3645, %v3629, %v3630
      %v3661 = vsel %vm3645, %v3628, %v3629
      %v3662 = vsel %vm3645, %v3627, %v3628
      %v3663 = vsel %vm3645, %v3626, %v3627
      %v3664 = vsel %vm3645, %v3625, %v3626
      %v3665 = vsel %vm3645, %v3624, %v3625
      %v3666 = vsel %vm3645, %v3623, %v3624
      %v3667 = vsel %vm3645, %v3622, %v3623
      %v3668 = vsel %vm3645, %v3621, %v3622
      %v3669 = vsel %vm3645, %v3620, %v3621
      %v3670 = vsel %vm3645, %v3619, %v3620
      %v3671 = vsel %vm3645, %v3618, %v3619
      %v3672 = vsel %vm3645, %v3617, %v3618
      %v3673 = vsel %vm3645, %v3616, %v3617
      %v3674 = vsel %vm3645, %v3615, %v3616
      %v3675 = vsel %vm3645, %v3614, %v3615
      %v3676 = vsel %vm3645, %v3613, %v3614
      %v3677 = vsel %vm3645, %v3644, %v3613
      %v3678 = vsel %vm3388, 1, 0
      %v3679 = vsel %vm3389, 1, 0
      %v3680 = vsel %vm3390, 1, 0
      %v3681 = vsel %vm3391, 1, 0
      %v3682 = vsel %vm3392, 1, 0
      %v3683 = vsel %vm3393, 1, 0
      %v3684 = vsel %vm3394, 1, 0
      %v3685 = vsel %vm3395, 1, 0
      %v3686 = vsel %vm3396, 1, 0
      %v3687 = vsel %vm3397, 1, 0
      %v3688 = vsel %vm3398, 1, 0
      %v3689 = vsel %vm3399, 1, 0
      %v3690 = vsel %vm3400, 1, 0
      %v3691 = vsel %vm3401, 1, 0
      %v3692 = vsel %vm3402, 1, 0
      %v3693 = vsel %vm3403, 1, 0
      %v3694 = vsel %vm3404, 1, 0
      %v3695 = vsel %vm3405, 1, 0
      %v3696 = vsel %vm3406, 1, 0
      %v3697 = vsel %vm3407, 1, 0
      %v3698 = vsel %vm3408, 1, 0
      %v3699 = vsel %vm3409, 1, 0
      %v3700 = vsel %vm3410, 1, 0
      %v3701 = vsel %vm3411, 1, 0
      %v3702 = vsel %vm3412, 1, 0
      %v3703 = vsel %vm3413, 1, 0
      %v3704 = vsel %vm3414, 1, 0
      %v3705 = vsel %vm3415, 1, 0
      %v3706 = vsel %vm3416, 1, 0
      %v3707 = vsel %vm3417, 1, 0
      %v3708 = vsel %vm3418, 1, 0
      %v3709 = vsel %vm3419, 1, 0
      %vm3710 = vcmp.eq.s32.totalorder %v3678, 1
      %vm3711 = vcmp.eq.s32.totalorder %v3679, 1
      %vm3712 = vcmp.eq.s32.totalorder %v3680, 1
      %vm3713 = vcmp.eq.s32.totalorder %v3681, 1
      %vm3714 = vcmp.eq.s32.totalorder %v3682, 1
      %vm3715 = vcmp.eq.s32.totalorder %v3683, 1
      %vm3716 = vcmp.eq.s32.totalorder %v3684, 1
      %vm3717 = vcmp.eq.s32.totalorder %v3685, 1
      %vm3718 = vcmp.eq.s32.totalorder %v3686, 1
      %vm3719 = vcmp.eq.s32.totalorder %v3687, 1
      %vm3720 = vcmp.eq.s32.totalorder %v3688, 1
      %vm3721 = vcmp.eq.s32.totalorder %v3689, 1
      %vm3722 = vcmp.eq.s32.totalorder %v3690, 1
      %vm3723 = vcmp.eq.s32.totalorder %v3691, 1
      %vm3724 = vcmp.eq.s32.totalorder %v3692, 1
      %vm3725 = vcmp.eq.s32.totalorder %v3693, 1
      %vm3726 = vcmp.eq.s32.totalorder %v3694, 1
      %vm3727 = vcmp.eq.s32.totalorder %v3695, 1
      %vm3728 = vcmp.eq.s32.totalorder %v3696, 1
      %vm3729 = vcmp.eq.s32.totalorder %v3697, 1
      %vm3730 = vcmp.eq.s32.totalorder %v3698, 1
      %vm3731 = vcmp.eq.s32.totalorder %v3699, 1
      %vm3732 = vcmp.eq.s32.totalorder %v3700, 1
      %vm3733 = vcmp.eq.s32.totalorder %v3701, 1
      %vm3734 = vcmp.eq.s32.totalorder %v3702, 1
      %vm3735 = vcmp.eq.s32.totalorder %v3703, 1
      %vm3736 = vcmp.eq.s32.totalorder %v3704, 1
      %vm3737 = vcmp.eq.s32.totalorder %v3705, 1
      %vm3738 = vcmp.eq.s32.totalorder %v3706, 1
      %vm3739 = vcmp.eq.s32.totalorder %v3707, 1
      %vm3740 = vcmp.eq.s32.totalorder %v3708, 1
      %vm3741 = vcmp.eq.s32.totalorder %v3709, 1
      %v3742 = vsel %vm3710, %v3676, 0.0
      %v3743 = vsel %vm3711, %v3675, 0.0
      %v3744 = vsel %vm3712, %v3674, 0.0
      %v3745 = vsel %vm3713, %v3673, 0.0
      %v3746 = vsel %vm3714, %v3672, 0.0
      %v3747 = vsel %vm3715, %v3671, 0.0
      %v3748 = vsel %vm3716, %v3670, 0.0
      %v3749 = vsel %vm3717, %v3669, 0.0
      %v3750 = vsel %vm3718, %v3668, 0.0
      %v3751 = vsel %vm3719, %v3667, 0.0
      %v3752 = vsel %vm3720, %v3666, 0.0
      %v3753 = vsel %vm3721, %v3665, 0.0
      %v3754 = vsel %vm3722, %v3664, 0.0
      %v3755 = vsel %vm3723, %v3663, 0.0
      %v3756 = vsel %vm3724, %v3662, 0.0
      %v3757 = vsel %vm3725, %v3661, 0.0
      %v3758 = vsel %vm3726, %v3660, 0.0
      %v3759 = vsel %vm3727, %v3659, 0.0
      %v3760 = vsel %vm3728, %v3658, 0.0
      %v3761 = vsel %vm3729, %v3657, 0.0
      %v3762 = vsel %vm3730, %v3656, 0.0
      %v3763 = vsel %vm3731, %v3655, 0.0
      %v3764 = vsel %vm3732, %v3654, 0.0
      %v3765 = vsel %vm3733, %v3653, 0.0
      %v3766 = vsel %vm3734, %v3652, 0.0
      %v3767 = vsel %vm3735, %v3651, 0.0
      %v3768 = vsel %vm3736, %v3650, 0.0
      %v3769 = vsel %vm3737, %v3649, 0.0
      %v3770 = vsel %vm3738, %v3648, 0.0
      %v3771 = vsel %vm3739, %v3647, 0.0
      %v3772 = vsel %vm3740, %v3646, 0.0
      %v3773 = vsel %vm3741, %v3677, 0.0
      %v3774 = vadd.f32 %v3581, %v3742
      %v3775 = vadd.f32 %v3582, %v3743
      %v3776 = vadd.f32 %v3583, %v3744
      %v3777 = vadd.f32 %v3584, %v3745
      %v3778 = vadd.f32 %v3585, %v3746
      %v3779 = vadd.f32 %v3586, %v3747
      %v3780 = vadd.f32 %v3587, %v3748
      %v3781 = vadd.f32 %v3588, %v3749
      %v3782 = vadd.f32 %v3589, %v3750
      %v3783 = vadd.f32 %v3590, %v3751
      %v3784 = vadd.f32 %v3591, %v3752
      %v3785 = vadd.f32 %v3592, %v3753
      %v3786 = vadd.f32 %v3593, %v3754
      %v3787 = vadd.f32 %v3594, %v3755
      %v3788 = vadd.f32 %v3595, %v3756
      %v3789 = vadd.f32 %v3596, %v3757
      %v3790 = vadd.f32 %v3597, %v3758
      %v3791 = vadd.f32 %v3598, %v3759
      %v3792 = vadd.f32 %v3599, %v3760
      %v3793 = vadd.f32 %v3600, %v3761
      %v3794 = vadd.f32 %v3601, %v3762
      %v3795 = vadd.f32 %v3602, %v3763
      %v3796 = vadd.f32 %v3603, %v3764
      %v3797 = vadd.f32 %v3604, %v3765
      %v3798 = vadd.f32 %v3605, %v3766
      %v3799 = vadd.f32 %v3606, %v3767
      %v3800 = vadd.f32 %v3607, %v3768
      %v3801 = vadd.f32 %v3608, %v3769
      %v3802 = vadd.f32 %v3609, %v3770
      %v3803 = vadd.f32 %v3610, %v3771
      %v3804 = vadd.f32 %v3611, %v3772
      %v3805 = vadd.f32 %v3612, %v3773
      %v3806 = vld [vmem:[%s470] sm:$0xff]
      %v3807 = vld [vmem:[%s470 + $0x8] sm:$0xff]
      %v3808 = vld [vmem:[%s470 + $0x10] sm:$0xff]
      %v3809 = vld [vmem:[%s470 + $0x18] sm:$0xff]
      %v3810 = vld [vmem:[%s470 + $0x20] sm:$0xff]
      %v3811 = vld [vmem:[%s470 + $0x28] sm:$0xff]
      %v3812 = vld [vmem:[%s470 + $0x30] sm:$0xff]
      %v3813 = vld [vmem:[%s470 + $0x38] sm:$0xff]
      %v3814 = vld [vmem:[%s470 + $0x40] sm:$0xff]
      %v3815 = vld [vmem:[%s470 + $0x48] sm:$0xff]
      %v3816 = vld [vmem:[%s470 + $0x50] sm:$0xff]
      %v3817 = vld [vmem:[%s470 + $0x58] sm:$0xff]
      %v3818 = vld [vmem:[%s470 + $0x60] sm:$0xff]
      %v3819 = vld [vmem:[%s470 + $0x68] sm:$0xff]
      %v3820 = vld [vmem:[%s470 + $0x70] sm:$0xff]
      %v3821 = vld [vmem:[%s470 + $0x78] sm:$0xff]
      %v3822 = vld [vmem:[%s470 + $0x80] sm:$0xff]
      %v3823 = vld [vmem:[%s470 + $0x88] sm:$0xff]
      %v3824 = vld [vmem:[%s470 + $0x90] sm:$0xff]
      %v3825 = vld [vmem:[%s470 + $0x98] sm:$0xff]
      %v3826 = vld [vmem:[%s470 + $0xa0] sm:$0xff]
      %v3827 = vld [vmem:[%s470 + $0xa8] sm:$0xff]
      %v3828 = vld [vmem:[%s470 + $0xb0] sm:$0xff]
      %v3829 = vld [vmem:[%s470 + $0xb8] sm:$0xff]
      %v3830 = vld [vmem:[%s470 + $0xc0] sm:$0xff]
      %v3831 = vld [vmem:[%s470 + $0xc8] sm:$0xff]
      %v3832 = vld [vmem:[%s470 + $0xd0] sm:$0xff]
      %v3833 = vld [vmem:[%s470 + $0xd8] sm:$0xff]
      %v3834 = vld [vmem:[%s470 + $0xe0] sm:$0xff]
      %v3835 = vld [vmem:[%s470 + $0xe8] sm:$0xff]
      %v3836 = vld [vmem:[%s470 + $0xf0] sm:$0xff]
      %v3837 = vld [vmem:[%s470 + $0xf8] sm:$0xff]
      %3838 = vst.msk [vmem:[%s498] sm:$0xff] %vm663, %v3806
      %3839 = vst.msk [vmem:[%s498 + $0x8] sm:$0xff] %vm663, %v3807
      %3840 = vst.msk [vmem:[%s498 + $0x10] sm:$0xff] %vm663, %v3808
      %3841 = vst.msk [vmem:[%s498 + $0x18] sm:$0xff] %vm663, %v3809
      %3842 = vst.msk [vmem:[%s498 + $0x20] sm:$0xff] %vm663, %v3810
      %3843 = vst.msk [vmem:[%s498 + $0x28] sm:$0xff] %vm663, %v3811
      %3844 = vst.msk [vmem:[%s498 + $0x30] sm:$0xff] %vm663, %v3812
      %3845 = vst.msk [vmem:[%s498 + $0x38] sm:$0xff] %vm663, %v3813
      %3846 = vst.msk [vmem:[%s498 + $0x40] sm:$0xff] %vm663, %v3814
      %3847 = vst.msk [vmem:[%s498 + $0x48] sm:$0xff] %vm663, %v3815
      %3848 = vst.msk [vmem:[%s498 + $0x50] sm:$0xff] %vm663, %v3816
      %3849 = vst.msk [vmem:[%s498 + $0x58] sm:$0xff] %vm663, %v3817
      %3850 = vst.msk [vmem:[%s498 + $0x60] sm:$0xff] %vm663, %v3818
      %3851 = vst.msk [vmem:[%s498 + $0x68] sm:$0xff] %vm663, %v3819
      %3852 = vst.msk [vmem:[%s498 + $0x70] sm:$0xff] %vm663, %v3820
      %3853 = vst.msk [vmem:[%s498 + $0x78] sm:$0xff] %vm663, %v3821
      %3854 = vst.msk [vmem:[%s498 + $0x80] sm:$0xff] %vm663, %v3822
      %3855 = vst.msk [vmem:[%s498 + $0x88] sm:$0xff] %vm663, %v3823
      %3856 = vst.msk [vmem:[%s498 + $0x90] sm:$0xff] %vm663, %v3824
      %3857 = vst.msk [vmem:[%s498 + $0x98] sm:$0xff] %vm663, %v3825
      %3858 = vst.msk [vmem:[%s498 + $0xa0] sm:$0xff] %vm663, %v3826
      %3859 = vst.msk [vmem:[%s498 + $0xa8] sm:$0xff] %vm663, %v3827
      %3860 = vst.msk [vmem:[%s498 + $0xb0] sm:$0xff] %vm663, %v3828
      %3861 = vst.msk [vmem:[%s498 + $0xb8] sm:$0xff] %vm663, %v3829
      %3862 = vst.msk [vmem:[%s498 + $0xc0] sm:$0xff] %vm663, %v3830
      %3863 = vst.msk [vmem:[%s498 + $0xc8] sm:$0xff] %vm663, %v3831
      %3864 = vst.msk [vmem:[%s498 + $0xd0] sm:$0xff] %vm663, %v3832
      %3865 = vst.msk [vmem:[%s498 + $0xd8] sm:$0xff] %vm663, %v3833
      %3866 = vst.msk [vmem:[%s498 + $0xe0] sm:$0xff] %vm663, %v3834
      %3867 = vst.msk [vmem:[%s498 + $0xe8] sm:$0xff] %vm663, %v3835
      %3868 = vst.msk [vmem:[%s498 + $0xf0] sm:$0xff] %vm663, %v3836
      %3869 = vst.msk [vmem:[%s498 + $0xf8] sm:$0xff] %vm663, %v3837
      %3902 = vrot.lane.b32.xlu0 %v3774, 4
      %v3903 = vpop.permute.xlu0 %3902
      %3904 = vrot.lane.b32.xlu0 %v3775, 4
      %v3905 = vpop.permute.xlu0 %3904
      %3906 = vrot.lane.b32.xlu0 %v3776, 4
      %v3907 = vpop.permute.xlu0 %3906
      %3908 = vrot.lane.b32.xlu0 %v3777, 4
      %v3909 = vpop.permute.xlu0 %3908
      %3910 = vrot.lane.b32.xlu0 %v3778, 4
      %v3911 = vpop.permute.xlu0 %3910
      %3912 = vrot.lane.b32.xlu0 %v3779, 4
      %v3913 = vpop.permute.xlu0 %3912
      %3914 = vrot.lane.b32.xlu0 %v3780, 4
      %v3915 = vpop.permute.xlu0 %3914
      %3916 = vrot.lane.b32.xlu0 %v3781, 4
      %v3917 = vpop.permute.xlu0 %3916
      %3918 = vrot.lane.b32.xlu0 %v3782, 4
      %v3919 = vpop.permute.xlu0 %3918
      %3920 = vrot.lane.b32.xlu0 %v3783, 4
      %v3921 = vpop.permute.xlu0 %3920
      %3922 = vrot.lane.b32.xlu0 %v3784, 4
      %v3923 = vpop.permute.xlu0 %3922
      %3924 = vrot.lane.b32.xlu0 %v3785, 4
      %v3925 = vpop.permute.xlu0 %3924
      %3926 = vrot.lane.b32.xlu0 %v3786, 4
      %v3927 = vpop.permute.xlu0 %3926
      %3928 = vrot.lane.b32.xlu0 %v3787, 4
      %v3929 = vpop.permute.xlu0 %3928
      %3930 = vrot.lane.b32.xlu0 %v3788, 4
      %v3931 = vpop.permute.xlu0 %3930
      %3932 = vrot.lane.b32.xlu0 %v3789, 4
      %v3933 = vpop.permute.xlu0 %3932
      %3934 = vrot.lane.b32.xlu0 %v3790, 4
      %v3935 = vpop.permute.xlu0 %3934
      %3936 = vrot.lane.b32.xlu0 %v3791, 4
      %v3937 = vpop.permute.xlu0 %3936
      %3938 = vrot.lane.b32.xlu0 %v3792, 4
      %v3939 = vpop.permute.xlu0 %3938
      %3940 = vrot.lane.b32.xlu0 %v3793, 4
      %v3941 = vpop.permute.xlu0 %3940
      %3942 = vrot.lane.b32.xlu0 %v3794, 4
      %v3943 = vpop.permute.xlu0 %3942
      %3944 = vrot.lane.b32.xlu0 %v3795, 4
      %v3945 = vpop.permute.xlu0 %3944
      %3946 = vrot.lane.b32.xlu0 %v3796, 4
      %v3947 = vpop.permute.xlu0 %3946
      %3948 = vrot.lane.b32.xlu0 %v3797, 4
      %v3949 = vpop.permute.xlu0 %3948
      %3950 = vrot.lane.b32.xlu0 %v3798, 4
      %v3951 = vpop.permute.xlu0 %3950
      %3952 = vrot.lane.b32.xlu0 %v3799, 4
      %v3953 = vpop.permute.xlu0 %3952
      %3954 = vrot.lane.b32.xlu0 %v3800, 4
      %v3955 = vpop.permute.xlu0 %3954
      %3956 = vrot.lane.b32.xlu0 %v3801, 4
      %v3957 = vpop.permute.xlu0 %3956
      %3958 = vrot.lane.b32.xlu0 %v3802, 4
      %v3959 = vpop.permute.xlu0 %3958
      %3960 = vrot.lane.b32.xlu0 %v3803, 4
      %v3961 = vpop.permute.xlu0 %3960
      %3962 = vrot.lane.b32.xlu0 %v3804, 4
      %v3963 = vpop.permute.xlu0 %3962
      %3964 = vrot.lane.b32.xlu0 %v3805, 4
      %v3965 = vpop.permute.xlu0 %3964
      %vm3998 = vcmask 97312
      %3999 = vst.msk [vmem:[%s498] sm:$0xff] %vm3998, %v3903
      %4000 = vst.msk [vmem:[%s498 + $0x8] sm:$0xff] %vm3998, %v3905
      %4001 = vst.msk [vmem:[%s498 + $0x10] sm:$0xff] %vm3998, %v3907
      %4002 = vst.msk [vmem:[%s498 + $0x18] sm:$0xff] %vm3998, %v3909
      %4003 = vst.msk [vmem:[%s498 + $0x20] sm:$0xff] %vm3998, %v3911
      %4004 = vst.msk [vmem:[%s498 + $0x28] sm:$0xff] %vm3998, %v3913
      %4005 = vst.msk [vmem:[%s498 + $0x30] sm:$0xff] %vm3998, %v3915
      %4006 = vst.msk [vmem:[%s498 + $0x38] sm:$0xff] %vm3998, %v3917
      %4007 = vst.msk [vmem:[%s498 + $0x40] sm:$0xff] %vm3998, %v3919
      %4008 = vst.msk [vmem:[%s498 + $0x48] sm:$0xff] %vm3998, %v3921
      %4009 = vst.msk [vmem:[%s498 + $0x50] sm:$0xff] %vm3998, %v3923
      %4010 = vst.msk [vmem:[%s498 + $0x58] sm:$0xff] %vm3998, %v3925
      %4011 = vst.msk [vmem:[%s498 + $0x60] sm:$0xff] %vm3998, %v3927
      %4012 = vst.msk [vmem:[%s498 + $0x68] sm:$0xff] %vm3998, %v3929
      %4013 = vst.msk [vmem:[%s498 + $0x70] sm:$0xff] %vm3998, %v3931
      %4014 = vst.msk [vmem:[%s498 + $0x78] sm:$0xff] %vm3998, %v3933
      %4015 = vst.msk [vmem:[%s498 + $0x80] sm:$0xff] %vm3998, %v3935
      %4016 = vst.msk [vmem:[%s498 + $0x88] sm:$0xff] %vm3998, %v3937
      %4017 = vst.msk [vmem:[%s498 + $0x90] sm:$0xff] %vm3998, %v3939
      %4018 = vst.msk [vmem:[%s498 + $0x98] sm:$0xff] %vm3998, %v3941
      %4019 = vst.msk [vmem:[%s498 + $0xa0] sm:$0xff] %vm3998, %v3943
      %4020 = vst.msk [vmem:[%s498 + $0xa8] sm:$0xff] %vm3998, %v3945
      %4021 = vst.msk [vmem:[%s498 + $0xb0] sm:$0xff] %vm3998, %v3947
      %4022 = vst.msk [vmem:[%s498 + $0xb8] sm:$0xff] %vm3998, %v3949
      %4023 = vst.msk [vmem:[%s498 + $0xc0] sm:$0xff] %vm3998, %v3951
      %4024 = vst.msk [vmem:[%s498 + $0xc8] sm:$0xff] %vm3998, %v3953
      %4025 = vst.msk [vmem:[%s498 + $0xd0] sm:$0xff] %vm3998, %v3955
      %4026 = vst.msk [vmem:[%s498 + $0xd8] sm:$0xff] %vm3998, %v3957
      %4027 = vst.msk [vmem:[%s498 + $0xe0] sm:$0xff] %vm3998, %v3959
      %4028 = vst.msk [vmem:[%s498 + $0xe8] sm:$0xff] %vm3998, %v3961
      %4029 = vst.msk [vmem:[%s498 + $0xf0] sm:$0xff] %vm3998, %v3963
      %4030 = vst.msk [vmem:[%s498 + $0xf8] sm:$0xff] %vm3998, %v3965
      %s4031 = smul.u32 32, %s25
      %p4032 = scmp.lt.s32.totalorder %s24, 1
      %s4033 = scalar_select %p4032, %s24, 1
      %p4034 = scmp.lt.s32.totalorder %s4031, 31
      %s4035 = scalar_select %p4034, %s4031, 31
      %s4036 = smul.addr %s4033, 32
      %s4037 = sadd.s32 %s4035, %s4036
      %s4038 = smul.addr %s4037, 8
      %s4039 = scalar_lea.vmem %s9, %s4038
      // Predicated region
      $region73: #{bottleneck_block_forward.1} parent=55 // pred_check
        %p4040 = pneg %p278
      $region74: #{bottleneck_block_forward.1} parent=55 // pred_check_branch
        %4042 = sbr.rel (%p4040) target = $region76
      $region75: #{bottleneck_block_forward.1} parent=55 // pred_region
        %s4043 = smul.u32 32, %s25
      $region76: #{bottleneck_block_forward.1} parent=55 // pred_fallthru
        _
    $region56: #{bottleneck_block_forward.1} parent=5 // pred_fallthru
      _
    %p4044 = scmp.le.s32.totalorder 2, %s15
    // Predicated region
    $region77: #{bottleneck_block_forward.1} parent=5 // pred_check
      %p4045 = pneg %p4044
    $region78: #{bottleneck_block_forward.1} parent=5 // pred_check_branch
      %4047 = sbr.rel (%p4045) target = $region80
    $region79: #{bottleneck_block_forward.1} parent=5 // pred_region
      %s4048 = ssub.s32 %s15, 2
      // Predicated region
      $region81: #{bottleneck_block_forward.1} parent=79 // pred_check
        %p4049 = pneg %p284
      $region82: #{bottleneck_block_forward.1} parent=79 // pred_check_branch
        %4051 = sbr.rel (%p4049) target = $region84
      $region83: #{bottleneck_block_forward.1} parent=79 // pred_region
        %s4052 = smul.u32 32, %s27
        %p4053 = scmp.lt.s32.totalorder %s26, 1
        %s4054 = scalar_select %p4053, %s26, 1
        %p4055 = scmp.lt.s32.totalorder %s4052, 31
        %s4056 = scalar_select %p4055, %s4052, 31
        %s4057 = smul.addr %s4054, 32
        %s4058 = sadd.s32 %s4056, %s4057
        %s4059 = smul.addr %s4058, 8
        %s4060 = scalar_lea.vmem %s9, %s4059
      $region84: #{bottleneck_block_forward.1} parent=79 // pred_fallthru
        _
    $region80: #{bottleneck_block_forward.1} parent=5 // pred_fallthru
      _
  $region6: #{bottleneck_block_forward.1} parent=0 // loop_footer
    %s19 = sadd.s32 1, %s15
  $region7: #{bottleneck_block_forward.1} parent=0 // loop_footer_branch
    %14 = sbr.rel target = $region3
  $region8: #{bottleneck_block_forward.1} parent=0 // loop_exit
    _

</llo_original>
